<compile_context>
chip_gen: v6e
topology: v6e:2x2x1
jax: 0.10.0
libtpu: 0.0.40
codegen_flags: <defaults>
</compile_context>

<pallas_src>
import functools

import jax
import jax.numpy as jnp
from jax.experimental import pallas as pl
from jax.experimental.pallas import tpu as pltpu


# ----------------------------------------------------------------------------
# Kernel 1: 1x1 conv (lane-dense matmul) + sigmoid    self._sigmoid(self._conv(X))
# ----------------------------------------------------------------------------
def _conv1x1_sigmoid_kernel(xt_ref, w_ref, b_ref, o_ref):
    # xt: (512, N*49)   w: (C, 512)   b: (C, 1)   ->   o: (C, N*49)
    y = jnp.dot(w_ref[...], xt_ref[...], preferred_element_type=jnp.float32)
    o_ref[...] = jax.nn.sigmoid(y + b_ref[...])


def conv1x1_sigmoid(xt, w, b_col):
    c, k = w.shape
    cols = xt.shape[1]
    cost = pl.CostEstimate(
        flops=int(2 * c * k * cols),
        transcendentals=int(c * cols),
        bytes_accessed=int(4 * (xt.size + w.size + b_col.size + c * cols)),
    )
    return pl.pallas_call(
        _conv1x1_sigmoid_kernel,
        out_shape=jax.ShapeDtypeStruct((c, cols), jnp.float32),
        cost_estimate=cost,
    )(xt, w, b_col)


# ----------------------------------------------------------------------------
# Kernel 2: fused multi-layer LSTM (batch=1, seq_len=N) + output heads
# PyTorch gate order: [i, f, g, o];  bias = b_ih + b_hh (folded in wrapper)
# ----------------------------------------------------------------------------
def _fused_lstm_heads_kernel(*refs, hidden, layers, seq_len):
    # refs layout:
    #   inputs : x(N,C49) coords(N,3) wih0_main(C49,4H) wih0_coord(3,4H)
    #            whh0(H,4H) b0(1,4H)
    #            [wih_l(H,4H) whh_l(H,4H) b_l(1,4H)]  for l = 1..layers-1
    #            w_heads(H,7) b_heads(1,7)
    #   outputs: vel(N,6) claw(N,1)
    #   scratch: hseq(N,H)
    n_in = 6 + 3 * (layers - 1) + 2
    x_ref, coords_ref, wih0m_ref, wih0c_ref, whh0_ref, b0_ref = refs[:6]
    extra = refs[6:6 + 3 * (layers - 1)]
    wh_ref, bh_ref = refs[n_in - 2], refs[n_in - 1]
    vel_ref, claw_ref = refs[n_in], refs[n_in + 1]
    hseq_ref = refs[n_in + 2]

    H = hidden

    def run_layer(gates_x, whh):
        # gates_x: (seq_len, 4H) hoisted input projection (bias already added).
        # Only the recurrent M=1 matmul + elementwise gate math stays in the loop.
        h = jnp.zeros((1, H), jnp.float32)
        c = jnp.zeros((1, H), jnp.float32)
        for t in range(seq_len):                          # static unroll
            g = gates_x[t:t + 1, :] + jnp.dot(
                h, whh, preferred_element_type=jnp.float32)
            i_g = jax.nn.sigmoid(g[:, 0 * H:1 * H])
            f_g = jax.nn.sigmoid(g[:, 1 * H:2 * H])
            g_g = jnp.tanh(g[:, 2 * H:3 * H])
            o_g = jax.nn.sigmoid(g[:, 3 * H:4 * H])
            c = f_g * c + i_g * g_g
            h = o_g * jnp.tanh(c)
            hseq_ref[pl.ds(t, 1), :] = h                  # VMEM scratch, static offset

    # ---- layer 0: one batched input projection for the whole sequence ----
    gx = jnp.dot(x_ref[...], wih0m_ref[...],
                 preferred_element_type=jnp.float32) + b0_ref[...]
    coords = coords_ref[...]
    wih0c = wih0c_ref[...]
    for j in range(3):                                    # coords term: 3 broadcast FMAs
        gx = gx + coords[:, j:j + 1] * wih0c[j:j + 1, :]
    run_layer(gx, whh0_ref[...])

    # ---- layers 1 .. L-1: batched projection of previous layer's outputs ----
    for l in range(layers - 1):
        wih_ref, whh_ref, b_ref = extra[3 * l:3 * l + 3]
        h_prev = hseq_ref[...]                            # (seq_len, H)
        gx = jnp.dot(h_prev, wih_ref[...],
                     preferred_element_type=jnp.float32) + b_ref[...]
        run_layer(gx, whh_ref[...])

    # ---- heads: single merged (H, 7) matmul, bulk stores ----
    h_all = hseq_ref[...]
    z = jnp.dot(h_all, wh_ref[...], preferred_element_type=jnp.float32) + bh_ref[...]
    vel_ref[...] = jnp.tanh(z[:, 0:6])
    claw_ref[...] = jax.nn.sigmoid(z[:, 6:7])


def fused_lstm_heads(y_lstm, coords, params, hidden, layers):
    n, c49 = y_lstm.shape
    wih0 = params["lstm_wih_t"][0]                        # (C*49 + 3, 4H)
    args = [y_lstm, coords, wih0[:c49], wih0[c49:],
            params["lstm_whh_t"][0], params["lstm_b"][0]]
    for l in range(1, layers):
        args += [params["lstm_wih_t"][l], params["lstm_whh_t"][l], params["lstm_b"][l]]
    w_heads = jnp.concatenate([params["fc2_w_t"], params["fc3_w_t"]], axis=1)  # (H, 7)
    b_heads = jnp.concatenate([params["fc2_b"], params["fc3_b"]], axis=1)      # (1, 7)
    args += [w_heads, b_heads]

    flops = (2 * n * (c49 + 3) * 4 * hidden                 # layer-0 projection
             + (layers - 1) * 2 * n * hidden * 4 * hidden   # deeper projections
             + layers * n * 2 * hidden * 4 * hidden         # recurrent matmuls
             + 2 * n * hidden * 7)                          # heads
    trans = layers * n * 5 * hidden + n * 7
    nbytes = 4 * (sum(int(a.size) for a in args) + n * 7)
    cost = pl.CostEstimate(flops=int(flops), transcendentals=int(trans),
                           bytes_accessed=int(nbytes))

    kernel = functools.partial(_fused_lstm_heads_kernel,
                               hidden=hidden, layers=layers, seq_len=n)
    return pl.pallas_call(
        kernel,
        out_shape=(jax.ShapeDtypeStruct((n, 6), jnp.float32),
                   jax.ShapeDtypeStruct((n, 1), jnp.float32)),
        scratch_shapes=[pltpu.VMEM((n, hidden), jnp.float32)],
        cost_estimate=cost,
    )(*args)


# ----------------------------------------------------------------------------
# Full forward (layout glue in plain JAX, hot paths in the two Pallas kernels)
# ----------------------------------------------------------------------------
def lstm_controller_forward(params, x_feat, x_coords, hidden_dim, layers):
    n, res_c, hh, ww = x_feat.shape                        # (N, 512, 7, 7)
    c = params["conv_w"].shape[0]                          # cnn_channels
    sp = hh * ww

    # --- 1x1 conv + sigmoid, lane-dense: channels on sublanes, N*49 on lanes ---
    xt = jnp.transpose(x_feat.reshape(n, res_c, sp), (1, 0, 2)).reshape(res_c, n * sp)
    yt = conv1x1_sigmoid(xt, params["conv_w"], params["conv_b"])   # (C, N*49)

    # --- PyTorch NCHW flatten: (C, N, 49) -> (N, C, 49) -> (N, C*49), tiny ---
    y_lstm = jnp.transpose(yt.reshape(c, n, sp), (1, 0, 2)).reshape(n, c * sp)

    # --- fused LSTM stack (zero initial state, as after init_hidden) + heads ---
    return fused_lstm_heads(y_lstm, x_coords, params, hidden_dim, layers)


# ----------------------------------------------------------------------------
# Pure-JAX reference (sanity check)
# ----------------------------------------------------------------------------
def reference_forward(params, x_feat, x_coords, hidden_dim, layers):
    n, res_c, hh, ww = x_feat.shape
    c = params["conv_w"].shape[0]
    y = jax.nn.sigmoid(jnp.einsum("nkhw,ck->nchw", x_feat, params["conv_w"])
                       + params["conv_b"].reshape(1, c, 1, 1))
    seq = jnp.concatenate([y.reshape(n, c * hh * ww), x_coords], axis=1)
    for l in range(layers):
        h = jnp.zeros((1, hidden_dim), jnp.float32)
        cst = jnp.zeros((1, hidden_dim), jnp.float32)
        outs = []
        for t in range(n):
            g = (seq[t:t + 1] @ params["lstm_wih_t"][l]
                 + h @ params["lstm_whh_t"][l] + params["lstm_b"][l])
            i_g = jax.nn.sigmoid(g[:, 0 * hidden_dim:1 * hidden_dim])
            f_g = jax.nn.sigmoid(g[:, 1 * hidden_dim:2 * hidden_dim])
            g_g = jnp.tanh(g[:, 2 * hidden_dim:3 * hidden_dim])
            o_g = jax.nn.sigmoid(g[:, 3 * hidden_dim:4 * hidden_dim])
            cst = f_g * cst + i_g * g_g
            h = o_g * jnp.tanh(cst)
            outs.append(h)
        seq = jnp.concatenate(outs, axis=0)
    out_vel = jnp.tanh(seq @ params["fc2_w_t"] + params["fc2_b"])
    out_claw = jax.nn.sigmoid(seq @ params["fc3_w_t"] + params["fc3_b"])
    return out_vel, out_claw


# ----------------------------------------------------------------------------
# Deterministic parameter init (shapes from LSTMController.__init__)
# NOTE for real checkpoints: conv_w = Conv2d.weight.squeeze() (C, 512);
# lstm_wih_t/whh_t are PyTorch LSTM weights TRANSPOSED; lstm_b = b_ih + b_hh.
# ----------------------------------------------------------------------------
def init_params(key, hidden_dim, cnn_channels, layers, resnet_out=512, spatial=7):
    cnn_out = cnn_channels * spatial * spatial
    lstm_in0 = cnn_out + 3
    ks = jax.random.split(key, 8 + 4 * layers)
    s = 0.05
    p = {
        "conv_w": s * jax.random.normal(ks[0], (cnn_channels, resnet_out), jnp.float32),
        "conv_b": s * jax.random.normal(ks[1], (cnn_channels, 1), jnp.float32),
        "fc2_w_t": s * jax.random.normal(ks[2], (hidden_dim, 6), jnp.float32),
        "fc2_b": s * jax.random.normal(ks[3], (1, 6), jnp.float32),
        "fc3_w_t": s * jax.random.normal(ks[4], (hidden_dim, 1), jnp.float32),
        "fc3_b": s * jax.random.normal(ks[5], (1, 1), jnp.float32),
        "lstm_wih_t": [],
        "lstm_whh_t": [],
        "lstm_b": [],
    }
    for l in range(layers):
        d_in = lstm_in0 if l == 0 else hidden_dim
        k0, k1, k2, k3 = ks[8 + 4 * l: 12 + 4 * l]
        p["lstm_wih_t"].append(
            s * jax.random.normal(k0, (d_in, 4 * hidden_dim), jnp.float32))
        p["lstm_whh_t"].append(
            s * jax.random.normal(k1, (hidden_dim, 4 * hidden_dim), jnp.float32))
        b_ih = s * jax.random.normal(k2, (1, 4 * hidden_dim), jnp.float32)
        b_hh = s * jax.random.normal(k3, (1, 4 * hidden_dim), jnp.float32)
        p["lstm_b"].append(b_ih + b_hh)
    return p


if __name__ == "__main__":
    # Small config: hidden_dim=32, cnn_channels=8, layers=2, avg_pool=False
    hidden_dim, cnn_channels, layers = 32, 8, 2
    N = 8  # sequence length (batch dim of X_img / X_coords in the PyTorch module)

    key = jax.random.PRNGKey(0)
    k_feat, k_coord, k_par = jax.random.split(key, 3)

    # Resnet18 (cutoff=-2) output features: (N, 512, 7, 7)
    x_feat = jax.random.normal(k_feat, (N, 512, 7, 7), jnp.float32)
    x_coords = jax.random.normal(k_coord, (N, 3), jnp.float32)
    params = init_params(k_par, hidden_dim, cnn_channels, layers)

    fwd = jax.jit(functools.partial(lstm_controller_forward,
                                    hidden_dim=hidden_dim, layers=layers))
    out_vel, out_claw = fwd(params, x_feat, x_coords)
    jax.block_until_ready((out_vel, out_claw))

    ref_vel, ref_claw = reference_forward(params, x_feat, x_coords,
                                          hidden_dim, layers)
    assert out_vel.shape == (N, 6) and out_claw.shape == (N, 1)
    assert jnp.allclose(out_vel, ref_vel, atol=2e-3, rtol=2e-3)
    assert jnp.allclose(out_claw, ref_claw, atol=2e-3, rtol=2e-3)

    print("KERNEL_OK")
</pallas_src>

<mosaic_0001>
module attributes {stable_mosaic.version = 11 : i64} {
  func.func @_conv1x1_sigmoid_kernel(%arg0: memref<512x392xf32, #tpu.memory_space<vmem>>, %arg1: memref<8x512xf32, #tpu.memory_space<vmem>>, %arg2: memref<8x1xf32, #tpu.memory_space<vmem>>, %arg3: memref<8x392xf32, #tpu.memory_space<vmem>>) attributes {dimension_semantics = [], scalar_prefetch = 0 : i64, scratch_operands = 0 : i64, tpu.core_type = #tpu.core_type<tc>} {
    %c0 = arith.constant 0 : index
    %c0_0 = arith.constant 0 : index
    %0 = vector.load %arg1[%c0, %c0_0] : memref<8x512xf32, #tpu.memory_space<vmem>>, vector<8x512xf32>
    %c0_1 = arith.constant 0 : index
    %c0_2 = arith.constant 0 : index
    %1 = vector.load %arg0[%c0_1, %c0_2] : memref<512x392xf32, #tpu.memory_space<vmem>>, vector<512x392xf32>
    %cst = arith.constant dense<0.000000e+00> : vector<8x392xf32>
    %2 = tpu.matmul %0, %1, %cst {dimension_numbers = #tpu.dot_dimension_numbers<[1], [0], [0], [1], [0, 0, 1, 1], [], []>} : vector<8x512xf32>, vector<512x392xf32>, vector<8x392xf32> -> vector<8x392xf32>
    %c0_3 = arith.constant 0 : index
    %c0_4 = arith.constant 0 : index
    %3 = vector.load %arg2[%c0_3, %c0_4] : memref<8x1xf32, #tpu.memory_space<vmem>>, vector<8x1xf32>
    %4 = vector.broadcast %3 : vector<8x1xf32> to vector<8x392xf32>
    %5 = arith.addf %2, %4 : vector<8x392xf32>
    %6 = arith.negf %5 : vector<8x392xf32>
    %7 = math.exp %6 : vector<8x392xf32>
    %cst_5 = arith.constant 1.000000e+00 : f32
    %8 = vector.broadcast %cst_5 : f32 to vector<8x392xf32>
    %9 = arith.addf %8, %7 : vector<8x392xf32>
    %10 = arith.divf %8, %9 : vector<8x392xf32>
    %c0_6 = arith.constant 0 : index
    %c0_7 = arith.constant 0 : index
    %11 = vector.load %arg3[%c0_6, %c0_7] : memref<8x392xf32, #tpu.memory_space<vmem>>, vector<8x392xf32>
    tpu.vector_store %arg3[%c0_6, %c0_7], %10 {strides = array<i32>} : memref<8x392xf32, #tpu.memory_space<vmem>>, vector<8x392xf32>,
    return
  }
}

module attributes {stable_mosaic.version = 11 : i64} {
  func.func @_fused_lstm_heads_kernel(%arg0: memref<8x392xf32, #tpu.memory_space<vmem>>, %arg1: memref<8x3xf32, #tpu.memory_space<vmem>>, %arg2: memref<392x128xf32, #tpu.memory_space<vmem>>, %arg3: memref<3x128xf32, #tpu.memory_space<vmem>>, %arg4: memref<32x128xf32, #tpu.memory_space<vmem>>, %arg5: memref<1x128xf32, #tpu.memory_space<vmem>>, %arg6: memref<32x128xf32, #tpu.memory_space<vmem>>, %arg7: memref<32x128xf32, #tpu.memory_space<vmem>>, %arg8: memref<1x128xf32, #tpu.memory_space<vmem>>, %arg9: memref<32x7xf32, #tpu.memory_space<vmem>>, %arg10: memref<1x7xf32, #tpu.memory_space<vmem>>, %arg11: memref<8x6xf32, #tpu.memory_space<vmem>>, %arg12: memref<8x1xf32, #tpu.memory_space<vmem>>, %arg13: memref<8x32xf32, #tpu.memory_space<vmem>>) attributes {dimension_semantics = [], scalar_prefetch = 0 : i64, scratch_operands = 1 : i64, tpu.core_type = #tpu.core_type<tc>} {
    %c0 = arith.constant 0 : index
    %c0_0 = arith.constant 0 : index
    %0 = vector.load %arg0[%c0, %c0_0] : memref<8x392xf32, #tpu.memory_space<vmem>>, vector<8x392xf32>
    %c0_1 = arith.constant 0 : index
    %c0_2 = arith.constant 0 : index
    %1 = vector.load %arg2[%c0_1, %c0_2] : memref<392x128xf32, #tpu.memory_space<vmem>>, vector<392x128xf32>
    %cst = arith.constant dense<0.000000e+00> : vector<8x128xf32>
    %2 = tpu.matmul %0, %1, %cst {dimension_numbers = #tpu.dot_dimension_numbers<[1], [0], [0], [1], [0, 0, 1, 1], [], []>} : vector<8x392xf32>, vector<392x128xf32>, vector<8x128xf32> -> vector<8x128xf32>
    %c0_3 = arith.constant 0 : index
    %c0_4 = arith.constant 0 : index
    %3 = vector.load %arg5[%c0_3, %c0_4] : memref<1x128xf32, #tpu.memory_space<vmem>>, vector<1x128xf32>
    %4 = vector.broadcast %3 : vector<1x128xf32> to vector<8x128xf32>
    %5 = arith.addf %2, %4 : vector<8x128xf32>
    %c0_5 = arith.constant 0 : index
    %c0_6 = arith.constant 0 : index
    %6 = vector.load %arg1[%c0_5, %c0_6] : memref<8x3xf32, #tpu.memory_space<vmem>>, vector<8x3xf32>
    %c0_7 = arith.constant 0 : index
    %c0_8 = arith.constant 0 : index
    %7 = vector.load %arg3[%c0_7, %c0_8] : memref<3x128xf32, #tpu.memory_space<vmem>>, vector<3x128xf32>
    %8 = vector.extract_strided_slice %6 {offsets = [0, 0], sizes = [8, 1], strides = [1, 1]} : vector<8x3xf32> to vector<8x1xf32>
    %9 = vector.extract_strided_slice %7 {offsets = [0, 0], sizes = [1, 128], strides = [1, 1]} : vector<3x128xf32> to vector<1x128xf32>
    %10 = vector.broadcast %8 : vector<8x1xf32> to vector<8x128xf32>
    %11 = vector.broadcast %9 : vector<1x128xf32> to vector<8x128xf32>
    %12 = arith.mulf %10, %11 : vector<8x128xf32>
    %13 = arith.addf %5, %12 : vector<8x128xf32>
    %14 = vector.extract_strided_slice %6 {offsets = [0, 1], sizes = [8, 1], strides = [1, 1]} : vector<8x3xf32> to vector<8x1xf32>
    %15 = vector.extract_strided_slice %7 {offsets = [1, 0], sizes = [1, 128], strides = [1, 1]} : vector<3x128xf32> to vector<1x128xf32>
    %16 = vector.broadcast %14 : vector<8x1xf32> to vector<8x128xf32>
    %17 = vector.broadcast %15 : vector<1x128xf32> to vector<8x128xf32>
    %18 = arith.mulf %16, %17 : vector<8x128xf32>
    %19 = arith.addf %13, %18 : vector<8x128xf32>
    %20 = vector.extract_strided_slice %6 {offsets = [0, 2], sizes = [8, 1], strides = [1, 1]} : vector<8x3xf32> to vector<8x1xf32>
    %21 = vector.extract_strided_slice %7 {offsets = [2, 0], sizes = [1, 128], strides = [1, 1]} : vector<3x128xf32> to vector<1x128xf32>
    %22 = vector.broadcast %20 : vector<8x1xf32> to vector<8x128xf32>
    %23 = vector.broadcast %21 : vector<1x128xf32> to vector<8x128xf32>
    %24 = arith.mulf %22, %23 : vector<8x128xf32>
    %25 = arith.addf %19, %24 : vector<8x128xf32>
    %c0_9 = arith.constant 0 : index
    %c0_10 = arith.constant 0 : index
    %26 = vector.load %arg4[%c0_9, %c0_10] : memref<32x128xf32, #tpu.memory_space<vmem>>, vector<32x128xf32>
    %cst_11 = arith.constant 0.000000e+00 : f32
    %27 = vector.broadcast %cst_11 : f32 to vector<1x32xf32>
    %cst_12 = arith.constant 0.000000e+00 : f32
    %28 = vector.broadcast %cst_12 : f32 to vector<1x32xf32>
    %29 = vector.extract_strided_slice %25 {offsets = [0, 0], sizes = [1, 128], strides = [1, 1]} : vector<8x128xf32> to vector<1x128xf32>
    %cst_13 = arith.constant dense<0.000000e+00> : vector<1x128xf32>
    %30 = tpu.matmul %27, %26, %cst_13 {dimension_numbers = #tpu.dot_dimension_numbers<[1], [0], [0], [1], [0, 0, 1, 1], [], []>} : vector<1x32xf32>, vector<32x128xf32>, vector<1x128xf32> -> vector<1x128xf32>
    %31 = arith.addf %29, %30 : vector<1x128xf32>
    %32 = vector.extract_strided_slice %31 {offsets = [0, 0], sizes = [1, 32], strides = [1, 1]} : vector<1x128xf32> to vector<1x32xf32>
    %33 = arith.negf %32 : vector<1x32xf32>
    %34 = math.exp %33 : vector<1x32xf32>
    %cst_14 = arith.constant 1.000000e+00 : f32
    %35 = vector.broadcast %cst_14 : f32 to vector<1x32xf32>
    %36 = arith.addf %35, %34 : vector<1x32xf32>
    %37 = arith.divf %35, %36 : vector<1x32xf32>
    %38 = vector.extract_strided_slice %31 {offsets = [0, 32], sizes = [1, 32], strides = [1, 1]} : vector<1x128xf32> to vector<1x32xf32>
    %39 = arith.negf %38 : vector<1x32xf32>
    %40 = math.exp %39 : vector<1x32xf32>
    %cst_15 = arith.constant 1.000000e+00 : f32
    %41 = vector.broadcast %cst_15 : f32 to vector<1x32xf32>
    %42 = arith.addf %41, %40 : vector<1x32xf32>
    %43 = arith.divf %41, %42 : vector<1x32xf32>
    %44 = vector.extract_strided_slice %31 {offsets = [0, 64], sizes = [1, 32], strides = [1, 1]} : vector<1x128xf32> to vector<1x32xf32>
    %45 = math.tanh %44 : vector<1x32xf32>
    %46 = vector.extract_strided_slice %31 {offsets = [0, 96], sizes = [1, 32], strides = [1, 1]} : vector<1x128xf32> to vector<1x32xf32>
    %47 = arith.negf %46 : vector<1x32xf32>
    %48 = math.exp %47 : vector<1x32xf32>
    %cst_16 = arith.constant 1.000000e+00 : f32
    %49 = vector.broadcast %cst_16 : f32 to vector<1x32xf32>
    %50 = arith.addf %49, %48 : vector<1x32xf32>
    %51 = arith.divf %49, %50 : vector<1x32xf32>
    %52 = arith.mulf %43, %28 : vector<1x32xf32>
    %53 = arith.mulf %37, %45 : vector<1x32xf32>
    %54 = arith.addf %52, %53 : vector<1x32xf32>
    %55 = math.tanh %54 : vector<1x32xf32>
    %56 = arith.mulf %51, %55 : vector<1x32xf32>
    %c0_17 = arith.constant 0 : index
    %c0_18 = arith.constant 0 : index
    %57 = vector.load %arg13[%c0_17, %c0_18] : memref<8x32xf32, #tpu.memory_space<vmem>>, vector<1x32xf32>
    tpu.vector_store %arg13[%c0_17, %c0_18], %56 {strides = array<i32>} : memref<8x32xf32, #tpu.memory_space<vmem>>, vector<1x32xf32>,
    %58 = vector.extract_strided_slice %25 {offsets = [1, 0], sizes = [1, 128], strides = [1, 1]} : vector<8x128xf32> to vector<1x128xf32>
    %cst_19 = arith.constant dense<0.000000e+00> : vector<1x128xf32>
    %59 = tpu.matmul %56, %26, %cst_19 {dimension_numbers = #tpu.dot_dimension_numbers<[1], [0], [0], [1], [0, 0, 1, 1], [], []>} : vector<1x32xf32>, vector<32x128xf32>, vector<1x128xf32> -> vector<1x128xf32>
    %60 = arith.addf %58, %59 : vector<1x128xf32>
    %61 = vector.extract_strided_slice %60 {offsets = [0, 0], sizes = [1, 32], strides = [1, 1]} : vector<1x128xf32> to vector<1x32xf32>
    %62 = arith.negf %61 : vector<1x32xf32>
    %63 = math.exp %62 : vector<1x32xf32>
    %cst_20 = arith.constant 1.000000e+00 : f32
    %64 = vector.broadcast %cst_20 : f32 to vector<1x32xf32>
    %65 = arith.addf %64, %63 : vector<1x32xf32>
    %66 = arith.divf %64, %65 : vector<1x32xf32>
    %67 = vector.extract_strided_slice %60 {offsets = [0, 32], sizes = [1, 32], strides = [1, 1]} : vector<1x128xf32> to vector<1x32xf32>
    %68 = arith.negf %67 : vector<1x32xf32>
    %69 = math.exp %68 : vector<1x32xf32>
    %cst_21 = arith.constant 1.000000e+00 : f32
    %70 = vector.broadcast %cst_21 : f32 to vector<1x32xf32>
    %71 = arith.addf %70, %69 : vector<1x32xf32>
    %72 = arith.divf %70, %71 : vector<1x32xf32>
    %73 = vector.extract_strided_slice %60 {offsets = [0, 64], sizes = [1, 32], strides = [1, 1]} : vector<1x128xf32> to vector<1x32xf32>
    %74 = math.tanh %73 : vector<1x32xf32>
    %75 = vector.extract_strided_slice %60 {offsets = [0, 96], sizes = [1, 32], strides = [1, 1]} : vector<1x128xf32> to vector<1x32xf32>
    %76 = arith.negf %75 : vector<1x32xf32>
    %77 = math.exp %76 : vector<1x32xf32>
    %cst_22 = arith.constant 1.000000e+00 : f32
    %78 = vector.broadcast %cst_22 : f32 to vector<1x32xf32>
    %79 = arith.addf %78, %77 : vector<1x32xf32>
    %80 = arith.divf %78, %79 : vector<1x32xf32>
    %81 = arith.mulf %72, %54 : vector<1x32xf32>
    %82 = arith.mulf %66, %74 : vector<1x32xf32>
    %83 = arith.addf %81, %82 : vector<1x32xf32>
    %84 = math.tanh %83 : vector<1x32xf32>
    %85 = arith.mulf %80, %84 : vector<1x32xf32>
    %c1 = arith.constant 1 : index
    %c0_23 = arith.constant 0 : index
    %86 = vector.load %arg13[%c1, %c0_23] : memref<8x32xf32, #tpu.memory_space<vmem>>, vector<1x32xf32>
    tpu.vector_store %arg13[%c1, %c0_23], %85 {strides = array<i32>} : memref<8x32xf32, #tpu.memory_space<vmem>>, vector<1x32xf32>,
    %87 = vector.extract_strided_slice %25 {offsets = [2, 0], sizes = [1, 128], strides = [1, 1]} : vector<8x128xf32> to vector<1x128xf32>
    %cst_24 = arith.constant dense<0.000000e+00> : vector<1x128xf32>
    %88 = tpu.matmul %85, %26, %cst_24 {dimension_numbers = #tpu.dot_dimension_numbers<[1], [0], [0], [1], [0, 0, 1, 1], [], []>} : vector<1x32xf32>, vector<32x128xf32>, vector<1x128xf32> -> vector<1x128xf32>
    %89 = arith.addf %87, %88 : vector<1x128xf32>
    %90 = vector.extract_strided_slice %89 {offsets = [0, 0], sizes = [1, 32], strides = [1, 1]} : vector<1x128xf32> to vector<1x32xf32>
    %91 = arith.negf %90 : vector<1x32xf32>
    %92 = math.exp %91 : vector<1x32xf32>
    %cst_25 = arith.constant 1.000000e+00 : f32
    %93 = vector.broadcast %cst_25 : f32 to vector<1x32xf32>
    %94 = arith.addf %93, %92 : vector<1x32xf32>
    %95 = arith.divf %93, %94 : vector<1x32xf32>
    %96 = vector.extract_strided_slice %89 {offsets = [0, 32], sizes = [1, 32], strides = [1, 1]} : vector<1x128xf32> to vector<1x32xf32>
    %97 = arith.negf %96 : vector<1x32xf32>
    %98 = math.exp %97 : vector<1x32xf32>
    %cst_26 = arith.constant 1.000000e+00 : f32
    %99 = vector.broadcast %cst_26 : f32 to vector<1x32xf32>
    %100 = arith.addf %99, %98 : vector<1x32xf32>
    %101 = arith.divf %99, %100 : vector<1x32xf32>
    %102 = vector.extract_strided_slice %89 {offsets = [0, 64], sizes = [1, 32], strides = [1, 1]} : vector<1x128xf32> to vector<1x32xf32>
    %103 = math.tanh %102 : vector<1x32xf32>
    %104 = vector.extract_strided_slice %89 {offsets = [0, 96], sizes = [1, 32], strides = [1, 1]} : vector<1x128xf32> to vector<1x32xf32>
    %105 = arith.negf %104 : vector<1x32xf32>
    %106 = math.exp %105 : vector<1x32xf32>
    %cst_27 = arith.constant 1.000000e+00 : f32
    %107 = vector.broadcast %cst_27 : f32 to vector<1x32xf32>
    %108 = arith.addf %107, %106 : vector<1x32xf32>
    %109 = arith.divf %107, %108 : vector<1x32xf32>
    %110 = arith.mulf %101, %83 : vector<1x32xf32>
    %111 = arith.mulf %95, %103 : vector<1x32xf32>
    %112 = arith.addf %110, %111 : vector<1x32xf32>
    %113 = math.tanh %112 : vector<1x32xf32>
    %114 = arith.mulf %109, %113 : vector<1x32xf32>
    %c2 = arith.constant 2 : index
    %c0_28 = arith.constant 0 : index
    %115 = vector.load %arg13[%c2, %c0_28] : memref<8x32xf32, #tpu.memory_space<vmem>>, vector<1x32xf32>
    tpu.vector_store %arg13[%c2, %c0_28], %114 {strides = array<i32>} : memref<8x32xf32, #tpu.memory_space<vmem>>, vector<1x32xf32>,
    %116 = vector.extract_strided_slice %25 {offsets = [3, 0], sizes = [1, 128], strides = [1, 1]} : vector<8x128xf32> to vector<1x128xf32>
    %cst_29 = arith.constant dense<0.000000e+00> : vector<1x128xf32>
    %117 = tpu.matmul %114, %26, %cst_29 {dimension_numbers = #tpu.dot_dimension_numbers<[1], [0], [0], [1], [0, 0, 1, 1], [], []>} : vector<1x32xf32>, vector<32x128xf32>, vector<1x128xf32> -> vector<1x128xf32>
    %118 = arith.addf %116, %117 : vector<1x128xf32>
    %119 = vector.extract_strided_slice %118 {offsets = [0, 0], sizes = [1, 32], strides = [1, 1]} : vector<1x128xf32> to vector<1x32xf32>
    %120 = arith.negf %119 : vector<1x32xf32>
    %121 = math.exp %120 : vector<1x32xf32>
    %cst_30 = arith.constant 1.000000e+00 : f32
    %122 = vector.broadcast %cst_30 : f32 to vector<1x32xf32>
    %123 = arith.addf %122, %121 : vector<1x32xf32>
    %124 = arith.divf %122, %123 : vector<1x32xf32>
    %125 = vector.extract_strided_slice %118 {offsets = [0, 32], sizes = [1, 32], strides = [1, 1]} : vector<1x128xf32> to vector<1x32xf32>
    %126 = arith.negf %125 : vector<1x32xf32>
    %127 = math.exp %126 : vector<1x32xf32>
    %cst_31 = arith.constant 1.000000e+00 : f32
    %128 = vector.broadcast %cst_31 : f32 to vector<1x32xf32>
    %129 = arith.addf %128, %127 : vector<1x32xf32>
    %130 = arith.divf %128, %129 : vector<1x32xf32>
    %131 = vector.extract_strided_slice %118 {offsets = [0, 64], sizes = [1, 32], strides = [1, 1]} : vector<1x128xf32> to vector<1x32xf32>
    %132 = math.tanh %131 : vector<1x32xf32>
    %133 = vector.extract_strided_slice %118 {offsets = [0, 96], sizes = [1, 32], strides = [1, 1]} : vector<1x128xf32> to vector<1x32xf32>
    %134 = arith.negf %133 : vector<1x32xf32>
    %135 = math.exp %134 : vector<1x32xf32>
    %cst_32 = arith.constant 1.000000e+00 : f32
    %136 = vector.broadcast %cst_32 : f32 to vector<1x32xf32>
    %137 = arith.addf %136, %135 : vector<1x32xf32>
    %138 = arith.divf %136, %137 : vector<1x32xf32>
    %139 = arith.mulf %130, %112 : vector<1x32xf32>
    %140 = arith.mulf %124, %132 : vector<1x32xf32>
    %141 = arith.addf %139, %140 : vector<1x32xf32>
    %142 = math.tanh %141 : vector<1x32xf32>
    %143 = arith.mulf %138, %142 : vector<1x32xf32>
    %c3 = arith.constant 3 : index
    %c0_33 = arith.constant 0 : index
    %144 = vector.load %arg13[%c3, %c0_33] : memref<8x32xf32, #tpu.memory_space<vmem>>, vector<1x32xf32>
    tpu.vector_store %arg13[%c3, %c0_33], %143 {strides = array<i32>} : memref<8x32xf32, #tpu.memory_space<vmem>>, vector<1x32xf32>,
    %145 = vector.extract_strided_slice %25 {offsets = [4, 0], sizes = [1, 128], strides = [1, 1]} : vector<8x128xf32> to vector<1x128xf32>
    %cst_34 = arith.constant dense<0.000000e+00> : vector<1x128xf32>
    %146 = tpu.matmul %143, %26, %cst_34 {dimension_numbers = #tpu.dot_dimension_numbers<[1], [0], [0], [1], [0, 0, 1, 1], [], []>} : vector<1x32xf32>, vector<32x128xf32>, vector<1x128xf32> -> vector<1x128xf32>
    %147 = arith.addf %145, %146 : vector<1x128xf32>
    %148 = vector.extract_strided_slice %147 {offsets = [0, 0], sizes = [1, 32], strides = [1, 1]} : vector<1x128xf32> to vector<1x32xf32>
    %149 = arith.negf %148 : vector<1x32xf32>
    %150 = math.exp %149 : vector<1x32xf32>
    %cst_35 = arith.constant 1.000000e+00 : f32
    %151 = vector.broadcast %cst_35 : f32 to vector<1x32xf32>
    %152 = arith.addf %151, %150 : vector<1x32xf32>
    %153 = arith.divf %151, %152 : vector<1x32xf32>
    %154 = vector.extract_strided_slice %147 {offsets = [0, 32], sizes = [1, 32], strides = [1, 1]} : vector<1x128xf32> to vector<1x32xf32>
    %155 = arith.negf %154 : vector<1x32xf32>
    %156 = math.exp %155 : vector<1x32xf32>
    %cst_36 = arith.constant 1.000000e+00 : f32
    %157 = vector.broadcast %cst_36 : f32 to vector<1x32xf32>
    %158 = arith.addf %157, %156 : vector<1x32xf32>
    %159 = arith.divf %157, %158 : vector<1x32xf32>
    %160 = vector.extract_strided_slice %147 {offsets = [0, 64], sizes = [1, 32], strides = [1, 1]} : vector<1x128xf32> to vector<1x32xf32>
    %161 = math.tanh %160 : vector<1x32xf32>
    %162 = vector.extract_strided_slice %147 {offsets = [0, 96], sizes = [1, 32], strides = [1, 1]} : vector<1x128xf32> to vector<1x32xf32>
    %163 = arith.negf %162 : vector<1x32xf32>
    %164 = math.exp %163 : vector<1x32xf32>
    %cst_37 = arith.constant 1.000000e+00 : f32
    %165 = vector.broadcast %cst_37 : f32 to vector<1x32xf32>
    %166 = arith.addf %165, %164 : vector<1x32xf32>
    %167 = arith.divf %165, %166 : vector<1x32xf32>
    %168 = arith.mulf %159, %141 : vector<1x32xf32>
    %169 = arith.mulf %153, %161 : vector<1x32xf32>
    %170 = arith.addf %168, %169 : vector<1x32xf32>
    %171 = math.tanh %170 : vector<1x32xf32>
    %172 = arith.mulf %167, %171 : vector<1x32xf32>
    %c4 = arith.constant 4 : index
    %c0_38 = arith.constant 0 : index
    %173 = vector.load %arg13[%c4, %c0_38] : memref<8x32xf32, #tpu.memory_space<vmem>>, vector<1x32xf32>
    tpu.vector_store %arg13[%c4, %c0_38], %172 {strides = array<i32>} : memref<8x32xf32, #tpu.memory_space<vmem>>, vector<1x32xf32>,
    %174 = vector.extract_strided_slice %25 {offsets = [5, 0], sizes = [1, 128], strides = [1, 1]} : vector<8x128xf32> to vector<1x128xf32>
    %cst_39 = arith.constant dense<0.000000e+00> : vector<1x128xf32>
    %175 = tpu.matmul %172, %26, %cst_39 {dimension_numbers = #tpu.dot_dimension_numbers<[1], [0], [0], [1], [0, 0, 1, 1], [], []>} : vector<1x32xf32>, vector<32x128xf32>, vector<1x128xf32> -> vector<1x128xf32>
    %176 = arith.addf %174, %175 : vector<1x128xf32>
    %177 = vector.extract_strided_slice %176 {offsets = [0, 0], sizes = [1, 32], strides = [1, 1]} : vector<1x128xf32> to vector<1x32xf32>
    %178 = arith.negf %177 : vector<1x32xf32>
    %179 = math.exp %178 : vector<1x32xf32>
    %cst_40 = arith.constant 1.000000e+00 : f32
    %180 = vector.broadcast %cst_40 : f32 to vector<1x32xf32>
    %181 = arith.addf %180, %179 : vector<1x32xf32>
    %182 = arith.divf %180, %181 : vector<1x32xf32>
    %183 = vector.extract_strided_slice %176 {offsets = [0, 32], sizes = [1, 32], strides = [1, 1]} : vector<1x128xf32> to vector<1x32xf32>
    %184 = arith.negf %183 : vector<1x32xf32>
    %185 = math.exp %184 : vector<1x32xf32>
    %cst_41 = arith.constant 1.000000e+00 : f32
    %186 = vector.broadcast %cst_41 : f32 to vector<1x32xf32>
    %187 = arith.addf %186, %185 : vector<1x32xf32>
    %188 = arith.divf %186, %187 : vector<1x32xf32>
    %189 = vector.extract_strided_slice %176 {offsets = [0, 64], sizes = [1, 32], strides = [1, 1]} : vector<1x128xf32> to vector<1x32xf32>
    %190 = math.tanh %189 : vector<1x32xf32>
    %191 = vector.extract_strided_slice %176 {offsets = [0, 96], sizes = [1, 32], strides = [1, 1]} : vector<1x128xf32> to vector<1x32xf32>
    %192 = arith.negf %191 : vector<1x32xf32>
    %193 = math.exp %192 : vector<1x32xf32>
    %cst_42 = arith.constant 1.000000e+00 : f32
    %194 = vector.broadcast %cst_42 : f32 to vector<1x32xf32>
    %195 = arith.addf %194, %193 : vector<1x32xf32>
    %196 = arith.divf %194, %195 : vector<1x32xf32>
    %197 = arith.mulf %188, %170 : vector<1x32xf32>
    %198 = arith.mulf %182, %190 : vector<1x32xf32>
    %199 = arith.addf %197, %198 : vector<1x32xf32>
    %200 = math.tanh %199 : vector<1x32xf32>
    %201 = arith.mulf %196, %200 : vector<1x32xf32>
    %c5 = arith.constant 5 : index
    %c0_43 = arith.constant 0 : index
    %202 = vector.load %arg13[%c5, %c0_43] : memref<8x32xf32, #tpu.memory_space<vmem>>, vector<1x32xf32>
    tpu.vector_store %arg13[%c5, %c0_43], %201 {strides = array<i32>} : memref<8x32xf32, #tpu.memory_space<vmem>>, vector<1x32xf32>,
    %203 = vector.extract_strided_slice %25 {offsets = [6, 0], sizes = [1, 128], strides = [1, 1]} : vector<8x128xf32> to vector<1x128xf32>
    %cst_44 = arith.constant dense<0.000000e+00> : vector<1x128xf32>
    %204 = tpu.matmul %201, %26, %cst_44 {dimension_numbers = #tpu.dot_dimension_numbers<[1], [0], [0], [1], [0, 0, 1, 1], [], []>} : vector<1x32xf32>, vector<32x128xf32>, vector<1x128xf32> -> vector<1x128xf32>
    %205 = arith.addf %203, %204 : vector<1x128xf32>
    %206 = vector.extract_strided_slice %205 {offsets = [0, 0], sizes = [1, 32], strides = [1, 1]} : vector<1x128xf32> to vector<1x32xf32>
    %207 = arith.negf %206 : vector<1x32xf32>
    %208 = math.exp %207 : vector<1x32xf32>
    %cst_45 = arith.constant 1.000000e+00 : f32
    %209 = vector.broadcast %cst_45 : f32 to vector<1x32xf32>
    %210 = arith.addf %209, %208 : vector<1x32xf32>
    %211 = arith.divf %209, %210 : vector<1x32xf32>
    %212 = vector.extract_strided_slice %205 {offsets = [0, 32], sizes = [1, 32], strides = [1, 1]} : vector<1x128xf32> to vector<1x32xf32>
    %213 = arith.negf %212 : vector<1x32xf32>
    %214 = math.exp %213 : vector<1x32xf32>
    %cst_46 = arith.constant 1.000000e+00 : f32
    %215 = vector.broadcast %cst_46 : f32 to vector<1x32xf32>
    %216 = arith.addf %215, %214 : vector<1x32xf32>
    %217 = arith.divf %215, %216 : vector<1x32xf32>
    %218 = vector.extract_strided_slice %205 {offsets = [0, 64], sizes = [1, 32], strides = [1, 1]} : vector<1x128xf32> to vector<1x32xf32>
    %219 = math.tanh %218 : vector<1x32xf32>
    %220 = vector.extract_strided_slice %205 {offsets = [0, 96], sizes = [1, 32], strides = [1, 1]} : vector<1x128xf32> to vector<1x32xf32>
    %221 = arith.negf %220 : vector<1x32xf32>
    %222 = math.exp %221 : vector<1x32xf32>
    %cst_47 = arith.constant 1.000000e+00 : f32
    %223 = vector.broadcast %cst_47 : f32 to vector<1x32xf32>
    %224 = arith.addf %223, %222 : vector<1x32xf32>
    %225 = arith.divf %223, %224 : vector<1x32xf32>
    %226 = arith.mulf %217, %199 : vector<1x32xf32>
    %227 = arith.mulf %211, %219 : vector<1x32xf32>
    %228 = arith.addf %226, %227 : vector<1x32xf32>
    %229 = math.tanh %228 : vector<1x32xf32>
    %230 = arith.mulf %225, %229 : vector<1x32xf32>
    %c6 = arith.constant 6 : index
    %c0_48 = arith.constant 0 : index
    %231 = vector.load %arg13[%c6, %c0_48] : memref<8x32xf32, #tpu.memory_space<vmem>>, vector<1x32xf32>
    tpu.vector_store %arg13[%c6, %c0_48], %230 {strides = array<i32>} : memref<8x32xf32, #tpu.memory_space<vmem>>, vector<1x32xf32>,
    %232 = vector.extract_strided_slice %25 {offsets = [7, 0], sizes = [1, 128], strides = [1, 1]} : vector<8x128xf32> to vector<1x128xf32>
    %cst_49 = arith.constant dense<0.000000e+00> : vector<1x128xf32>
    %233 = tpu.matmul %230, %26, %cst_49 {dimension_numbers = #tpu.dot_dimension_numbers<[1], [0], [0], [1], [0, 0, 1, 1], [], []>} : vector<1x32xf32>, vector<32x128xf32>, vector<1x128xf32> -> vector<1x128xf32>
    %234 = arith.addf %232, %233 : vector<1x128xf32>
    %235 = vector.extract_strided_slice %234 {offsets = [0, 0], sizes = [1, 32], strides = [1, 1]} : vector<1x128xf32> to vector<1x32xf32>
    %236 = arith.negf %235 : vector<1x32xf32>
    %237 = math.exp %236 : vector<1x32xf32>
    %cst_50 = arith.constant 1.000000e+00 : f32
    %238 = vector.broadcast %cst_50 : f32 to vector<1x32xf32>
    %239 = arith.addf %238, %237 : vector<1x32xf32>
    %240 = arith.divf %238, %239 : vector<1x32xf32>
    %241 = vector.extract_strided_slice %234 {offsets = [0, 32], sizes = [1, 32], strides = [1, 1]} : vector<1x128xf32> to vector<1x32xf32>
    %242 = arith.negf %241 : vector<1x32xf32>
    %243 = math.exp %242 : vector<1x32xf32>
    %cst_51 = arith.constant 1.000000e+00 : f32
    %244 = vector.broadcast %cst_51 : f32 to vector<1x32xf32>
    %245 = arith.addf %244, %243 : vector<1x32xf32>
    %246 = arith.divf %244, %245 : vector<1x32xf32>
    %247 = vector.extract_strided_slice %234 {offsets = [0, 64], sizes = [1, 32], strides = [1, 1]} : vector<1x128xf32> to vector<1x32xf32>
    %248 = math.tanh %247 : vector<1x32xf32>
    %249 = vector.extract_strided_slice %234 {offsets = [0, 96], sizes = [1, 32], strides = [1, 1]} : vector<1x128xf32> to vector<1x32xf32>
    %250 = arith.negf %249 : vector<1x32xf32>
    %251 = math.exp %250 : vector<1x32xf32>
    %cst_52 = arith.constant 1.000000e+00 : f32
    %252 = vector.broadcast %cst_52 : f32 to vector<1x32xf32>
    %253 = arith.addf %252, %251 : vector<1x32xf32>
    %254 = arith.divf %252, %253 : vector<1x32xf32>
    %255 = arith.mulf %246, %228 : vector<1x32xf32>
    %256 = arith.mulf %240, %248 : vector<1x32xf32>
    %257 = arith.addf %255, %256 : vector<1x32xf32>
    %258 = math.tanh %257 : vector<1x32xf32>
    %259 = arith.mulf %254, %258 : vector<1x32xf32>
    %c7 = arith.constant 7 : index
    %c0_53 = arith.constant 0 : index
    %260 = vector.load %arg13[%c7, %c0_53] : memref<8x32xf32, #tpu.memory_space<vmem>>, vector<1x32xf32>
    tpu.vector_store %arg13[%c7, %c0_53], %259 {strides = array<i32>} : memref<8x32xf32, #tpu.memory_space<vmem>>, vector<1x32xf32>,
    %c0_54 = arith.constant 0 : index
    %c0_55 = arith.constant 0 : index
    %261 = vector.load %arg13[%c0_54, %c0_55] : memref<8x32xf32, #tpu.memory_space<vmem>>, vector<8x32xf32>
    %c0_56 = arith.constant 0 : index
    %c0_57 = arith.constant 0 : index
    %262 = vector.load %arg6[%c0_56, %c0_57] : memref<32x128xf32, #tpu.memory_space<vmem>>, vector<32x128xf32>
    %cst_58 = arith.constant dense<0.000000e+00> : vector<8x128xf32>
    %263 = tpu.matmul %261, %262, %cst_58 {dimension_numbers = #tpu.dot_dimension_numbers<[1], [0], [0], [1], [0, 0, 1, 1], [], []>} : vector<8x32xf32>, vector<32x128xf32>, vector<8x128xf32> -> vector<8x128xf32>
    %c0_59 = arith.constant 0 : index
    %c0_60 = arith.constant 0 : index
    %264 = vector.load %arg8[%c0_59, %c0_60] : memref<1x128xf32, #tpu.memory_space<vmem>>, vector<1x128xf32>
    %265 = vector.broadcast %264 : vector<1x128xf32> to vector<8x128xf32>
    %266 = arith.addf %263, %265 : vector<8x128xf32>
    %c0_61 = arith.constant 0 : index
    %c0_62 = arith.constant 0 : index
    %267 = vector.load %arg7[%c0_61, %c0_62] : memref<32x128xf32, #tpu.memory_space<vmem>>, vector<32x128xf32>
    %cst_63 = arith.constant 0.000000e+00 : f32
    %268 = vector.broadcast %cst_63 : f32 to vector<1x32xf32>
    %cst_64 = arith.constant 0.000000e+00 : f32
    %269 = vector.broadcast %cst_64 : f32 to vector<1x32xf32>
    %270 = vector.extract_strided_slice %266 {offsets = [0, 0], sizes = [1, 128], strides = [1, 1]} : vector<8x128xf32> to vector<1x128xf32>
    %cst_65 = arith.constant dense<0.000000e+00> : vector<1x128xf32>
    %271 = tpu.matmul %268, %267, %cst_65 {dimension_numbers = #tpu.dot_dimension_numbers<[1], [0], [0], [1], [0, 0, 1, 1], [], []>} : vector<1x32xf32>, vector<32x128xf32>, vector<1x128xf32> -> vector<1x128xf32>
    %272 = arith.addf %270, %271 : vector<1x128xf32>
    %273 = vector.extract_strided_slice %272 {offsets = [0, 0], sizes = [1, 32], strides = [1, 1]} : vector<1x128xf32> to vector<1x32xf32>
    %274 = arith.negf %273 : vector<1x32xf32>
    %275 = math.exp %274 : vector<1x32xf32>
    %cst_66 = arith.constant 1.000000e+00 : f32
    %276 = vector.broadcast %cst_66 : f32 to vector<1x32xf32>
    %277 = arith.addf %276, %275 : vector<1x32xf32>
    %278 = arith.divf %276, %277 : vector<1x32xf32>
    %279 = vector.extract_strided_slice %272 {offsets = [0, 32], sizes = [1, 32], strides = [1, 1]} : vector<1x128xf32> to vector<1x32xf32>
    %280 = arith.negf %279 : vector<1x32xf32>
    %281 = math.exp %280 : vector<1x32xf32>
    %cst_67 = arith.constant 1.000000e+00 : f32
    %282 = vector.broadcast %cst_67 : f32 to vector<1x32xf32>
    %283 = arith.addf %282, %281 : vector<1x32xf32>
    %284 = arith.divf %282, %283 : vector<1x32xf32>
    %285 = vector.extract_strided_slice %272 {offsets = [0, 64], sizes = [1, 32], strides = [1, 1]} : vector<1x128xf32> to vector<1x32xf32>
    %286 = math.tanh %285 : vector<1x32xf32>
    %287 = vector.extract_strided_slice %272 {offsets = [0, 96], sizes = [1, 32], strides = [1, 1]} : vector<1x128xf32> to vector<1x32xf32>
    %288 = arith.negf %287 : vector<1x32xf32>
    %289 = math.exp %288 : vector<1x32xf32>
    %cst_68 = arith.constant 1.000000e+00 : f32
    %290 = vector.broadcast %cst_68 : f32 to vector<1x32xf32>
    %291 = arith.addf %290, %289 : vector<1x32xf32>
    %292 = arith.divf %290, %291 : vector<1x32xf32>
    %293 = arith.mulf %284, %269 : vector<1x32xf32>
    %294 = arith.mulf %278, %286 : vector<1x32xf32>
    %295 = arith.addf %293, %294 : vector<1x32xf32>
    %296 = math.tanh %295 : vector<1x32xf32>
    %297 = arith.mulf %292, %296 : vector<1x32xf32>
    %c0_69 = arith.constant 0 : index
    %c0_70 = arith.constant 0 : index
    %298 = vector.load %arg13[%c0_69, %c0_70] : memref<8x32xf32, #tpu.memory_space<vmem>>, vector<1x32xf32>
    tpu.vector_store %arg13[%c0_69, %c0_70], %297 {strides = array<i32>} : memref<8x32xf32, #tpu.memory_space<vmem>>, vector<1x32xf32>,
    %299 = vector.extract_strided_slice %266 {offsets = [1, 0], sizes = [1, 128], strides = [1, 1]} : vector<8x128xf32> to vector<1x128xf32>
    %cst_71 = arith.constant dense<0.000000e+00> : vector<1x128xf32>
    %300 = tpu.matmul %297, %267, %cst_71 {dimension_numbers = #tpu.dot_dimension_numbers<[1], [0], [0], [1], [0, 0, 1, 1], [], []>} : vector<1x32xf32>, vector<32x128xf32>, vector<1x128xf32> -> vector<1x128xf32>
    %301 = arith.addf %299, %300 : vector<1x128xf32>
    %302 = vector.extract_strided_slice %301 {offsets = [0, 0], sizes = [1, 32], strides = [1, 1]} : vector<1x128xf32> to vector<1x32xf32>
    %303 = arith.negf %302 : vector<1x32xf32>
    %304 = math.exp %303 : vector<1x32xf32>
    %cst_72 = arith.constant 1.000000e+00 : f32
    %305 = vector.broadcast %cst_72 : f32 to vector<1x32xf32>
    %306 = arith.addf %305, %304 : vector<1x32xf32>
    %307 = arith.divf %305, %306 : vector<1x32xf32>
    %308 = vector.extract_strided_slice %301 {offsets = [0, 32], sizes = [1, 32], strides = [1, 1]} : vector<1x128xf32> to vector<1x32xf32>
    %309 = arith.negf %308 : vector<1x32xf32>
    %310 = math.exp %309 : vector<1x32xf32>
    %cst_73 = arith.constant 1.000000e+00 : f32
    %311 = vector.broadcast %cst_73 : f32 to vector<1x32xf32>
    %312 = arith.addf %311, %310 : vector<1x32xf32>
    %313 = arith.divf %311, %312 : vector<1x32xf32>
    %314 = vector.extract_strided_slice %301 {offsets = [0, 64], sizes = [1, 32], strides = [1, 1]} : vector<1x128xf32> to vector<1x32xf32>
    %315 = math.tanh %314 : vector<1x32xf32>
    %316 = vector.extract_strided_slice %301 {offsets = [0, 96], sizes = [1, 32], strides = [1, 1]} : vector<1x128xf32> to vector<1x32xf32>
    %317 = arith.negf %316 : vector<1x32xf32>
    %318 = math.exp %317 : vector<1x32xf32>
    %cst_74 = arith.constant 1.000000e+00 : f32
    %319 = vector.broadcast %cst_74 : f32 to vector<1x32xf32>
    %320 = arith.addf %319, %318 : vector<1x32xf32>
    %321 = arith.divf %319, %320 : vector<1x32xf32>
    %322 = arith.mulf %313, %295 : vector<1x32xf32>
    %323 = arith.mulf %307, %315 : vector<1x32xf32>
    %324 = arith.addf %322, %323 : vector<1x32xf32>
    %325 = math.tanh %324 : vector<1x32xf32>
    %326 = arith.mulf %321, %325 : vector<1x32xf32>
    %c1_75 = arith.constant 1 : index
    %c0_76 = arith.constant 0 : index
    %327 = vector.load %arg13[%c1_75, %c0_76] : memref<8x32xf32, #tpu.memory_space<vmem>>, vector<1x32xf32>
    tpu.vector_store %arg13[%c1_75, %c0_76], %326 {strides = array<i32>} : memref<8x32xf32, #tpu.memory_space<vmem>>, vector<1x32xf32>,
    %328 = vector.extract_strided_slice %266 {offsets = [2, 0], sizes = [1, 128], strides = [1, 1]} : vector<8x128xf32> to vector<1x128xf32>
    %cst_77 = arith.constant dense<0.000000e+00> : vector<1x128xf32>
    %329 = tpu.matmul %326, %267, %cst_77 {dimension_numbers = #tpu.dot_dimension_numbers<[1], [0], [0], [1], [0, 0, 1, 1], [], []>} : vector<1x32xf32>, vector<32x128xf32>, vector<1x128xf32> -> vector<1x128xf32>
    %330 = arith.addf %328, %329 : vector<1x128xf32>
    %331 = vector.extract_strided_slice %330 {offsets = [0, 0], sizes = [1, 32], strides = [1, 1]} : vector<1x128xf32> to vector<1x32xf32>
    %332 = arith.negf %331 : vector<1x32xf32>
    %333 = math.exp %332 : vector<1x32xf32>
    %cst_78 = arith.constant 1.000000e+00 : f32
    %334 = vector.broadcast %cst_78 : f32 to vector<1x32xf32>
    %335 = arith.addf %334, %333 : vector<1x32xf32>
    %336 = arith.divf %334, %335 : vector<1x32xf32>
    %337 = vector.extract_strided_slice %330 {offsets = [0, 32], sizes = [1, 32], strides = [1, 1]} : vector<1x128xf32> to vector<1x32xf32>
    %338 = arith.negf %337 : vector<1x32xf32>
    %339 = math.exp %338 : vector<1x32xf32>
    %cst_79 = arith.constant 1.000000e+00 : f32
    %340 = vector.broadcast %cst_79 : f32 to vector<1x32xf32>
    %341 = arith.addf %340, %339 : vector<1x32xf32>
    %342 = arith.divf %340, %341 : vector<1x32xf32>
    %343 = vector.extract_strided_slice %330 {offsets = [0, 64], sizes = [1, 32], strides = [1, 1]} : vector<1x128xf32> to vector<1x32xf32>
    %344 = math.tanh %343 : vector<1x32xf32>
    %345 = vector.extract_strided_slice %330 {offsets = [0, 96], sizes = [1, 32], strides = [1, 1]} : vector<1x128xf32> to vector<1x32xf32>
    %346 = arith.negf %345 : vector<1x32xf32>
    %347 = math.exp %346 : vector<1x32xf32>
    %cst_80 = arith.constant 1.000000e+00 : f32
    %348 = vector.broadcast %cst_80 : f32 to vector<1x32xf32>
    %349 = arith.addf %348, %347 : vector<1x32xf32>
    %350 = arith.divf %348, %349 : vector<1x32xf32>
    %351 = arith.mulf %342, %324 : vector<1x32xf32>
    %352 = arith.mulf %336, %344 : vector<1x32xf32>
    %353 = arith.addf %351, %352 : vector<1x32xf32>
    %354 = math.tanh %353 : vector<1x32xf32>
    %355 = arith.mulf %350, %354 : vector<1x32xf32>
    %c2_81 = arith.constant 2 : index
    %c0_82 = arith.constant 0 : index
    %356 = vector.load %arg13[%c2_81, %c0_82] : memref<8x32xf32, #tpu.memory_space<vmem>>, vector<1x32xf32>
    tpu.vector_store %arg13[%c2_81, %c0_82], %355 {strides = array<i32>} : memref<8x32xf32, #tpu.memory_space<vmem>>, vector<1x32xf32>,
    %357 = vector.extract_strided_slice %266 {offsets = [3, 0], sizes = [1, 128], strides = [1, 1]} : vector<8x128xf32> to vector<1x128xf32>
    %cst_83 = arith.constant dense<0.000000e+00> : vector<1x128xf32>
    %358 = tpu.matmul %355, %267, %cst_83 {dimension_numbers = #tpu.dot_dimension_numbers<[1], [0], [0], [1], [0, 0, 1, 1], [], []>} : vector<1x32xf32>, vector<32x128xf32>, vector<1x128xf32> -> vector<1x128xf32>
    %359 = arith.addf %357, %358 : vector<1x128xf32>
    %360 = vector.extract_strided_slice %359 {offsets = [0, 0], sizes = [1, 32], strides = [1, 1]} : vector<1x128xf32> to vector<1x32xf32>
    %361 = arith.negf %360 : vector<1x32xf32>
    %362 = math.exp %361 : vector<1x32xf32>
    %cst_84 = arith.constant 1.000000e+00 : f32
    %363 = vector.broadcast %cst_84 : f32 to vector<1x32xf32>
    %364 = arith.addf %363, %362 : vector<1x32xf32>
    %365 = arith.divf %363, %364 : vector<1x32xf32>
    %366 = vector.extract_strided_slice %359 {offsets = [0, 32], sizes = [1, 32], strides = [1, 1]} : vector<1x128xf32> to vector<1x32xf32>
    %367 = arith.negf %366 : vector<1x32xf32>
    %368 = math.exp %367 : vector<1x32xf32>
    %cst_85 = arith.constant 1.000000e+00 : f32
    %369 = vector.broadcast %cst_85 : f32 to vector<1x32xf32>
    %370 = arith.addf %369, %368 : vector<1x32xf32>
    %371 = arith.divf %369, %370 : vector<1x32xf32>
    %372 = vector.extract_strided_slice %359 {offsets = [0, 64], sizes = [1, 32], strides = [1, 1]} : vector<1x128xf32> to vector<1x32xf32>
    %373 = math.tanh %372 : vector<1x32xf32>
    %374 = vector.extract_strided_slice %359 {offsets = [0, 96], sizes = [1, 32], strides = [1, 1]} : vector<1x128xf32> to vector<1x32xf32>
    %375 = arith.negf %374 : vector<1x32xf32>
    %376 = math.exp %375 : vector<1x32xf32>
    %cst_86 = arith.constant 1.000000e+00 : f32
    %377 = vector.broadcast %cst_86 : f32 to vector<1x32xf32>
    %378 = arith.addf %377, %376 : vector<1x32xf32>
    %379 = arith.divf %377, %378 : vector<1x32xf32>
    %380 = arith.mulf %371, %353 : vector<1x32xf32>
    %381 = arith.mulf %365, %373 : vector<1x32xf32>
    %382 = arith.addf %380, %381 : vector<1x32xf32>
    %383 = math.tanh %382 : vector<1x32xf32>
    %384 = arith.mulf %379, %383 : vector<1x32xf32>
    %c3_87 = arith.constant 3 : index
    %c0_88 = arith.constant 0 : index
    %385 = vector.load %arg13[%c3_87, %c0_88] : memref<8x32xf32, #tpu.memory_space<vmem>>, vector<1x32xf32>
    tpu.vector_store %arg13[%c3_87, %c0_88], %384 {strides = array<i32>} : memref<8x32xf32, #tpu.memory_space<vmem>>, vector<1x32xf32>,
    %386 = vector.extract_strided_slice %266 {offsets = [4, 0], sizes = [1, 128], strides = [1, 1]} : vector<8x128xf32> to vector<1x128xf32>
    %cst_89 = arith.constant dense<0.000000e+00> : vector<1x128xf32>
    %387 = tpu.matmul %384, %267, %cst_89 {dimension_numbers = #tpu.dot_dimension_numbers<[1], [0], [0], [1], [0, 0, 1, 1], [], []>} : vector<1x32xf32>, vector<32x128xf32>, vector<1x128xf32> -> vector<1x128xf32>
    %388 = arith.addf %386, %387 : vector<1x128xf32>
    %389 = vector.extract_strided_slice %388 {offsets = [0, 0], sizes = [1, 32], strides = [1, 1]} : vector<1x128xf32> to vector<1x32xf32>
    %390 = arith.negf %389 : vector<1x32xf32>
    %391 = math.exp %390 : vector<1x32xf32>
    %cst_90 = arith.constant 1.000000e+00 : f32
    %392 = vector.broadcast %cst_90 : f32 to vector<1x32xf32>
    %393 = arith.addf %392, %391 : vector<1x32xf32>
    %394 = arith.divf %392, %393 : vector<1x32xf32>
    %395 = vector.extract_strided_slice %388 {offsets = [0, 32], sizes = [1, 32], strides = [1, 1]} : vector<1x128xf32> to vector<1x32xf32>
    %396 = arith.negf %395 : vector<1x32xf32>
    %397 = math.exp %396 : vector<1x32xf32>
    %cst_91 = arith.constant 1.000000e+00 : f32
    %398 = vector.broadcast %cst_91 : f32 to vector<1x32xf32>
    %399 = arith.addf %398, %397 : vector<1x32xf32>
    %400 = arith.divf %398, %399 : vector<1x32xf32>
    %401 = vector.extract_strided_slice %388 {offsets = [0, 64], sizes = [1, 32], strides = [1, 1]} : vector<1x128xf32> to vector<1x32xf32>
    %402 = math.tanh %401 : vector<1x32xf32>
    %403 = vector.extract_strided_slice %388 {offsets = [0, 96], sizes = [1, 32], strides = [1, 1]} : vector<1x128xf32> to vector<1x32xf32>
    %404 = arith.negf %403 : vector<1x32xf32>
    %405 = math.exp %404 : vector<1x32xf32>
    %cst_92 = arith.constant 1.000000e+00 : f32
    %406 = vector.broadcast %cst_92 : f32 to vector<1x32xf32>
    %407 = arith.addf %406, %405 : vector<1x32xf32>
    %408 = arith.divf %406, %407 : vector<1x32xf32>
    %409 = arith.mulf %400, %382 : vector<1x32xf32>
    %410 = arith.mulf %394, %402 : vector<1x32xf32>
    %411 = arith.addf %409, %410 : vector<1x32xf32>
    %412 = math.tanh %411 : vector<1x32xf32>
    %413 = arith.mulf %408, %412 : vector<1x32xf32>
    %c4_93 = arith.constant 4 : index
    %c0_94 = arith.constant 0 : index
    %414 = vector.load %arg13[%c4_93, %c0_94] : memref<8x32xf32, #tpu.memory_space<vmem>>, vector<1x32xf32>
    tpu.vector_store %arg13[%c4_93, %c0_94], %413 {strides = array<i32>} : memref<8x32xf32, #tpu.memory_space<vmem>>, vector<1x32xf32>,
    %415 = vector.extract_strided_slice %266 {offsets = [5, 0], sizes = [1, 128], strides = [1, 1]} : vector<8x128xf32> to vector<1x128xf32>
    %cst_95 = arith.constant dense<0.000000e+00> : vector<1x128xf32>
    %416 = tpu.matmul %413, %267, %cst_95 {dimension_numbers = #tpu.dot_dimension_numbers<[1], [0], [0], [1], [0, 0, 1, 1], [], []>} : vector<1x32xf32>, vector<32x128xf32>, vector<1x128xf32> -> vector<1x128xf32>
    %417 = arith.addf %415, %416 : vector<1x128xf32>
    %418 = vector.extract_strided_slice %417 {offsets = [0, 0], sizes = [1, 32], strides = [1, 1]} : vector<1x128xf32> to vector<1x32xf32>
    %419 = arith.negf %418 : vector<1x32xf32>
    %420 = math.exp %419 : vector<1x32xf32>
    %cst_96 = arith.constant 1.000000e+00 : f32
    %421 = vector.broadcast %cst_96 : f32 to vector<1x32xf32>
    %422 = arith.addf %421, %420 : vector<1x32xf32>
    %423 = arith.divf %421, %422 : vector<1x32xf32>
    %424 = vector.extract_strided_slice %417 {offsets = [0, 32], sizes = [1, 32], strides = [1, 1]} : vector<1x128xf32> to vector<1x32xf32>
    %425 = arith.negf %424 : vector<1x32xf32>
    %426 = math.exp %425 : vector<1x32xf32>
    %cst_97 = arith.constant 1.000000e+00 : f32
    %427 = vector.broadcast %cst_97 : f32 to vector<1x32xf32>
    %428 = arith.addf %427, %426 : vector<1x32xf32>
    %429 = arith.divf %427, %428 : vector<1x32xf32>
    %430 = vector.extract_strided_slice %417 {offsets = [0, 64], sizes = [1, 32], strides = [1, 1]} : vector<1x128xf32> to vector<1x32xf32>
    %431 = math.tanh %430 : vector<1x32xf32>
    %432 = vector.extract_strided_slice %417 {offsets = [0, 96], sizes = [1, 32], strides = [1, 1]} : vector<1x128xf32> to vector<1x32xf32>
    %433 = arith.negf %432 : vector<1x32xf32>
    %434 = math.exp %433 : vector<1x32xf32>
    %cst_98 = arith.constant 1.000000e+00 : f32
    %435 = vector.broadcast %cst_98 : f32 to vector<1x32xf32>
    %436 = arith.addf %435, %434 : vector<1x32xf32>
    %437 = arith.divf %435, %436 : vector<1x32xf32>
    %438 = arith.mulf %429, %411 : vector<1x32xf32>
    %439 = arith.mulf %423, %431 : vector<1x32xf32>
    %440 = arith.addf %438, %439 : vector<1x32xf32>
    %441 = math.tanh %440 : vector<1x32xf32>
    %442 = arith.mulf %437, %441 : vector<1x32xf32>
    %c5_99 = arith.constant 5 : index
    %c0_100 = arith.constant 0 : index
    %443 = vector.load %arg13[%c5_99, %c0_100] : memref<8x32xf32, #tpu.memory_space<vmem>>, vector<1x32xf32>
    tpu.vector_store %arg13[%c5_99, %c0_100], %442 {strides = array<i32>} : memref<8x32xf32, #tpu.memory_space<vmem>>, vector<1x32xf32>,
    %444 = vector.extract_strided_slice %266 {offsets = [6, 0], sizes = [1, 128], strides = [1, 1]} : vector<8x128xf32> to vector<1x128xf32>
    %cst_101 = arith.constant dense<0.000000e+00> : vector<1x128xf32>
    %445 = tpu.matmul %442, %267, %cst_101 {dimension_numbers = #tpu.dot_dimension_numbers<[1], [0], [0], [1], [0, 0, 1, 1], [], []>} : vector<1x32xf32>, vector<32x128xf32>, vector<1x128xf32> -> vector<1x128xf32>
    %446 = arith.addf %444, %445 : vector<1x128xf32>
    %447 = vector.extract_strided_slice %446 {offsets = [0, 0], sizes = [1, 32], strides = [1, 1]} : vector<1x128xf32> to vector<1x32xf32>
    %448 = arith.negf %447 : vector<1x32xf32>
    %449 = math.exp %448 : vector<1x32xf32>
    %cst_102 = arith.constant 1.000000e+00 : f32
    %450 = vector.broadcast %cst_102 : f32 to vector<1x32xf32>
    %451 = arith.addf %450, %449 : vector<1x32xf32>
    %452 = arith.divf %450, %451 : vector<1x32xf32>
    %453 = vector.extract_strided_slice %446 {offsets = [0, 32], sizes = [1, 32], strides = [1, 1]} : vector<1x128xf32> to vector<1x32xf32>
    %454 = arith.negf %453 : vector<1x32xf32>
    %455 = math.exp %454 : vector<1x32xf32>
    %cst_103 = arith.constant 1.000000e+00 : f32
    %456 = vector.broadcast %cst_103 : f32 to vector<1x32xf32>
    %457 = arith.addf %456, %455 : vector<1x32xf32>
    %458 = arith.divf %456, %457 : vector<1x32xf32>
    %459 = vector.extract_strided_slice %446 {offsets = [0, 64], sizes = [1, 32], strides = [1, 1]} : vector<1x128xf32> to vector<1x32xf32>
    %460 = math.tanh %459 : vector<1x32xf32>
    %461 = vector.extract_strided_slice %446 {offsets = [0, 96], sizes = [1, 32], strides = [1, 1]} : vector<1x128xf32> to vector<1x32xf32>
    %462 = arith.negf %461 : vector<1x32xf32>
    %463 = math.exp %462 : vector<1x32xf32>
    %cst_104 = arith.constant 1.000000e+00 : f32
    %464 = vector.broadcast %cst_104 : f32 to vector<1x32xf32>
    %465 = arith.addf %464, %463 : vector<1x32xf32>
    %466 = arith.divf %464, %465 : vector<1x32xf32>
    %467 = arith.mulf %458, %440 : vector<1x32xf32>
    %468 = arith.mulf %452, %460 : vector<1x32xf32>
    %469 = arith.addf %467, %468 : vector<1x32xf32>
    %470 = math.tanh %469 : vector<1x32xf32>
    %471 = arith.mulf %466, %470 : vector<1x32xf32>
    %c6_105 = arith.constant 6 : index
    %c0_106 = arith.constant 0 : index
    %472 = vector.load %arg13[%c6_105, %c0_106] : memref<8x32xf32, #tpu.memory_space<vmem>>, vector<1x32xf32>
    tpu.vector_store %arg13[%c6_105, %c0_106], %471 {strides = array<i32>} : memref<8x32xf32, #tpu.memory_space<vmem>>, vector<1x32xf32>,
    %473 = vector.extract_strided_slice %266 {offsets = [7, 0], sizes = [1, 128], strides = [1, 1]} : vector<8x128xf32> to vector<1x128xf32>
    %cst_107 = arith.constant dense<0.000000e+00> : vector<1x128xf32>
    %474 = tpu.matmul %471, %267, %cst_107 {dimension_numbers = #tpu.dot_dimension_numbers<[1], [0], [0], [1], [0, 0, 1, 1], [], []>} : vector<1x32xf32>, vector<32x128xf32>, vector<1x128xf32> -> vector<1x128xf32>
    %475 = arith.addf %473, %474 : vector<1x128xf32>
    %476 = vector.extract_strided_slice %475 {offsets = [0, 0], sizes = [1, 32], strides = [1, 1]} : vector<1x128xf32> to vector<1x32xf32>
    %477 = arith.negf %476 : vector<1x32xf32>
    %478 = math.exp %477 : vector<1x32xf32>
    %cst_108 = arith.constant 1.000000e+00 : f32
    %479 = vector.broadcast %cst_108 : f32 to vector<1x32xf32>
    %480 = arith.addf %479, %478 : vector<1x32xf32>
    %481 = arith.divf %479, %480 : vector<1x32xf32>
    %482 = vector.extract_strided_slice %475 {offsets = [0, 32], sizes = [1, 32], strides = [1, 1]} : vector<1x128xf32> to vector<1x32xf32>
    %483 = arith.negf %482 : vector<1x32xf32>
    %484 = math.exp %483 : vector<1x32xf32>
    %cst_109 = arith.constant 1.000000e+00 : f32
    %485 = vector.broadcast %cst_109 : f32 to vector<1x32xf32>
    %486 = arith.addf %485, %484 : vector<1x32xf32>
    %487 = arith.divf %485, %486 : vector<1x32xf32>
    %488 = vector.extract_strided_slice %475 {offsets = [0, 64], sizes = [1, 32], strides = [1, 1]} : vector<1x128xf32> to vector<1x32xf32>
    %489 = math.tanh %488 : vector<1x32xf32>
    %490 = vector.extract_strided_slice %475 {offsets = [0, 96], sizes = [1, 32], strides = [1, 1]} : vector<1x128xf32> to vector<1x32xf32>
    %491 = arith.negf %490 : vector<1x32xf32>
    %492 = math.exp %491 : vector<1x32xf32>
    %cst_110 = arith.constant 1.000000e+00 : f32
    %493 = vector.broadcast %cst_110 : f32 to vector<1x32xf32>
    %494 = arith.addf %493, %492 : vector<1x32xf32>
    %495 = arith.divf %493, %494 : vector<1x32xf32>
    %496 = arith.mulf %487, %469 : vector<1x32xf32>
    %497 = arith.mulf %481, %489 : vector<1x32xf32>
    %498 = arith.addf %496, %497 : vector<1x32xf32>
    %499 = math.tanh %498 : vector<1x32xf32>
    %500 = arith.mulf %495, %499 : vector<1x32xf32>
    %c7_111 = arith.constant 7 : index
    %c0_112 = arith.constant 0 : index
    %501 = vector.load %arg13[%c7_111, %c0_112] : memref<8x32xf32, #tpu.memory_space<vmem>>, vector<1x32xf32>
    tpu.vector_store %arg13[%c7_111, %c0_112], %500 {strides = array<i32>} : memref<8x32xf32, #tpu.memory_space<vmem>>, vector<1x32xf32>,
    %c0_113 = arith.constant 0 : index
    %c0_114 = arith.constant 0 : index
    %502 = vector.load %arg13[%c0_113, %c0_114] : memref<8x32xf32, #tpu.memory_space<vmem>>, vector<8x32xf32>
    %c0_115 = arith.constant 0 : index
    %c0_116 = arith.constant 0 : index
    %503 = vector.load %arg9[%c0_115, %c0_116] : memref<32x7xf32, #tpu.memory_space<vmem>>, vector<32x7xf32>
    %cst_117 = arith.constant dense<0.000000e+00> : vector<8x7xf32>
    %504 = tpu.matmul %502, %503, %cst_117 {dimension_numbers = #tpu.dot_dimension_numbers<[1], [0], [0], [1], [0, 0, 1, 1], [], []>} : vector<8x32xf32>, vector<32x7xf32>, vector<8x7xf32> -> vector<8x7xf32>
    %c0_118 = arith.constant 0 : index
    %c0_119 = arith.constant 0 : index
    %505 = vector.load %arg10[%c0_118, %c0_119] : memref<1x7xf32, #tpu.memory_space<vmem>>, vector<1x7xf32>
    %506 = vector.broadcast %505 : vector<1x7xf32> to vector<8x7xf32>
    %507 = arith.addf %504, %506 : vector<8x7xf32>
    %508 = vector.extract_strided_slice %507 {offsets = [0, 0], sizes = [8, 6], strides = [1, 1]} : vector<8x7xf32> to vector<8x6xf32>
    %509 = math.tanh %508 : vector<8x6xf32>
    %c0_120 = arith.constant 0 : index
    %c0_121 = arith.constant 0 : index
    %510 = vector.load %arg11[%c0_120, %c0_121] : memref<8x6xf32, #tpu.memory_space<vmem>>, vector<8x6xf32>
    tpu.vector_store %arg11[%c0_120, %c0_121], %509 {strides = array<i32>} : memref<8x6xf32, #tpu.memory_space<vmem>>, vector<8x6xf32>,
    %511 = vector.extract_strided_slice %507 {offsets = [0, 6], sizes = [8, 1], strides = [1, 1]} : vector<8x7xf32> to vector<8x1xf32>
    %512 = arith.negf %511 : vector<8x1xf32>
    %513 = math.exp %512 : vector<8x1xf32>
    %cst_122 = arith.constant 1.000000e+00 : f32
    %514 = vector.broadcast %cst_122 : f32 to vector<8x1xf32>
    %515 = arith.addf %514, %513 : vector<8x1xf32>
    %516 = arith.divf %514, %515 : vector<8x1xf32>
    %c0_123 = arith.constant 0 : index
    %c0_124 = arith.constant 0 : index
    %517 = vector.load %arg12[%c0_123, %c0_124] : memref<8x1xf32, #tpu.memory_space<vmem>>, vector<8x1xf32>
    tpu.vector_store %arg12[%c0_123, %c0_124], %516 {strides = array<i32>} : memref<8x1xf32, #tpu.memory_space<vmem>>, vector<8x1xf32>,
    return
  }
}

</mosaic_0001>

<llo_original>
// kernel: lstm_controller_forward.2
$region0: #{lstm_controller_forward.2}
  #allocation0 [shape = 'u32[]', space=smem, size = 0x4, offset = 0x4, fixed_abs, tag = 'smem constant byte address 0x4 - core index']
  #allocation1 [shape = 'u32[144,128]{1,0:T(1,128)}', space=vmem, size = 0x12000, scoped, tag = 'internal scratch']
  %s0 = inlined_call_operand.vmem [shape: f32[512,392], index: 0, kind: input, shape index: {}]
  %s1 = inlined_call_operand.vmem [shape: f32[8,512], index: 1, kind: input, shape index: {}]
  %s2 = inlined_call_operand.vmem [shape: f32[8,1], index: 2, kind: input, shape index: {}]
  %s3 = inlined_call_operand.vmem [shape: f32[8,392], index: 3, kind: output, shape index: {}]
  %s4 = sld [smem:[#allocation0]]
  $region22: #{lstm_controller_forward.2} parent=0
    _
  %s6 = ssub.s32 1, %s4
  %s7 = scalar_select 0, %s6, %s4
  // Predicated region
  $region2: #{lstm_controller_forward.2} parent=0 // pred_check
    _
  $region3: #{lstm_controller_forward.2} parent=0 // pred_check_branch
    %9 = sbr.rel (0) target = $region5
  $region4: #{lstm_controller_forward.2} parent=0 // pred_region
    _
  $region5: #{lstm_controller_forward.2} parent=0 // pred_fallthru
    _
  // Predicated region
  $region6: #{lstm_controller_forward.2} parent=0 // pred_check
    _
  $region7: #{lstm_controller_forward.2} parent=0 // pred_check_branch
    %11 = sbr.rel (0) target = $region9
  $region8: #{lstm_controller_forward.2} parent=0 // pred_region
    _
  $region9: #{lstm_controller_forward.2} parent=0 // pred_fallthru
    _
  // Predicated region
  $region10: #{lstm_controller_forward.2} parent=0 // pred_check
    _
  $region11: #{lstm_controller_forward.2} parent=0 // pred_check_branch
    %13 = sbr.rel (0) target = $region13
  $region12: #{lstm_controller_forward.2} parent=0 // pred_region
    _
  $region13: #{lstm_controller_forward.2} parent=0 // pred_fallthru
    _
  %v14 = vld [vmem:[%s1] sm:$0xff]
  %v15 = vld [vmem:[%s1 + $0x8] sm:$0xff]
  %v16 = vld [vmem:[%s1 + $0x10] sm:$0xff]
  %v17 = vld [vmem:[%s1 + $0x18] sm:$0xff]
  %v18 = vld [vmem:[%s0] sm:$0xff]
  %v19 = vld [vmem:[%s0 + $0x8] sm:$0xff]
  %v20 = vld [vmem:[%s0 + $0x10] sm:$0xff]
  %v21 = vld [vmem:[%s0 + $0x18] sm:$0xff]
  %v22 = vld [vmem:[%s0 + $0x20] sm:$0xff]
  %v23 = vld [vmem:[%s0 + $0x28] sm:$0xff]
  %v24 = vld [vmem:[%s0 + $0x30] sm:$0xff]
  %v25 = vld [vmem:[%s0 + $0x38] sm:$0xff]
  %v26 = vld [vmem:[%s0 + $0x40] sm:$0xff]
  %v27 = vld [vmem:[%s0 + $0x48] sm:$0xff]
  %v28 = vld [vmem:[%s0 + $0x50] sm:$0xff]
  %v29 = vld [vmem:[%s0 + $0x58] sm:$0xff]
  %v30 = vld [vmem:[%s0 + $0x60] sm:$0xff]
  %v31 = vld [vmem:[%s0 + $0x68] sm:$0xff]
  %v32 = vld [vmem:[%s0 + $0x70] sm:$0xff]
  %v33 = vld [vmem:[%s0 + $0x78] sm:$0xff]
  %v34 = vld [vmem:[%s0 + $0x80] sm:$0xff]
  %v35 = vld [vmem:[%s0 + $0x88] sm:$0xff]
  %v36 = vld [vmem:[%s0 + $0x90] sm:$0xff]
  %v37 = vld [vmem:[%s0 + $0x98] sm:$0xff]
  %v38 = vld [vmem:[%s0 + $0xa0] sm:$0xff]
  %v39 = vld [vmem:[%s0 + $0xa8] sm:$0xff]
  %v40 = vld [vmem:[%s0 + $0xb0] sm:$0xff]
  %v41 = vld [vmem:[%s0 + $0xb8] sm:$0xff]
  %v42 = vld [vmem:[%s0 + $0xc0] sm:$0xff]
  %v43 = vld [vmem:[%s0 + $0xc8] sm:$0xff]
  %v44 = vld [vmem:[%s0 + $0xd0] sm:$0xff]
  %v45 = vld [vmem:[%s0 + $0xd8] sm:$0xff]
  %v46 = vld [vmem:[%s0 + $0xe0] sm:$0xff]
  %v47 = vld [vmem:[%s0 + $0xe8] sm:$0xff]
  %v48 = vld [vmem:[%s0 + $0xf0] sm:$0xff]
  %v49 = vld [vmem:[%s0 + $0xf8] sm:$0xff]
  %v50 = vld [vmem:[%s0 + $0x100] sm:$0xff]
  %v51 = vld [vmem:[%s0 + $0x108] sm:$0xff]
  %v52 = vld [vmem:[%s0 + $0x110] sm:$0xff]
  %v53 = vld [vmem:[%s0 + $0x118] sm:$0xff]
  %v54 = vld [vmem:[%s0 + $0x120] sm:$0xff]
  %v55 = vld [vmem:[%s0 + $0x128] sm:$0xff]
  %v56 = vld [vmem:[%s0 + $0x130] sm:$0xff]
  %v57 = vld [vmem:[%s0 + $0x138] sm:$0xff]
  %v58 = vld [vmem:[%s0 + $0x140] sm:$0xff]
  %v59 = vld [vmem:[%s0 + $0x148] sm:$0xff]
  %v60 = vld [vmem:[%s0 + $0x150] sm:$0xff]
  %v61 = vld [vmem:[%s0 + $0x158] sm:$0xff]
  %v62 = vld [vmem:[%s0 + $0x160] sm:$0xff]
  %v63 = vld [vmem:[%s0 + $0x168] sm:$0xff]
  %v64 = vld [vmem:[%s0 + $0x170] sm:$0xff]
  %v65 = vld [vmem:[%s0 + $0x178] sm:$0xff]
  %v66 = vld [vmem:[%s0 + $0x180] sm:$0xff]
  %v67 = vld [vmem:[%s0 + $0x188] sm:$0xff]
  %v68 = vld [vmem:[%s0 + $0x190] sm:$0xff]
  %v69 = vld [vmem:[%s0 + $0x198] sm:$0xff]
  %v70 = vld [vmem:[%s0 + $0x1a0] sm:$0xff]
  %v71 = vld [vmem:[%s0 + $0x1a8] sm:$0xff]
  %v72 = vld [vmem:[%s0 + $0x1b0] sm:$0xff]
  %v73 = vld [vmem:[%s0 + $0x1b8] sm:$0xff]
  %v74 = vld [vmem:[%s0 + $0x1c0] sm:$0xff]
  %v75 = vld [vmem:[%s0 + $0x1c8] sm:$0xff]
  %v76 = vld [vmem:[%s0 + $0x1d0] sm:$0xff]
  %v77 = vld [vmem:[%s0 + $0x1d8] sm:$0xff]
  %v78 = vld [vmem:[%s0 + $0x1e0] sm:$0xff]
  %v79 = vld [vmem:[%s0 + $0x1e8] sm:$0xff]
  %v80 = vld [vmem:[%s0 + $0x1f0] sm:$0xff]
  %v81 = vld [vmem:[%s0 + $0x1f8] sm:$0xff]
  %v82 = vld [vmem:[%s0 + $0x200] sm:$0xff]
  %v83 = vld [vmem:[%s0 + $0x208] sm:$0xff]
  %v84 = vld [vmem:[%s0 + $0x210] sm:$0xff]
  %v85 = vld [vmem:[%s0 + $0x218] sm:$0xff]
  %v86 = vld [vmem:[%s0 + $0x220] sm:$0xff]
  %v87 = vld [vmem:[%s0 + $0x228] sm:$0xff]
  %v88 = vld [vmem:[%s0 + $0x230] sm:$0xff]
  %v89 = vld [vmem:[%s0 + $0x238] sm:$0xff]
  %v90 = vld [vmem:[%s0 + $0x240] sm:$0xff]
  %v91 = vld [vmem:[%s0 + $0x248] sm:$0xff]
  %v92 = vld [vmem:[%s0 + $0x250] sm:$0xff]
  %v93 = vld [vmem:[%s0 + $0x258] sm:$0xff]
  %v94 = vld [vmem:[%s0 + $0x260] sm:$0xff]
  %v95 = vld [vmem:[%s0 + $0x268] sm:$0xff]
  %v96 = vld [vmem:[%s0 + $0x270] sm:$0xff]
  %v97 = vld [vmem:[%s0 + $0x278] sm:$0xff]
  %v98 = vld [vmem:[%s0 + $0x280] sm:$0xff]
  %v99 = vld [vmem:[%s0 + $0x288] sm:$0xff]
  %v100 = vld [vmem:[%s0 + $0x290] sm:$0xff]
  %v101 = vld [vmem:[%s0 + $0x298] sm:$0xff]
  %v102 = vld [vmem:[%s0 + $0x2a0] sm:$0xff]
  %v103 = vld [vmem:[%s0 + $0x2a8] sm:$0xff]
  %v104 = vld [vmem:[%s0 + $0x2b0] sm:$0xff]
  %v105 = vld [vmem:[%s0 + $0x2b8] sm:$0xff]
  %v106 = vld [vmem:[%s0 + $0x2c0] sm:$0xff]
  %v107 = vld [vmem:[%s0 + $0x2c8] sm:$0xff]
  %v108 = vld [vmem:[%s0 + $0x2d0] sm:$0xff]
  %v109 = vld [vmem:[%s0 + $0x2d8] sm:$0xff]
  %v110 = vld [vmem:[%s0 + $0x2e0] sm:$0xff]
  %v111 = vld [vmem:[%s0 + $0x2e8] sm:$0xff]
  %v112 = vld [vmem:[%s0 + $0x2f0] sm:$0xff]
  %v113 = vld [vmem:[%s0 + $0x2f8] sm:$0xff]
  %v114 = vld [vmem:[%s0 + $0x300] sm:$0xff]
  %v115 = vld [vmem:[%s0 + $0x308] sm:$0xff]
  %v116 = vld [vmem:[%s0 + $0x310] sm:$0xff]
  %v117 = vld [vmem:[%s0 + $0x318] sm:$0xff]
  %v118 = vld [vmem:[%s0 + $0x320] sm:$0xff]
  %v119 = vld [vmem:[%s0 + $0x328] sm:$0xff]
  %v120 = vld [vmem:[%s0 + $0x330] sm:$0xff]
  %v121 = vld [vmem:[%s0 + $0x338] sm:$0xff]
  %v122 = vld [vmem:[%s0 + $0x340] sm:$0xff]
  %v123 = vld [vmem:[%s0 + $0x348] sm:$0xff]
  %v124 = vld [vmem:[%s0 + $0x350] sm:$0xff]
  %v125 = vld [vmem:[%s0 + $0x358] sm:$0xff]
  %v126 = vld [vmem:[%s0 + $0x360] sm:$0xff]
  %v127 = vld [vmem:[%s0 + $0x368] sm:$0xff]
  %v128 = vld [vmem:[%s0 + $0x370] sm:$0xff]
  %v129 = vld [vmem:[%s0 + $0x378] sm:$0xff]
  %v130 = vld [vmem:[%s0 + $0x380] sm:$0xff]
  %v131 = vld [vmem:[%s0 + $0x388] sm:$0xff]
  %v132 = vld [vmem:[%s0 + $0x390] sm:$0xff]
  %v133 = vld [vmem:[%s0 + $0x398] sm:$0xff]
  %v134 = vld [vmem:[%s0 + $0x3a0] sm:$0xff]
  %v135 = vld [vmem:[%s0 + $0x3a8] sm:$0xff]
  %v136 = vld [vmem:[%s0 + $0x3b0] sm:$0xff]
  %v137 = vld [vmem:[%s0 + $0x3b8] sm:$0xff]
  %v138 = vld [vmem:[%s0 + $0x3c0] sm:$0xff]
  %v139 = vld [vmem:[%s0 + $0x3c8] sm:$0xff]
  %v140 = vld [vmem:[%s0 + $0x3d0] sm:$0xff]
  %v141 = vld [vmem:[%s0 + $0x3d8] sm:$0xff]
  %v142 = vld [vmem:[%s0 + $0x3e0] sm:$0xff]
  %v143 = vld [vmem:[%s0 + $0x3e8] sm:$0xff]
  %v144 = vld [vmem:[%s0 + $0x3f0] sm:$0xff]
  %v145 = vld [vmem:[%s0 + $0x3f8] sm:$0xff]
  %v146 = vld [vmem:[%s0 + $0x400] sm:$0xff]
  %v147 = vld [vmem:[%s0 + $0x408] sm:$0xff]
  %v148 = vld [vmem:[%s0 + $0x410] sm:$0xff]
  %v149 = vld [vmem:[%s0 + $0x418] sm:$0xff]
  %v150 = vld [vmem:[%s0 + $0x420] sm:$0xff]
  %v151 = vld [vmem:[%s0 + $0x428] sm:$0xff]
  %v152 = vld [vmem:[%s0 + $0x430] sm:$0xff]
  %v153 = vld [vmem:[%s0 + $0x438] sm:$0xff]
  %v154 = vld [vmem:[%s0 + $0x440] sm:$0xff]
  %v155 = vld [vmem:[%s0 + $0x448] sm:$0xff]
  %v156 = vld [vmem:[%s0 + $0x450] sm:$0xff]
  %v157 = vld [vmem:[%s0 + $0x458] sm:$0xff]
  %v158 = vld [vmem:[%s0 + $0x460] sm:$0xff]
  %v159 = vld [vmem:[%s0 + $0x468] sm:$0xff]
  %v160 = vld [vmem:[%s0 + $0x470] sm:$0xff]
  %v161 = vld [vmem:[%s0 + $0x478] sm:$0xff]
  %v162 = vld [vmem:[%s0 + $0x480] sm:$0xff]
  %v163 = vld [vmem:[%s0 + $0x488] sm:$0xff]
  %v164 = vld [vmem:[%s0 + $0x490] sm:$0xff]
  %v165 = vld [vmem:[%s0 + $0x498] sm:$0xff]
  %v166 = vld [vmem:[%s0 + $0x4a0] sm:$0xff]
  %v167 = vld [vmem:[%s0 + $0x4a8] sm:$0xff]
  %v168 = vld [vmem:[%s0 + $0x4b0] sm:$0xff]
  %v169 = vld [vmem:[%s0 + $0x4b8] sm:$0xff]
  %v170 = vld [vmem:[%s0 + $0x4c0] sm:$0xff]
  %v171 = vld [vmem:[%s0 + $0x4c8] sm:$0xff]
  %v172 = vld [vmem:[%s0 + $0x4d0] sm:$0xff]
  %v173 = vld [vmem:[%s0 + $0x4d8] sm:$0xff]
  %v174 = vld [vmem:[%s0 + $0x4e0] sm:$0xff]
  %v175 = vld [vmem:[%s0 + $0x4e8] sm:$0xff]
  %v176 = vld [vmem:[%s0 + $0x4f0] sm:$0xff]
  %v177 = vld [vmem:[%s0 + $0x4f8] sm:$0xff]
  %v178 = vld [vmem:[%s0 + $0x500] sm:$0xff]
  %v179 = vld [vmem:[%s0 + $0x508] sm:$0xff]
  %v180 = vld [vmem:[%s0 + $0x510] sm:$0xff]
  %v181 = vld [vmem:[%s0 + $0x518] sm:$0xff]
  %v182 = vld [vmem:[%s0 + $0x520] sm:$0xff]
  %v183 = vld [vmem:[%s0 + $0x528] sm:$0xff]
  %v184 = vld [vmem:[%s0 + $0x530] sm:$0xff]
  %v185 = vld [vmem:[%s0 + $0x538] sm:$0xff]
  %v186 = vld [vmem:[%s0 + $0x540] sm:$0xff]
  %v187 = vld [vmem:[%s0 + $0x548] sm:$0xff]
  %v188 = vld [vmem:[%s0 + $0x550] sm:$0xff]
  %v189 = vld [vmem:[%s0 + $0x558] sm:$0xff]
  %v190 = vld [vmem:[%s0 + $0x560] sm:$0xff]
  %v191 = vld [vmem:[%s0 + $0x568] sm:$0xff]
  %v192 = vld [vmem:[%s0 + $0x570] sm:$0xff]
  %v193 = vld [vmem:[%s0 + $0x578] sm:$0xff]
  %v194 = vld [vmem:[%s0 + $0x580] sm:$0xff]
  %v195 = vld [vmem:[%s0 + $0x588] sm:$0xff]
  %v196 = vld [vmem:[%s0 + $0x590] sm:$0xff]
  %v197 = vld [vmem:[%s0 + $0x598] sm:$0xff]
  %v198 = vld [vmem:[%s0 + $0x5a0] sm:$0xff]
  %v199 = vld [vmem:[%s0 + $0x5a8] sm:$0xff]
  %v200 = vld [vmem:[%s0 + $0x5b0] sm:$0xff]
  %v201 = vld [vmem:[%s0 + $0x5b8] sm:$0xff]
  %v202 = vld [vmem:[%s0 + $0x5c0] sm:$0xff]
  %v203 = vld [vmem:[%s0 + $0x5c8] sm:$0xff]
  %v204 = vld [vmem:[%s0 + $0x5d0] sm:$0xff]
  %v205 = vld [vmem:[%s0 + $0x5d8] sm:$0xff]
  %v206 = vld [vmem:[%s0 + $0x5e0] sm:$0xff]
  %v207 = vld [vmem:[%s0 + $0x5e8] sm:$0xff]
  %v208 = vld [vmem:[%s0 + $0x5f0] sm:$0xff]
  %v209 = vld [vmem:[%s0 + $0x5f8] sm:$0xff]
  %v210 = vld [vmem:[%s0 + $0x600] sm:$0xff]
  %v211 = vld [vmem:[%s0 + $0x608] sm:$0xff]
  %v212 = vld [vmem:[%s0 + $0x610] sm:$0xff]
  %v213 = vld [vmem:[%s0 + $0x618] sm:$0xff]
  %v214 = vld [vmem:[%s0 + $0x620] sm:$0xff]
  %v215 = vld [vmem:[%s0 + $0x628] sm:$0xff]
  %v216 = vld [vmem:[%s0 + $0x630] sm:$0xff]
  %v217 = vld [vmem:[%s0 + $0x638] sm:$0xff]
  %v218 = vld [vmem:[%s0 + $0x640] sm:$0xff]
  %v219 = vld [vmem:[%s0 + $0x648] sm:$0xff]
  %v220 = vld [vmem:[%s0 + $0x650] sm:$0xff]
  %v221 = vld [vmem:[%s0 + $0x658] sm:$0xff]
  %v222 = vld [vmem:[%s0 + $0x660] sm:$0xff]
  %v223 = vld [vmem:[%s0 + $0x668] sm:$0xff]
  %v224 = vld [vmem:[%s0 + $0x670] sm:$0xff]
  %v225 = vld [vmem:[%s0 + $0x678] sm:$0xff]
  %v226 = vld [vmem:[%s0 + $0x680] sm:$0xff]
  %v227 = vld [vmem:[%s0 + $0x688] sm:$0xff]
  %v228 = vld [vmem:[%s0 + $0x690] sm:$0xff]
  %v229 = vld [vmem:[%s0 + $0x698] sm:$0xff]
  %v230 = vld [vmem:[%s0 + $0x6a0] sm:$0xff]
  %v231 = vld [vmem:[%s0 + $0x6a8] sm:$0xff]
  %v232 = vld [vmem:[%s0 + $0x6b0] sm:$0xff]
  %v233 = vld [vmem:[%s0 + $0x6b8] sm:$0xff]
  %v234 = vld [vmem:[%s0 + $0x6c0] sm:$0xff]
  %v235 = vld [vmem:[%s0 + $0x6c8] sm:$0xff]
  %v236 = vld [vmem:[%s0 + $0x6d0] sm:$0xff]
  %v237 = vld [vmem:[%s0 + $0x6d8] sm:$0xff]
  %v238 = vld [vmem:[%s0 + $0x6e0] sm:$0xff]
  %v239 = vld [vmem:[%s0 + $0x6e8] sm:$0xff]
  %v240 = vld [vmem:[%s0 + $0x6f0] sm:$0xff]
  %v241 = vld [vmem:[%s0 + $0x6f8] sm:$0xff]
  %v242 = vld [vmem:[%s0 + $0x700] sm:$0xff]
  %v243 = vld [vmem:[%s0 + $0x708] sm:$0xff]
  %v244 = vld [vmem:[%s0 + $0x710] sm:$0xff]
  %v245 = vld [vmem:[%s0 + $0x718] sm:$0xff]
  %v246 = vld [vmem:[%s0 + $0x720] sm:$0xff]
  %v247 = vld [vmem:[%s0 + $0x728] sm:$0xff]
  %v248 = vld [vmem:[%s0 + $0x730] sm:$0xff]
  %v249 = vld [vmem:[%s0 + $0x738] sm:$0xff]
  %v250 = vld [vmem:[%s0 + $0x740] sm:$0xff]
  %v251 = vld [vmem:[%s0 + $0x748] sm:$0xff]
  %v252 = vld [vmem:[%s0 + $0x750] sm:$0xff]
  %v253 = vld [vmem:[%s0 + $0x758] sm:$0xff]
  %v254 = vld [vmem:[%s0 + $0x760] sm:$0xff]
  %v255 = vld [vmem:[%s0 + $0x768] sm:$0xff]
  %v256 = vld [vmem:[%s0 + $0x770] sm:$0xff]
  %v257 = vld [vmem:[%s0 + $0x778] sm:$0xff]
  %v258 = vld [vmem:[%s0 + $0x780] sm:$0xff]
  %v259 = vld [vmem:[%s0 + $0x788] sm:$0xff]
  %v260 = vld [vmem:[%s0 + $0x790] sm:$0xff]
  %v261 = vld [vmem:[%s0 + $0x798] sm:$0xff]
  %v262 = vld [vmem:[%s0 + $0x7a0] sm:$0xff]
  %v263 = vld [vmem:[%s0 + $0x7a8] sm:$0xff]
  %v264 = vld [vmem:[%s0 + $0x7b0] sm:$0xff]
  %v265 = vld [vmem:[%s0 + $0x7b8] sm:$0xff]
  %v266 = vld [vmem:[%s0 + $0x7c0] sm:$0xff]
  %v267 = vld [vmem:[%s0 + $0x7c8] sm:$0xff]
  %v268 = vld [vmem:[%s0 + $0x7d0] sm:$0xff]
  %v269 = vld [vmem:[%s0 + $0x7d8] sm:$0xff]
  %v270 = vld [vmem:[%s0 + $0x7e0] sm:$0xff]
  %v271 = vld [vmem:[%s0 + $0x7e8] sm:$0xff]
  %v272 = vld [vmem:[%s0 + $0x7f0] sm:$0xff]
  %v273 = vld [vmem:[%s0 + $0x7f8] sm:$0xff]
  %v274 = vld [vmem:[%s2] sm:$0xff]
  %276 = vset.pattern.permute.xlu0 0
  %277 = vperm.xlu0 %276, %v274
  %v278 = vpop.permute.xlu0 %277
  %280 = vmatprep.subr.mxu0 %v79
  %281 = vmatpush1.msra.mxu0 %v78
  %282 = vmatprep.subr.mxu0 %v75
  %283 = vmatpush1.msra.mxu0 %v74
  %284 = vmatprep.subr.mxu0 %v71
  %285 = vmatpush1.msra.mxu0 %v70
  %286 = vmatprep.subr.mxu0 %v67
  %287 = vmatpush1.msra.mxu0 %v66
  %288 = vmatprep.subr.mxu0 %v63
  %289 = vmatpush1.msra.mxu0 %v62
  %290 = vmatprep.subr.mxu0 %v59
  %291 = vmatpush1.msra.mxu0 %v58
  %292 = vmatprep.subr.mxu0 %v55
  %293 = vmatpush1.msra.mxu0 %v54
  %294 = vmatprep.subr.mxu0 %v51
  %295 = vmatpush1.msra.mxu0 %v50
  %296 = vmatprep.subr.mxu0 %v47
  %297 = vmatpush1.msra.mxu0 %v46
  %298 = vmatprep.subr.mxu0 %v43
  %299 = vmatpush1.msra.mxu0 %v42
  %300 = vmatprep.subr.mxu0 %v39
  %301 = vmatpush1.msra.mxu0 %v38
  %302 = vmatprep.subr.mxu0 %v35
  %303 = vmatpush1.msra.mxu0 %v34
  %304 = vmatprep.subr.mxu0 %v31
  %305 = vmatpush1.msra.mxu0 %v30
  %306 = vmatprep.subr.mxu0 %v27
  %307 = vmatpush1.msra.mxu0 %v26
  %308 = vmatprep.subr.mxu0 %v23
  %309 = vmatpush1.msra.mxu0 %v22
  %310 = vmatprep.subr.mxu0 %v19
  %311 = vmatpush1.msra.mxu0 %v18
  %312 = vmatprep.subr.mxu0 %v143
  %313 = vmatpush2.msra.mxu0 %v142
  %314 = vmatprep.subr.mxu0 %v139
  %315 = vmatpush2.msra.mxu0 %v138
  %316 = vmatprep.subr.mxu0 %v135
  %317 = vmatpush2.msra.mxu0 %v134
  %318 = vmatprep.subr.mxu0 %v131
  %319 = vmatpush2.msra.mxu0 %v130
  %320 = vmatprep.subr.mxu0 %v127
  %321 = vmatpush2.msra.mxu0 %v126
  %322 = vmatprep.subr.mxu0 %v123
  %323 = vmatpush2.msra.mxu0 %v122
  %324 = vmatprep.subr.mxu0 %v119
  %325 = vmatpush2.msra.mxu0 %v118
  %326 = vmatprep.subr.mxu0 %v115
  %327 = vmatpush2.msra.mxu0 %v114
  %328 = vmatprep.subr.mxu0 %v111
  %329 = vmatpush2.msra.mxu0 %v110
  %330 = vmatprep.subr.mxu0 %v107
  %331 = vmatpush2.msra.mxu0 %v106
  %332 = vmatprep.subr.mxu0 %v103
  %333 = vmatpush2.msra.mxu0 %v102
  %334 = vmatprep.subr.mxu0 %v99
  %335 = vmatpush2.msra.mxu0 %v98
  %336 = vmatprep.subr.mxu0 %v95
  %337 = vmatpush2.msra.mxu0 %v94
  %338 = vmatprep.subr.mxu0 %v91
  %339 = vmatpush2.msra.mxu0 %v90
  %340 = vmatprep.subr.mxu0 %v87
  %341 = vmatpush2.msra.mxu0 %v86
  %342 = vmatprep.subr.mxu0 %v83
  %343 = vmatpush2.msra.mxu0 %v82
  %344 = vmatprep.mubr.f32.mxu0 %v15
  %345 = vmatmul.mubr.f32.gmra.mxu0 %v14
  %v346 = vpop.f32.mrf.mxu0
  %v347 = vadd.f32 %v278, %v346
  %v348 = vpop.f32.mrf.mxu0
  %v349 = vadd.f32 %v278, %v348
  %350 = vdwg.mxu0
  %351 = vmatprep.subr.mxu0 %v207
  %352 = vmatpush1.msra.mxu0 %v206
  %353 = vmatprep.subr.mxu0 %v203
  %354 = vmatpush1.msra.mxu0 %v202
  %355 = vmatprep.subr.mxu0 %v199
  %356 = vmatpush1.msra.mxu0 %v198
  %357 = vmatprep.subr.mxu0 %v195
  %358 = vmatpush1.msra.mxu0 %v194
  %359 = vmatprep.subr.mxu0 %v191
  %360 = vmatpush1.msra.mxu0 %v190
  %361 = vmatprep.subr.mxu0 %v187
  %362 = vmatpush1.msra.mxu0 %v186
  %363 = vmatprep.subr.mxu0 %v183
  %364 = vmatpush1.msra.mxu0 %v182
  %365 = vmatprep.subr.mxu0 %v179
  %366 = vmatpush1.msra.mxu0 %v178
  %367 = vmatprep.subr.mxu0 %v175
  %368 = vmatpush1.msra.mxu0 %v174
  %369 = vmatprep.subr.mxu0 %v171
  %370 = vmatpush1.msra.mxu0 %v170
  %371 = vmatprep.subr.mxu0 %v167
  %372 = vmatpush1.msra.mxu0 %v166
  %373 = vmatprep.subr.mxu0 %v163
  %374 = vmatpush1.msra.mxu0 %v162
  %375 = vmatprep.subr.mxu0 %v159
  %376 = vmatpush1.msra.mxu0 %v158
  %377 = vmatprep.subr.mxu0 %v155
  %378 = vmatpush1.msra.mxu0 %v154
  %379 = vmatprep.subr.mxu0 %v151
  %380 = vmatpush1.msra.mxu0 %v150
  %381 = vmatprep.subr.mxu0 %v147
  %382 = vmatpush1.msra.mxu0 %v146
  %383 = vmatprep.subr.mxu0 %v271
  %384 = vmatpush2.msra.mxu0 %v270
  %385 = vmatprep.subr.mxu0 %v267
  %386 = vmatpush2.msra.mxu0 %v266
  %387 = vmatprep.subr.mxu0 %v263
  %388 = vmatpush2.msra.mxu0 %v262
  %389 = vmatprep.subr.mxu0 %v259
  %390 = vmatpush2.msra.mxu0 %v258
  %391 = vmatprep.subr.mxu0 %v255
  %392 = vmatpush2.msra.mxu0 %v254
  %393 = vmatprep.subr.mxu0 %v251
  %394 = vmatpush2.msra.mxu0 %v250
  %395 = vmatprep.subr.mxu0 %v247
  %396 = vmatpush2.msra.mxu0 %v246
  %397 = vmatprep.subr.mxu0 %v243
  %398 = vmatpush2.msra.mxu0 %v242
  %399 = vmatprep.subr.mxu0 %v239
  %400 = vmatpush2.msra.mxu0 %v238
  %401 = vmatprep.subr.mxu0 %v235
  %402 = vmatpush2.msra.mxu0 %v234
  %403 = vmatprep.subr.mxu0 %v231
  %404 = vmatpush2.msra.mxu0 %v230
  %405 = vmatprep.subr.mxu0 %v227
  %406 = vmatpush2.msra.mxu0 %v226
  %407 = vmatprep.subr.mxu0 %v223
  %408 = vmatpush2.msra.mxu0 %v222
  %409 = vmatprep.subr.mxu0 %v219
  %410 = vmatpush2.msra.mxu0 %v218
  %411 = vmatprep.subr.mxu0 %v215
  %412 = vmatpush2.msra.mxu0 %v214
  %413 = vmatprep.subr.mxu0 %v211
  %414 = vmatpush2.msra.mxu0 %v210
  %415 = vmatprep.mubr.f32.mxu0 %v17
  %416 = vmatmul.mubr.f32.gmra.mxu0 %v16
  %v417 = vpop.f32.mrf.mxu0
  %v418 = vadd.f32 %v347, %v417
  %v419 = vpop.f32.mrf.mxu0
  %v420 = vadd.f32 %v349, %v419
  %421 = vdwg.mxu0
  %422 = vmatprep.subr.mxu0 %v81
  %423 = vmatpush1.msra.mxu0 %v80
  %424 = vmatprep.subr.mxu0 %v77
  %425 = vmatpush1.msra.mxu0 %v76
  %426 = vmatprep.subr.mxu0 %v73
  %427 = vmatpush1.msra.mxu0 %v72
  %428 = vmatprep.subr.mxu0 %v69
  %429 = vmatpush1.msra.mxu0 %v68
  %430 = vmatprep.subr.mxu0 %v65
  %431 = vmatpush1.msra.mxu0 %v64
  %432 = vmatprep.subr.mxu0 %v61
  %433 = vmatpush1.msra.mxu0 %v60
  %434 = vmatprep.subr.mxu0 %v57
  %435 = vmatpush1.msra.mxu0 %v56
  %436 = vmatprep.subr.mxu0 %v53
  %437 = vmatpush1.msra.mxu0 %v52
  %438 = vmatprep.subr.mxu0 %v49
  %439 = vmatpush1.msra.mxu0 %v48
  %440 = vmatprep.subr.mxu0 %v45
  %441 = vmatpush1.msra.mxu0 %v44
  %442 = vmatprep.subr.mxu0 %v41
  %443 = vmatpush1.msra.mxu0 %v40
  %444 = vmatprep.subr.mxu0 %v37
  %445 = vmatpush1.msra.mxu0 %v36
  %446 = vmatprep.subr.mxu0 %v33
  %447 = vmatpush1.msra.mxu0 %v32
  %448 = vmatprep.subr.mxu0 %v29
  %449 = vmatpush1.msra.mxu0 %v28
  %450 = vmatprep.subr.mxu0 %v25
  %451 = vmatpush1.msra.mxu0 %v24
  %452 = vmatprep.subr.mxu0 %v21
  %453 = vmatpush1.msra.mxu0 %v20
  %454 = vmatprep.subr.mxu0 %v145
  %455 = vmatpush2.msra.mxu0 %v144
  %456 = vmatprep.subr.mxu0 %v141
  %457 = vmatpush2.msra.mxu0 %v140
  %458 = vmatprep.subr.mxu0 %v137
  %459 = vmatpush2.msra.mxu0 %v136
  %460 = vmatprep.subr.mxu0 %v133
  %461 = vmatpush2.msra.mxu0 %v132
  %462 = vmatprep.subr.mxu0 %v129
  %463 = vmatpush2.msra.mxu0 %v128
  %464 = vmatprep.subr.mxu0 %v125
  %465 = vmatpush2.msra.mxu0 %v124
  %466 = vmatprep.subr.mxu0 %v121
  %467 = vmatpush2.msra.mxu0 %v120
  %468 = vmatprep.subr.mxu0 %v117
  %469 = vmatpush2.msra.mxu0 %v116
  %470 = vmatprep.subr.mxu0 %v113
  %471 = vmatpush2.msra.mxu0 %v112
  %472 = vmatprep.subr.mxu0 %v109
  %473 = vmatpush2.msra.mxu0 %v108
  %474 = vmatprep.subr.mxu0 %v105
  %475 = vmatpush2.msra.mxu0 %v104
  %476 = vmatprep.subr.mxu0 %v101
  %477 = vmatpush2.msra.mxu0 %v100
  %478 = vmatprep.subr.mxu0 %v97
  %479 = vmatpush2.msra.mxu0 %v96
  %480 = vmatprep.subr.mxu0 %v93
  %481 = vmatpush2.msra.mxu0 %v92
  %482 = vmatprep.subr.mxu0 %v89
  %483 = vmatpush2.msra.mxu0 %v88
  %484 = vmatprep.subr.mxu0 %v85
  %485 = vmatpush2.msra.mxu0 %v84
  %486 = vmatprep.mubr.f32.mxu0 %v15
  %487 = vmatmul.mubr.f32.gmra.mxu0 %v14
  %v488 = vpop.f32.mrf.mxu0
  %v489 = vadd.f32 %v278, %v488
  %v490 = vpop.f32.mrf.mxu0
  %v491 = vadd.f32 %v278, %v490
  %492 = vdwg.mxu0
  %493 = vmatprep.subr.mxu0 %v209
  %494 = vmatpush1.msra.mxu0 %v208
  %495 = vmatprep.subr.mxu0 %v205
  %496 = vmatpush1.msra.mxu0 %v204
  %497 = vmatprep.subr.mxu0 %v201
  %498 = vmatpush1.msra.mxu0 %v200
  %499 = vmatprep.subr.mxu0 %v197
  %500 = vmatpush1.msra.mxu0 %v196
  %501 = vmatprep.subr.mxu0 %v193
  %502 = vmatpush1.msra.mxu0 %v192
  %503 = vmatprep.subr.mxu0 %v189
  %504 = vmatpush1.msra.mxu0 %v188
  %505 = vmatprep.subr.mxu0 %v185
  %506 = vmatpush1.msra.mxu0 %v184
  %507 = vmatprep.subr.mxu0 %v181
  %508 = vmatpush1.msra.mxu0 %v180
  %509 = vmatprep.subr.mxu0 %v177
  %510 = vmatpush1.msra.mxu0 %v176
  %511 = vmatprep.subr.mxu0 %v173
  %512 = vmatpush1.msra.mxu0 %v172
  %513 = vmatprep.subr.mxu0 %v169
  %514 = vmatpush1.msra.mxu0 %v168
  %515 = vmatprep.subr.mxu0 %v165
  %516 = vmatpush1.msra.mxu0 %v164
  %517 = vmatprep.subr.mxu0 %v161
  %518 = vmatpush1.msra.mxu0 %v160
  %519 = vmatprep.subr.mxu0 %v157
  %520 = vmatpush1.msra.mxu0 %v156
  %521 = vmatprep.subr.mxu0 %v153
  %522 = vmatpush1.msra.mxu0 %v152
  %523 = vmatprep.subr.mxu0 %v149
  %524 = vmatpush1.msra.mxu0 %v148
  %525 = vmatprep.subr.mxu0 %v273
  %526 = vmatpush2.msra.mxu0 %v272
  %527 = vmatprep.subr.mxu0 %v269
  %528 = vmatpush2.msra.mxu0 %v268
  %529 = vmatprep.subr.mxu0 %v265
  %530 = vmatpush2.msra.mxu0 %v264
  %531 = vmatprep.subr.mxu0 %v261
  %532 = vmatpush2.msra.mxu0 %v260
  %533 = vmatprep.subr.mxu0 %v257
  %534 = vmatpush2.msra.mxu0 %v256
  %535 = vmatprep.subr.mxu0 %v253
  %536 = vmatpush2.msra.mxu0 %v252
  %537 = vmatprep.subr.mxu0 %v249
  %538 = vmatpush2.msra.mxu0 %v248
  %539 = vmatprep.subr.mxu0 %v245
  %540 = vmatpush2.msra.mxu0 %v244
  %541 = vmatprep.subr.mxu0 %v241
  %542 = vmatpush2.msra.mxu0 %v240
  %543 = vmatprep.subr.mxu0 %v237
  %544 = vmatpush2.msra.mxu0 %v236
  %545 = vmatprep.subr.mxu0 %v233
  %546 = vmatpush2.msra.mxu0 %v232
  %547 = vmatprep.subr.mxu0 %v229
  %548 = vmatpush2.msra.mxu0 %v228
  %549 = vmatprep.subr.mxu0 %v225
  %550 = vmatpush2.msra.mxu0 %v224
  %551 = vmatprep.subr.mxu0 %v221
  %552 = vmatpush2.msra.mxu0 %v220
  %553 = vmatprep.subr.mxu0 %v217
  %554 = vmatpush2.msra.mxu0 %v216
  %555 = vmatprep.subr.mxu0 %v213
  %556 = vmatpush2.msra.mxu0 %v212
  %557 = vmatprep.mubr.f32.mxu0 %v17
  %558 = vmatmul.mubr.f32.gmra.mxu0 %v16
  %v559 = vpop.f32.mrf.mxu0
  %v560 = vadd.f32 %v489, %v559
  %v561 = vpop.f32.mrf.mxu0
  %v562 = vadd.f32 %v491, %v561
  %563 = vdwg.mxu0
  %v564 = vxor.u32 %v418, 2147483648
  %v565 = vxor.u32 %v420, 2147483648
  %v566 = vxor.u32 %v560, 2147483648
  %v567 = vxor.u32 %v562, 2147483648
  %v568 = vmul.f32 %v564, 1.442695
  %v569 = vpow.pop %v568
  %v570 = vmul.f32 %v565, 1.442695
  %v571 = vpow.pop %v570
  %v572 = vmul.f32 %v566, 1.442695
  %v573 = vpow.pop %v572
  %v574 = vmul.f32 %v567, 1.442695
  %v575 = vpow.pop %v574
  %v576 = vadd.f32 %v569, 1.0
  %v577 = vadd.f32 %v571, 1.0
  %v578 = vadd.f32 %v573, 1.0
  %v579 = vadd.f32 %v575, 1.0
  %v580 = vrcp.pop %v576
  %v581 = vmul.f32 1.0, %v580
  %v582 = vrcp.pop %v577
  %v583 = vmul.f32 1.0, %v582
  %v584 = vrcp.pop %v578
  %v585 = vmul.f32 1.0, %v584
  %v586 = vrcp.pop %v579
  %v587 = vmul.f32 1.0, %v586
  %588 = vst [vmem:[%s3] sm:$0xff] %v581
  %589 = vst [vmem:[%s3 + $0x8] sm:$0xff] %v583
  %590 = vst [vmem:[%s3 + $0x10] sm:$0xff] %v585
  %vm591 = vcmask 64512
  %592 = vst.msk [vmem:[%s3 + $0x18] sm:$0xff] %vm591, %v587
  // Predicated region
  $region14: #{lstm_controller_forward.2} parent=0 // pred_check
    _
  $region15: #{lstm_controller_forward.2} parent=0 // pred_check_branch
    %594 = sbr.rel (0) target = $region17
  $region16: #{lstm_controller_forward.2} parent=0 // pred_region
    _
  $region17: #{lstm_controller_forward.2} parent=0 // pred_fallthru
    _
  // Predicated region
  $region18: #{lstm_controller_forward.2} parent=0 // pred_check
    _
  $region19: #{lstm_controller_forward.2} parent=0 // pred_check_branch
    %596 = sbr.rel (0) target = $region21
  $region20: #{lstm_controller_forward.2} parent=0 // pred_region
    _
  $region21: #{lstm_controller_forward.2} parent=0 // pred_fallthru
    _

// kernel: lstm_controller_forward.3
$region0: #{lstm_controller_forward.3}
  #allocation0 [shape = 'u32[]', space=smem, size = 0x4, offset = 0x4, fixed_abs, tag = 'smem constant byte address 0x4 - core index']
  #allocation1 [shape = 'u32[144,128]{1,0:T(1,128)}', space=vmem, size = 0x12000, scoped, tag = 'internal scratch']
  #allocation2 [shape = 'f32[8,32]{1,0:T(8,128)}', space=vmem, size = 0x1000, scoped, tag = 'scratch operand']
  %s0 = inlined_call_operand.vmem [shape: f32[8,392], index: 0, kind: input, shape index: {}]
  %s1 = inlined_call_operand.vmem [shape: f32[8,3], index: 1, kind: input, shape index: {}]
  %s2 = inlined_call_operand.vmem [shape: f32[392,128], index: 2, kind: input, shape index: {}]
  %s3 = inlined_call_operand.vmem [shape: f32[3,128], index: 3, kind: input, shape index: {}]
  %s4 = inlined_call_operand.vmem [shape: f32[32,128], index: 4, kind: input, shape index: {}]
  %s5 = inlined_call_operand.vmem [shape: f32[1,128], index: 5, kind: input, shape index: {}]
  %s6 = inlined_call_operand.vmem [shape: f32[32,128], index: 6, kind: input, shape index: {}]
  %s7 = inlined_call_operand.vmem [shape: f32[32,128], index: 7, kind: input, shape index: {}]
  %s8 = inlined_call_operand.vmem [shape: f32[1,128], index: 8, kind: input, shape index: {}]
  %s9 = inlined_call_operand.vmem [shape: f32[32,7], index: 9, kind: input, shape index: {}]
  %s10 = inlined_call_operand.vmem [shape: f32[1,7], index: 10, kind: input, shape index: {}]
  %s11 = inlined_call_operand.hbm [shape: f32[8,6], index: 11, kind: output, shape index: {0}]
  %s12 = inlined_call_operand.vmem [shape: f32[8,1], index: 12, kind: output, shape index: {1}]
  %13 = xla_tuple %s11, %s12
  %s14 = sld [smem:[#allocation0]]
  $region62: #{lstm_controller_forward.3} parent=0
    _
  %s16 = ssub.s32 1, %s14
  %s17 = scalar_select 0, %s16, %s14
  $region1: #{lstm_controller_forward.3} parent=0
    #allocation3 [shape = 'u8[4096]{0}', space=vmem, size = 0x1000, scoped, tag = 'output window, operand 0, single buffered']
    #allocation4 [shape = 's32[1]{0}', space=sflag, size = 0x4, scoped, tag = 'scoped memory for lstm_controller_forward.3']
    %18 = vsyncpa [#allocation4], 0
    // Predicated region
    $region2: #{lstm_controller_forward.3} parent=1 // pred_check
      _
    $region3: #{lstm_controller_forward.3} parent=1 // pred_check_branch
      %20 = sbr.rel (0) target = $region5
    $region4: #{lstm_controller_forward.3} parent=1 // pred_region
      _
    $region5: #{lstm_controller_forward.3} parent=1 // pred_fallthru
      _
    // Predicated region
    $region6: #{lstm_controller_forward.3} parent=1 // pred_check
      _
    $region7: #{lstm_controller_forward.3} parent=1 // pred_check_branch
      %22 = sbr.rel (0) target = $region9
    $region8: #{lstm_controller_forward.3} parent=1 // pred_region
      _
    $region9: #{lstm_controller_forward.3} parent=1 // pred_fallthru
      _
    // Predicated region
    $region10: #{lstm_controller_forward.3} parent=1 // pred_check
      _
    $region11: #{lstm_controller_forward.3} parent=1 // pred_check_branch
      %24 = sbr.rel (0) target = $region13
    $region12: #{lstm_controller_forward.3} parent=1 // pred_region
      _
    $region13: #{lstm_controller_forward.3} parent=1 // pred_fallthru
      _
    // Predicated region
    $region14: #{lstm_controller_forward.3} parent=1 // pred_check
      _
    $region15: #{lstm_controller_forward.3} parent=1 // pred_check_branch
      %26 = sbr.rel (0) target = $region17
    $region16: #{lstm_controller_forward.3} parent=1 // pred_region
      _
    $region17: #{lstm_controller_forward.3} parent=1 // pred_fallthru
      _
    // Predicated region
    $region18: #{lstm_controller_forward.3} parent=1 // pred_check
      _
    $region19: #{lstm_controller_forward.3} parent=1 // pred_check_branch
      %28 = sbr.rel (0) target = $region21
    $region20: #{lstm_controller_forward.3} parent=1 // pred_region
      _
    $region21: #{lstm_controller_forward.3} parent=1 // pred_fallthru
      _
    // Predicated region
    $region22: #{lstm_controller_forward.3} parent=1 // pred_check
      _
    $region23: #{lstm_controller_forward.3} parent=1 // pred_check_branch
      %30 = sbr.rel (0) target = $region25
    $region24: #{lstm_controller_forward.3} parent=1 // pred_region
      _
    $region25: #{lstm_controller_forward.3} parent=1 // pred_fallthru
      _
    // Predicated region
    $region26: #{lstm_controller_forward.3} parent=1 // pred_check
      _
    $region27: #{lstm_controller_forward.3} parent=1 // pred_check_branch
      %32 = sbr.rel (0) target = $region29
    $region28: #{lstm_controller_forward.3} parent=1 // pred_region
      _
    $region29: #{lstm_controller_forward.3} parent=1 // pred_fallthru
      _
    // Predicated region
    $region30: #{lstm_controller_forward.3} parent=1 // pred_check
      _
    $region31: #{lstm_controller_forward.3} parent=1 // pred_check_branch
      %34 = sbr.rel (0) target = $region33
    $region32: #{lstm_controller_forward.3} parent=1 // pred_region
      _
    $region33: #{lstm_controller_forward.3} parent=1 // pred_fallthru
      _
    // Predicated region
    $region34: #{lstm_controller_forward.3} parent=1 // pred_check
      _
    $region35: #{lstm_controller_forward.3} parent=1 // pred_check_branch
      %36 = sbr.rel (0) target = $region37
    $region36: #{lstm_controller_forward.3} parent=1 // pred_region
      _
    $region37: #{lstm_controller_forward.3} parent=1 // pred_fallthru
      _
    // Predicated region
    $region38: #{lstm_controller_forward.3} parent=1 // pred_check
      _
    $region39: #{lstm_controller_forward.3} parent=1 // pred_check_branch
      %38 = sbr.rel (0) target = $region41
    $region40: #{lstm_controller_forward.3} parent=1 // pred_region
      _
    $region41: #{lstm_controller_forward.3} parent=1 // pred_fallthru
      _
    // Predicated region
    $region42: #{lstm_controller_forward.3} parent=1 // pred_check
      _
    $region43: #{lstm_controller_forward.3} parent=1 // pred_check_branch
      %40 = sbr.rel (0) target = $region45
    $region44: #{lstm_controller_forward.3} parent=1 // pred_region
      _
    $region45: #{lstm_controller_forward.3} parent=1 // pred_fallthru
      _
    %v41 = vld [vmem:[%s0] sm:$0xff]
    %v42 = vld [vmem:[%s0 + $0x8] sm:$0xff]
    %v43 = vld [vmem:[%s0 + $0x10] sm:$0xff]
    %v44 = vld [vmem:[%s0 + $0x18] sm:$0xff]
    %v45 = vld [vmem:[%s2] sm:$0xff]
    %v46 = vld [vmem:[%s2 + $0x8] sm:$0xff]
    %v47 = vld [vmem:[%s2 + $0x10] sm:$0xff]
    %v48 = vld [vmem:[%s2 + $0x18] sm:$0xff]
    %v49 = vld [vmem:[%s2 + $0x20] sm:$0xff]
    %v50 = vld [vmem:[%s2 + $0x28] sm:$0xff]
    %v51 = vld [vmem:[%s2 + $0x30] sm:$0xff]
    %v52 = vld [vmem:[%s2 + $0x38] sm:$0xff]
    %v53 = vld [vmem:[%s2 + $0x40] sm:$0xff]
    %v54 = vld [vmem:[%s2 + $0x48] sm:$0xff]
    %v55 = vld [vmem:[%s2 + $0x50] sm:$0xff]
    %v56 = vld [vmem:[%s2 + $0x58] sm:$0xff]
    %v57 = vld [vmem:[%s2 + $0x60] sm:$0xff]
    %v58 = vld [vmem:[%s2 + $0x68] sm:$0xff]
    %v59 = vld [vmem:[%s2 + $0x70] sm:$0xff]
    %v60 = vld [vmem:[%s2 + $0x78] sm:$0xff]
    %v61 = vld [vmem:[%s2 + $0x80] sm:$0xff]
    %v62 = vld [vmem:[%s2 + $0x88] sm:$0xff]
    %v63 = vld [vmem:[%s2 + $0x90] sm:$0xff]
    %v64 = vld [vmem:[%s2 + $0x98] sm:$0xff]
    %v65 = vld [vmem:[%s2 + $0xa0] sm:$0xff]
    %v66 = vld [vmem:[%s2 + $0xa8] sm:$0xff]
    %v67 = vld [vmem:[%s2 + $0xb0] sm:$0xff]
    %v68 = vld [vmem:[%s2 + $0xb8] sm:$0xff]
    %v69 = vld [vmem:[%s2 + $0xc0] sm:$0xff]
    %v70 = vld [vmem:[%s2 + $0xc8] sm:$0xff]
    %v71 = vld [vmem:[%s2 + $0xd0] sm:$0xff]
    %v72 = vld [vmem:[%s2 + $0xd8] sm:$0xff]
    %v73 = vld [vmem:[%s2 + $0xe0] sm:$0xff]
    %v74 = vld [vmem:[%s2 + $0xe8] sm:$0xff]
    %v75 = vld [vmem:[%s2 + $0xf0] sm:$0xff]
    %v76 = vld [vmem:[%s2 + $0xf8] sm:$0xff]
    %v77 = vld [vmem:[%s2 + $0x100] sm:$0xff]
    %v78 = vld [vmem:[%s2 + $0x108] sm:$0xff]
    %v79 = vld [vmem:[%s2 + $0x110] sm:$0xff]
    %v80 = vld [vmem:[%s2 + $0x118] sm:$0xff]
    %v81 = vld [vmem:[%s2 + $0x120] sm:$0xff]
    %v82 = vld [vmem:[%s2 + $0x128] sm:$0xff]
    %v83 = vld [vmem:[%s2 + $0x130] sm:$0xff]
    %v84 = vld [vmem:[%s2 + $0x138] sm:$0xff]
    %v85 = vld [vmem:[%s2 + $0x140] sm:$0xff]
    %v86 = vld [vmem:[%s2 + $0x148] sm:$0xff]
    %v87 = vld [vmem:[%s2 + $0x150] sm:$0xff]
    %v88 = vld [vmem:[%s2 + $0x158] sm:$0xff]
    %v89 = vld [vmem:[%s2 + $0x160] sm:$0xff]
    %v90 = vld [vmem:[%s2 + $0x168] sm:$0xff]
    %v91 = vld [vmem:[%s2 + $0x170] sm:$0xff]
    %v92 = vld [vmem:[%s2 + $0x178] sm:$0xff]
    %v93 = vld [vmem:[%s2 + $0x180] sm:$0xff]
    %v94 = vld [vmem:[%s5] sm:$0x1]
    %v96 = vlaneseq
    %v97 = vshrl.u32 %v96, 7
    %v98 = vsub.s32 0, %v97
    %v99 = vrot.slane %v94, %v98
    %vm101 = vcmask 64512
    %v103 = vsel %vm101, %v44, 0
    %105 = vmatprep.subr.mxu0 0.0
    %106 = vmatpush1.msra.mxu0 %v60
    %107 = vmatprep.subr.mxu0 0.0
    %108 = vmatpush1.msra.mxu0 %v59
    %109 = vmatprep.subr.mxu0 0.0
    %110 = vmatpush1.msra.mxu0 %v58
    %111 = vmatprep.subr.mxu0 0.0
    %112 = vmatpush1.msra.mxu0 %v57
    %113 = vmatprep.subr.mxu0 0.0
    %114 = vmatpush1.msra.mxu0 %v56
    %115 = vmatprep.subr.mxu0 0.0
    %116 = vmatpush1.msra.mxu0 %v55
    %117 = vmatprep.subr.mxu0 0.0
    %118 = vmatpush1.msra.mxu0 %v54
    %119 = vmatprep.subr.mxu0 0.0
    %120 = vmatpush1.msra.mxu0 %v53
    %121 = vmatprep.subr.mxu0 0.0
    %122 = vmatpush1.msra.mxu0 %v52
    %123 = vmatprep.subr.mxu0 0.0
    %124 = vmatpush1.msra.mxu0 %v51
    %125 = vmatprep.subr.mxu0 0.0
    %126 = vmatpush1.msra.mxu0 %v50
    %127 = vmatprep.subr.mxu0 0.0
    %128 = vmatpush1.msra.mxu0 %v49
    %129 = vmatprep.subr.mxu0 0.0
    %130 = vmatpush1.msra.mxu0 %v48
    %131 = vmatprep.subr.mxu0 0.0
    %132 = vmatpush1.msra.mxu0 %v47
    %133 = vmatprep.subr.mxu0 0.0
    %134 = vmatpush1.msra.mxu0 %v46
    %135 = vmatprep.subr.mxu0 0.0
    %136 = vmatpush1.msra.mxu0 %v45
    %137 = vmatprep.subr.mxu0 0.0
    %138 = vmatpush2.msra.mxu0 %v76
    %139 = vmatprep.subr.mxu0 0.0
    %140 = vmatpush2.msra.mxu0 %v75
    %141 = vmatprep.subr.mxu0 0.0
    %142 = vmatpush2.msra.mxu0 %v74
    %143 = vmatprep.subr.mxu0 0.0
    %144 = vmatpush2.msra.mxu0 %v73
    %145 = vmatprep.subr.mxu0 0.0
    %146 = vmatpush2.msra.mxu0 %v72
    %147 = vmatprep.subr.mxu0 0.0
    %148 = vmatpush2.msra.mxu0 %v71
    %149 = vmatprep.subr.mxu0 0.0
    %150 = vmatpush2.msra.mxu0 %v70
    %151 = vmatprep.subr.mxu0 0.0
    %152 = vmatpush2.msra.mxu0 %v69
    %153 = vmatprep.subr.mxu0 0.0
    %154 = vmatpush2.msra.mxu0 %v68
    %155 = vmatprep.subr.mxu0 0.0
    %156 = vmatpush2.msra.mxu0 %v67
    %157 = vmatprep.subr.mxu0 0.0
    %158 = vmatpush2.msra.mxu0 %v66
    %159 = vmatprep.subr.mxu0 0.0
    %160 = vmatpush2.msra.mxu0 %v65
    %161 = vmatprep.subr.mxu0 0.0
    %162 = vmatpush2.msra.mxu0 %v64
    %163 = vmatprep.subr.mxu0 0.0
    %164 = vmatpush2.msra.mxu0 %v63
    %165 = vmatprep.subr.mxu0 0.0
    %166 = vmatpush2.msra.mxu0 %v62
    %167 = vmatprep.subr.mxu0 0.0
    %168 = vmatpush2.msra.mxu0 %v61
    %169 = vmatprep.mubr.f32.mxu0 %v42
    %170 = vmatmul.mubr.f32.gmra.mxu0 %v41
    %v171 = vpop.f32.mrf.mxu0
    %v172 = vadd.f32 %v99, %v171
    %v173 = vpop.f32.mrf.mxu0
    %174 = vdwg.mxu0
    %175 = vmatprep.subr.mxu0 0.0
    %176 = vmatpush1.msra.mxu0 %v92
    %177 = vmatprep.subr.mxu0 0.0
    %178 = vmatpush1.msra.mxu0 %v91
    %179 = vmatprep.subr.mxu0 0.0
    %180 = vmatpush1.msra.mxu0 %v90
    %181 = vmatprep.subr.mxu0 0.0
    %182 = vmatpush1.msra.mxu0 %v89
    %183 = vmatprep.subr.mxu0 0.0
    %184 = vmatpush1.msra.mxu0 %v88
    %185 = vmatprep.subr.mxu0 0.0
    %186 = vmatpush1.msra.mxu0 %v87
    %187 = vmatprep.subr.mxu0 0.0
    %188 = vmatpush1.msra.mxu0 %v86
    %189 = vmatprep.subr.mxu0 0.0
    %190 = vmatpush1.msra.mxu0 %v85
    %191 = vmatprep.subr.mxu0 0.0
    %192 = vmatpush1.msra.mxu0 %v84
    %193 = vmatprep.subr.mxu0 0.0
    %194 = vmatpush1.msra.mxu0 %v83
    %195 = vmatprep.subr.mxu0 0.0
    %196 = vmatpush1.msra.mxu0 %v82
    %197 = vmatprep.subr.mxu0 0.0
    %198 = vmatpush1.msra.mxu0 %v81
    %199 = vmatprep.subr.mxu0 0.0
    %200 = vmatpush1.msra.mxu0 %v80
    %201 = vmatprep.subr.mxu0 0.0
    %202 = vmatpush1.msra.mxu0 %v79
    %203 = vmatprep.subr.mxu0 0.0
    %204 = vmatpush1.msra.mxu0 %v78
    %205 = vmatprep.subr.mxu0 0.0
    %206 = vmatpush1.msra.mxu0 %v77
    %207 = vmatprep.subr.mxu0 0.0
    %208 = vmatpush2.msra.mxu0 0.0
    %209 = vmatprep.subr.mxu0 0.0
    %210 = vmatpush2.msra.mxu0 0.0
    %211 = vmatprep.subr.mxu0 0.0
    %212 = vmatpush2.msra.mxu0 0.0
    %213 = vmatprep.subr.mxu0 0.0
    %214 = vmatpush2.msra.mxu0 0.0
    %215 = vmatprep.subr.mxu0 0.0
    %216 = vmatpush2.msra.mxu0 0.0
    %217 = vmatprep.subr.mxu0 0.0
    %218 = vmatpush2.msra.mxu0 0.0
    %219 = vmatprep.subr.mxu0 0.0
    %220 = vmatpush2.msra.mxu0 0.0
    %221 = vmatprep.subr.mxu0 0.0
    %222 = vmatpush2.msra.mxu0 0.0
    %223 = vmatprep.subr.mxu0 0.0
    %224 = vmatpush2.msra.mxu0 0.0
    %225 = vmatprep.subr.mxu0 0.0
    %226 = vmatpush2.msra.mxu0 0.0
    %227 = vmatprep.subr.mxu0 0.0
    %228 = vmatpush2.msra.mxu0 0.0
    %229 = vmatprep.subr.mxu0 0.0
    %230 = vmatpush2.msra.mxu0 0.0
    %231 = vmatprep.subr.mxu0 0.0
    %232 = vmatpush2.msra.mxu0 0.0
    %233 = vmatprep.subr.mxu0 0.0
    %234 = vmatpush2.msra.mxu0 0.0
    %235 = vmatprep.subr.mxu0 0.0
    %236 = vmatpush2.msra.mxu0 0.0
    %237 = vmatprep.subr.mxu0 0.0
    %238 = vmatpush2.msra.mxu0 %v93
    %239 = vmatprep.mubr.f32.mxu0 %v103
    %240 = vmatmul.mubr.f32.gmra.mxu0 %v43
    %v241 = vpop.f32.mrf.mxu0
    %v242 = vadd.f32 %v172, %v241
    %v243 = vpop.f32.mrf.mxu0
    %244 = vdwg.mxu0
    %v245 = vld [vmem:[%s1] sm:$0xff]
    %v246 = vld [vmem:[%s3] sm:$0x7]
    %248 = vset.pattern.permute.xlu0 0
    %249 = vperm.xlu0 %248, %v245
    %v250 = vpop.permute.xlu0 %249
    %v252 = vlaneseq
    %v253 = vshrl.u32 %v252, 7
    %v254 = vsub.s32 0, %v253
    %v255 = vrot.slane %v246, %v254
    %v256 = vmul.f32 %v250, %v255
    %v257 = vadd.f32 %v242, %v256
    %258 = vset.pattern.permute.xlu0 1
    %259 = vperm.xlu0 %258, %v245
    %v260 = vpop.permute.xlu0 %259
    %v262 = vlaneseq
    %v263 = vshrl.u32 %v262, 7
    %v264 = vsub.s32 1, %v263
    %v265 = vrot.slane %v246, %v264
    %v266 = vmul.f32 %v260, %v265
    %v267 = vadd.f32 %v257, %v266
    %268 = vset.pattern.permute.xlu0 2
    %269 = vperm.xlu0 %268, %v245
    %v270 = vpop.permute.xlu0 %269
    %v272 = vlaneseq
    %v273 = vshrl.u32 %v272, 7
    %v274 = vsub.s32 2, %v273
    %v275 = vrot.slane %v246, %v274
    %v276 = vmul.f32 %v270, %v275
    %v277 = vadd.f32 %v267, %v276
    %v278 = vld [vmem:[%s4] sm:$0xff]
    %v279 = vld [vmem:[%s4 + $0x8] sm:$0xff]
    %v280 = vld [vmem:[%s4 + $0x10] sm:$0xff]
    %v281 = vld [vmem:[%s4 + $0x18] sm:$0xff]
    %vm282 = vcmask 261120
    %v284 = vsel %vm282, 0.0, 0
    %286 = vmatprep.subr.mxu0 0.0
    %287 = vmatpush1.msra.mxu0 0.0
    %288 = vmatprep.subr.mxu0 0.0
    %289 = vmatpush1.msra.mxu0 0.0
    %290 = vmatprep.subr.mxu0 0.0
    %291 = vmatpush1.msra.mxu0 0.0
    %292 = vmatprep.subr.mxu0 0.0
    %293 = vmatpush1.msra.mxu0 0.0
    %294 = vmatprep.subr.mxu0 0.0
    %295 = vmatpush1.msra.mxu0 0.0
    %296 = vmatprep.subr.mxu0 0.0
    %297 = vmatpush1.msra.mxu0 0.0
    %298 = vmatprep.subr.mxu0 0.0
    %299 = vmatpush1.msra.mxu0 0.0
    %300 = vmatprep.subr.mxu0 0.0
    %301 = vmatpush1.msra.mxu0 0.0
    %302 = vmatprep.subr.mxu0 0.0
    %303 = vmatpush1.msra.mxu0 0.0
    %304 = vmatprep.subr.mxu0 0.0
    %305 = vmatpush1.msra.mxu0 0.0
    %306 = vmatprep.subr.mxu0 0.0
    %307 = vmatpush1.msra.mxu0 0.0
    %308 = vmatprep.subr.mxu0 0.0
    %309 = vmatpush1.msra.mxu0 0.0
    %310 = vmatprep.subr.mxu0 0.0
    %311 = vmatpush1.msra.mxu0 %v281
    %312 = vmatprep.subr.mxu0 0.0
    %313 = vmatpush1.msra.mxu0 %v280
    %314 = vmatprep.subr.mxu0 0.0
    %315 = vmatpush1.msra.mxu0 %v279
    %316 = vmatprep.subr.mxu0 0.0
    %317 = vmatpush1.msra.mxu0 %v278
    %318 = vmatprep.subr.mxu0 0.0
    %319 = vmatpush2.msra.mxu0 0.0
    %320 = vmatprep.subr.mxu0 0.0
    %321 = vmatpush2.msra.mxu0 0.0
    %322 = vmatprep.subr.mxu0 0.0
    %323 = vmatpush2.msra.mxu0 0.0
    %324 = vmatprep.subr.mxu0 0.0
    %325 = vmatpush2.msra.mxu0 0.0
    %326 = vmatprep.subr.mxu0 0.0
    %327 = vmatpush2.msra.mxu0 0.0
    %328 = vmatprep.subr.mxu0 0.0
    %329 = vmatpush2.msra.mxu0 0.0
    %330 = vmatprep.subr.mxu0 0.0
    %331 = vmatpush2.msra.mxu0 0.0
    %332 = vmatprep.subr.mxu0 0.0
    %333 = vmatpush2.msra.mxu0 0.0
    %334 = vmatprep.subr.mxu0 0.0
    %335 = vmatpush2.msra.mxu0 0.0
    %336 = vmatprep.subr.mxu0 0.0
    %337 = vmatpush2.msra.mxu0 0.0
    %338 = vmatprep.subr.mxu0 0.0
    %339 = vmatpush2.msra.mxu0 0.0
    %340 = vmatprep.subr.mxu0 0.0
    %341 = vmatpush2.msra.mxu0 0.0
    %342 = vmatprep.subr.mxu0 0.0
    %343 = vmatpush2.msra.mxu0 0.0
    %344 = vmatprep.subr.mxu0 0.0
    %345 = vmatpush2.msra.mxu0 0.0
    %346 = vmatprep.subr.mxu0 0.0
    %347 = vmatpush2.msra.mxu0 0.0
    %348 = vmatprep.subr.mxu0 0.0
    %349 = vmatpush2.msra.mxu0 0.0
    %350 = vmatprep.mubr.f32.mxu0 0.0
    %351 = vmatmul.mubr.f32.gmra.mxu0 %v284
    %v352 = vpop.f32.mrf.mxu0
    %v353 = vadd.f32 0.0, %v352
    %v354 = vpop.f32.mrf.mxu0
    %355 = vdwg.mxu0
    %v356 = vadd.f32 %v277, %v353
    %v357 = vxor.u32 %v356, 2147483648
    %v358 = vmul.f32 %v357, 1.442695
    %v359 = vpow.pop %v358
    %v360 = vadd.f32 %v359, 1.0
    %v361 = vrcp.pop %v360
    %v362 = vmul.f32 1.0, %v361
    %v363 = vtanh.pop %v356
    %v364 = vmul.f32 %v362, 0.0
    %366 = vrot.lane.b32.xlu0 %v363, 64
    %v367 = vpop.permute.xlu0 %366
    %v369 = vmul.f32 %v362, %v367
    %371 = vrot.lane.b32.xlu0 %v369, 32
    %v372 = vpop.permute.xlu0 %371
    %v374 = vadd.f32 %v364, %v372
    %v375 = vtanh.pop %v374
    %377 = vrot.lane.b32.xlu0 %v375, 64
    %v378 = vpop.permute.xlu0 %377
    %v380 = vmul.f32 %v362, %v378
    %382 = vrot.lane.b32.xlu0 %v380, 32
    %v383 = vpop.permute.xlu0 %382
    %vm385 = vcmask 253952
    %386 = vst.msk [vmem:[#allocation2] sm:$0x1] %vm385, %v383
    %v387 = vsel %vm282, %v383, 0
    %389 = vmatprep.subr.mxu0 0.0
    %390 = vmatpush1.msra.mxu0 0.0
    %391 = vmatprep.subr.mxu0 0.0
    %392 = vmatpush1.msra.mxu0 0.0
    %393 = vmatprep.subr.mxu0 0.0
    %394 = vmatpush1.msra.mxu0 0.0
    %395 = vmatprep.subr.mxu0 0.0
    %396 = vmatpush1.msra.mxu0 0.0
    %397 = vmatprep.subr.mxu0 0.0
    %398 = vmatpush1.msra.mxu0 0.0
    %399 = vmatprep.subr.mxu0 0.0
    %400 = vmatpush1.msra.mxu0 0.0
    %401 = vmatprep.subr.mxu0 0.0
    %402 = vmatpush1.msra.mxu0 0.0
    %403 = vmatprep.subr.mxu0 0.0
    %404 = vmatpush1.msra.mxu0 0.0
    %405 = vmatprep.subr.mxu0 0.0
    %406 = vmatpush1.msra.mxu0 0.0
    %407 = vmatprep.subr.mxu0 0.0
    %408 = vmatpush1.msra.mxu0 0.0
    %409 = vmatprep.subr.mxu0 0.0
    %410 = vmatpush1.msra.mxu0 0.0
    %411 = vmatprep.subr.mxu0 0.0
    %412 = vmatpush1.msra.mxu0 0.0
    %413 = vmatprep.subr.mxu0 0.0
    %414 = vmatpush1.msra.mxu0 %v281
    %415 = vmatprep.subr.mxu0 0.0
    %416 = vmatpush1.msra.mxu0 %v280
    %417 = vmatprep.subr.mxu0 0.0
    %418 = vmatpush1.msra.mxu0 %v279
    %419 = vmatprep.subr.mxu0 0.0
    %420 = vmatpush1.msra.mxu0 %v278
    %421 = vmatprep.subr.mxu0 0.0
    %422 = vmatpush2.msra.mxu0 0.0
    %423 = vmatprep.subr.mxu0 0.0
    %424 = vmatpush2.msra.mxu0 0.0
    %425 = vmatprep.subr.mxu0 0.0
    %426 = vmatpush2.msra.mxu0 0.0
    %427 = vmatprep.subr.mxu0 0.0
    %428 = vmatpush2.msra.mxu0 0.0
    %429 = vmatprep.subr.mxu0 0.0
    %430 = vmatpush2.msra.mxu0 0.0
    %431 = vmatprep.subr.mxu0 0.0
    %432 = vmatpush2.msra.mxu0 0.0
    %433 = vmatprep.subr.mxu0 0.0
    %434 = vmatpush2.msra.mxu0 0.0
    %435 = vmatprep.subr.mxu0 0.0
    %436 = vmatpush2.msra.mxu0 0.0
    %437 = vmatprep.subr.mxu0 0.0
    %438 = vmatpush2.msra.mxu0 0.0
    %439 = vmatprep.subr.mxu0 0.0
    %440 = vmatpush2.msra.mxu0 0.0
    %441 = vmatprep.subr.mxu0 0.0
    %442 = vmatpush2.msra.mxu0 0.0
    %443 = vmatprep.subr.mxu0 0.0
    %444 = vmatpush2.msra.mxu0 0.0
    %445 = vmatprep.subr.mxu0 0.0
    %446 = vmatpush2.msra.mxu0 0.0
    %447 = vmatprep.subr.mxu0 0.0
    %448 = vmatpush2.msra.mxu0 0.0
    %449 = vmatprep.subr.mxu0 0.0
    %450 = vmatpush2.msra.mxu0 0.0
    %451 = vmatprep.subr.mxu0 0.0
    %452 = vmatpush2.msra.mxu0 0.0
    %453 = vmatprep.mubr.f32.mxu0 0.0
    %454 = vmatmul.mubr.f32.gmra.mxu0 %v387
    %v455 = vpop.f32.mrf.mxu0
    %v456 = vadd.f32 0.0, %v455
    %v457 = vpop.f32.mrf.mxu0
    %458 = vdwg.mxu0
    %v460 = vrot.slane %v456, 7
    %v462 = vadd.f32 %v277, %v460
    %v463 = vxor.u32 %v462, 2147483648
    %v464 = vmul.f32 %v463, 1.442695
    %v465 = vpow.pop %v464
    %v466 = vadd.f32 %v465, 1.0
    %v467 = vrcp.pop %v466
    %v468 = vmul.f32 1.0, %v467
    %v469 = vtanh.pop %v462
    %v471 = vrot.slane %v374, 7
    %v473 = vmul.f32 %v468, %v471
    %475 = vrot.lane.b32.xlu0 %v469, 64
    %v476 = vpop.permute.xlu0 %475
    %v478 = vmul.f32 %v468, %v476
    %480 = vrot.lane.b32.xlu0 %v478, 32
    %v481 = vpop.permute.xlu0 %480
    %v483 = vadd.f32 %v473, %v481
    %v484 = vtanh.pop %v483
    %486 = vrot.lane.b32.xlu0 %v484, 64
    %v487 = vpop.permute.xlu0 %486
    %v489 = vmul.f32 %v468, %v487
    %491 = vrot.lane.b32.xlu0 %v489, 32
    %v492 = vpop.permute.xlu0 %491
    %vm494 = vcmask 254977
    %495 = vst.msk [vmem:[#allocation2] sm:$0x2] %vm494, %v492
    %v496 = vrot.slane %v489, 1
    %497 = vrot.lane.b32.xlu0 %v496, 32
    %v498 = vpop.permute.xlu0 %497
    %v499 = vsel %vm282, %v498, 0
    %501 = vmatprep.subr.mxu0 0.0
    %502 = vmatpush1.msra.mxu0 0.0
    %503 = vmatprep.subr.mxu0 0.0
    %504 = vmatpush1.msra.mxu0 0.0
    %505 = vmatprep.subr.mxu0 0.0
    %506 = vmatpush1.msra.mxu0 0.0
    %507 = vmatprep.subr.mxu0 0.0
    %508 = vmatpush1.msra.mxu0 0.0
    %509 = vmatprep.subr.mxu0 0.0
    %510 = vmatpush1.msra.mxu0 0.0
    %511 = vmatprep.subr.mxu0 0.0
    %512 = vmatpush1.msra.mxu0 0.0
    %513 = vmatprep.subr.mxu0 0.0
    %514 = vmatpush1.msra.mxu0 0.0
    %515 = vmatprep.subr.mxu0 0.0
    %516 = vmatpush1.msra.mxu0 0.0
    %517 = vmatprep.subr.mxu0 0.0
    %518 = vmatpush1.msra.mxu0 0.0
    %519 = vmatprep.subr.mxu0 0.0
    %520 = vmatpush1.msra.mxu0 0.0
    %521 = vmatprep.subr.mxu0 0.0
    %522 = vmatpush1.msra.mxu0 0.0
    %523 = vmatprep.subr.mxu0 0.0
    %524 = vmatpush1.msra.mxu0 0.0
    %525 = vmatprep.subr.mxu0 0.0
    %526 = vmatpush1.msra.mxu0 %v281
    %527 = vmatprep.subr.mxu0 0.0
    %528 = vmatpush1.msra.mxu0 %v280
    %529 = vmatprep.subr.mxu0 0.0
    %530 = vmatpush1.msra.mxu0 %v279
    %531 = vmatprep.subr.mxu0 0.0
    %532 = vmatpush1.msra.mxu0 %v278
    %533 = vmatprep.subr.mxu0 0.0
    %534 = vmatpush2.msra.mxu0 0.0
    %535 = vmatprep.subr.mxu0 0.0
    %536 = vmatpush2.msra.mxu0 0.0
    %537 = vmatprep.subr.mxu0 0.0
    %538 = vmatpush2.msra.mxu0 0.0
    %539 = vmatprep.subr.mxu0 0.0
    %540 = vmatpush2.msra.mxu0 0.0
    %541 = vmatprep.subr.mxu0 0.0
    %542 = vmatpush2.msra.mxu0 0.0
    %543 = vmatprep.subr.mxu0 0.0
    %544 = vmatpush2.msra.mxu0 0.0
    %545 = vmatprep.subr.mxu0 0.0
    %546 = vmatpush2.msra.mxu0 0.0
    %547 = vmatprep.subr.mxu0 0.0
    %548 = vmatpush2.msra.mxu0 0.0
    %549 = vmatprep.subr.mxu0 0.0
    %550 = vmatpush2.msra.mxu0 0.0
    %551 = vmatprep.subr.mxu0 0.0
    %552 = vmatpush2.msra.mxu0 0.0
    %553 = vmatprep.subr.mxu0 0.0
    %554 = vmatpush2.msra.mxu0 0.0
    %555 = vmatprep.subr.mxu0 0.0
    %556 = vmatpush2.msra.mxu0 0.0
    %557 = vmatprep.subr.mxu0 0.0
    %558 = vmatpush2.msra.mxu0 0.0
    %559 = vmatprep.subr.mxu0 0.0
    %560 = vmatpush2.msra.mxu0 0.0
    %561 = vmatprep.subr.mxu0 0.0
    %562 = vmatpush2.msra.mxu0 0.0
    %563 = vmatprep.subr.mxu0 0.0
    %564 = vmatpush2.msra.mxu0 0.0
    %565 = vmatprep.mubr.f32.mxu0 0.0
    %566 = vmatmul.mubr.f32.gmra.mxu0 %v499
    %v567 = vpop.f32.mrf.mxu0
    %v568 = vadd.f32 0.0, %v567
    %v569 = vpop.f32.mrf.mxu0
    %570 = vdwg.mxu0
    %v572 = vrot.slane %v568, 6
    %v574 = vadd.f32 %v277, %v572
    %v575 = vxor.u32 %v574, 2147483648
    %v576 = vmul.f32 %v575, 1.442695
    %v577 = vpow.pop %v576
    %v578 = vadd.f32 %v577, 1.0
    %v579 = vrcp.pop %v578
    %v580 = vmul.f32 1.0, %v579
    %v581 = vtanh.pop %v574
    %v583 = vrot.slane %v483, 7
    %v585 = vmul.f32 %v580, %v583
    %587 = vrot.lane.b32.xlu0 %v581, 64
    %v588 = vpop.permute.xlu0 %587
    %v590 = vmul.f32 %v580, %v588
    %592 = vrot.lane.b32.xlu0 %v590, 32
    %v593 = vpop.permute.xlu0 %592
    %v595 = vadd.f32 %v585, %v593
    %v596 = vtanh.pop %v595
    %598 = vrot.lane.b32.xlu0 %v596, 64
    %v599 = vpop.permute.xlu0 %598
    %v601 = vmul.f32 %v580, %v599
    %603 = vrot.lane.b32.xlu0 %v601, 32
    %v604 = vpop.permute.xlu0 %603
    %vm606 = vcmask 256002
    %607 = vst.msk [vmem:[#allocation2] sm:$0x4] %vm606, %v604
    %v608 = vrot.slane %v601, 2
    %609 = vrot.lane.b32.xlu0 %v608, 32
    %v610 = vpop.permute.xlu0 %609
    %v611 = vsel %vm282, %v610, 0
    %613 = vmatprep.subr.mxu0 0.0
    %614 = vmatpush1.msra.mxu0 0.0
    %615 = vmatprep.subr.mxu0 0.0
    %616 = vmatpush1.msra.mxu0 0.0
    %617 = vmatprep.subr.mxu0 0.0
    %618 = vmatpush1.msra.mxu0 0.0
    %619 = vmatprep.subr.mxu0 0.0
    %620 = vmatpush1.msra.mxu0 0.0
    %621 = vmatprep.subr.mxu0 0.0
    %622 = vmatpush1.msra.mxu0 0.0
    %623 = vmatprep.subr.mxu0 0.0
    %624 = vmatpush1.msra.mxu0 0.0
    %625 = vmatprep.subr.mxu0 0.0
    %626 = vmatpush1.msra.mxu0 0.0
    %627 = vmatprep.subr.mxu0 0.0
    %628 = vmatpush1.msra.mxu0 0.0
    %629 = vmatprep.subr.mxu0 0.0
    %630 = vmatpush1.msra.mxu0 0.0
    %631 = vmatprep.subr.mxu0 0.0
    %632 = vmatpush1.msra.mxu0 0.0
    %633 = vmatprep.subr.mxu0 0.0
    %634 = vmatpush1.msra.mxu0 0.0
    %635 = vmatprep.subr.mxu0 0.0
    %636 = vmatpush1.msra.mxu0 0.0
    %637 = vmatprep.subr.mxu0 0.0
    %638 = vmatpush1.msra.mxu0 %v281
    %639 = vmatprep.subr.mxu0 0.0
    %640 = vmatpush1.msra.mxu0 %v280
    %641 = vmatprep.subr.mxu0 0.0
    %642 = vmatpush1.msra.mxu0 %v279
    %643 = vmatprep.subr.mxu0 0.0
    %644 = vmatpush1.msra.mxu0 %v278
    %645 = vmatprep.subr.mxu0 0.0
    %646 = vmatpush2.msra.mxu0 0.0
    %647 = vmatprep.subr.mxu0 0.0
    %648 = vmatpush2.msra.mxu0 0.0
    %649 = vmatprep.subr.mxu0 0.0
    %650 = vmatpush2.msra.mxu0 0.0
    %651 = vmatprep.subr.mxu0 0.0
    %652 = vmatpush2.msra.mxu0 0.0
    %653 = vmatprep.subr.mxu0 0.0
    %654 = vmatpush2.msra.mxu0 0.0
    %655 = vmatprep.subr.mxu0 0.0
    %656 = vmatpush2.msra.mxu0 0.0
    %657 = vmatprep.subr.mxu0 0.0
    %658 = vmatpush2.msra.mxu0 0.0
    %659 = vmatprep.subr.mxu0 0.0
    %660 = vmatpush2.msra.mxu0 0.0
    %661 = vmatprep.subr.mxu0 0.0
    %662 = vmatpush2.msra.mxu0 0.0
    %663 = vmatprep.subr.mxu0 0.0
    %664 = vmatpush2.msra.mxu0 0.0
    %665 = vmatprep.subr.mxu0 0.0
    %666 = vmatpush2.msra.mxu0 0.0
    %667 = vmatprep.subr.mxu0 0.0
    %668 = vmatpush2.msra.mxu0 0.0
    %669 = vmatprep.subr.mxu0 0.0
    %670 = vmatpush2.msra.mxu0 0.0
    %671 = vmatprep.subr.mxu0 0.0
    %672 = vmatpush2.msra.mxu0 0.0
    %673 = vmatprep.subr.mxu0 0.0
    %674 = vmatpush2.msra.mxu0 0.0
    %675 = vmatprep.subr.mxu0 0.0
    %676 = vmatpush2.msra.mxu0 0.0
    %677 = vmatprep.mubr.f32.mxu0 0.0
    %678 = vmatmul.mubr.f32.gmra.mxu0 %v611
    %v679 = vpop.f32.mrf.mxu0
    %v680 = vadd.f32 0.0, %v679
    %v681 = vpop.f32.mrf.mxu0
    %682 = vdwg.mxu0
    %v684 = vrot.slane %v680, 5
    %v686 = vadd.f32 %v277, %v684
    %v687 = vxor.u32 %v686, 2147483648
    %v688 = vmul.f32 %v687, 1.442695
    %v689 = vpow.pop %v688
    %v690 = vadd.f32 %v689, 1.0
    %v691 = vrcp.pop %v690
    %v692 = vmul.f32 1.0, %v691
    %v693 = vtanh.pop %v686
    %v695 = vrot.slane %v595, 7
    %v697 = vmul.f32 %v692, %v695
    %699 = vrot.lane.b32.xlu0 %v693, 64
    %v700 = vpop.permute.xlu0 %699
    %v702 = vmul.f32 %v692, %v700
    %704 = vrot.lane.b32.xlu0 %v702, 32
    %v705 = vpop.permute.xlu0 %704
    %v707 = vadd.f32 %v697, %v705
    %v708 = vtanh.pop %v707
    %710 = vrot.lane.b32.xlu0 %v708, 64
    %v711 = vpop.permute.xlu0 %710
    %v713 = vmul.f32 %v692, %v711
    %715 = vrot.lane.b32.xlu0 %v713, 32
    %v716 = vpop.permute.xlu0 %715
    %vm718 = vcmask 257027
    %719 = vst.msk [vmem:[#allocation2] sm:$0x8] %vm718, %v716
    %v720 = vrot.slane %v713, 3
    %721 = vrot.lane.b32.xlu0 %v720, 32
    %v722 = vpop.permute.xlu0 %721
    %v723 = vsel %vm282, %v722, 0
    %725 = vmatprep.subr.mxu0 0.0
    %726 = vmatpush1.msra.mxu0 0.0
    %727 = vmatprep.subr.mxu0 0.0
    %728 = vmatpush1.msra.mxu0 0.0
    %729 = vmatprep.subr.mxu0 0.0
    %730 = vmatpush1.msra.mxu0 0.0
    %731 = vmatprep.subr.mxu0 0.0
    %732 = vmatpush1.msra.mxu0 0.0
    %733 = vmatprep.subr.mxu0 0.0
    %734 = vmatpush1.msra.mxu0 0.0
    %735 = vmatprep.subr.mxu0 0.0
    %736 = vmatpush1.msra.mxu0 0.0
    %737 = vmatprep.subr.mxu0 0.0
    %738 = vmatpush1.msra.mxu0 0.0
    %739 = vmatprep.subr.mxu0 0.0
    %740 = vmatpush1.msra.mxu0 0.0
    %741 = vmatprep.subr.mxu0 0.0
    %742 = vmatpush1.msra.mxu0 0.0
    %743 = vmatprep.subr.mxu0 0.0
    %744 = vmatpush1.msra.mxu0 0.0
    %745 = vmatprep.subr.mxu0 0.0
    %746 = vmatpush1.msra.mxu0 0.0
    %747 = vmatprep.subr.mxu0 0.0
    %748 = vmatpush1.msra.mxu0 0.0
    %749 = vmatprep.subr.mxu0 0.0
    %750 = vmatpush1.msra.mxu0 %v281
    %751 = vmatprep.subr.mxu0 0.0
    %752 = vmatpush1.msra.mxu0 %v280
    %753 = vmatprep.subr.mxu0 0.0
    %754 = vmatpush1.msra.mxu0 %v279
    %755 = vmatprep.subr.mxu0 0.0
    %756 = vmatpush1.msra.mxu0 %v278
    %757 = vmatprep.subr.mxu0 0.0
    %758 = vmatpush2.msra.mxu0 0.0
    %759 = vmatprep.subr.mxu0 0.0
    %760 = vmatpush2.msra.mxu0 0.0
    %761 = vmatprep.subr.mxu0 0.0
    %762 = vmatpush2.msra.mxu0 0.0
    %763 = vmatprep.subr.mxu0 0.0
    %764 = vmatpush2.msra.mxu0 0.0
    %765 = vmatprep.subr.mxu0 0.0
    %766 = vmatpush2.msra.mxu0 0.0
    %767 = vmatprep.subr.mxu0 0.0
    %768 = vmatpush2.msra.mxu0 0.0
    %769 = vmatprep.subr.mxu0 0.0
    %770 = vmatpush2.msra.mxu0 0.0
    %771 = vmatprep.subr.mxu0 0.0
    %772 = vmatpush2.msra.mxu0 0.0
    %773 = vmatprep.subr.mxu0 0.0
    %774 = vmatpush2.msra.mxu0 0.0
    %775 = vmatprep.subr.mxu0 0.0
    %776 = vmatpush2.msra.mxu0 0.0
    %777 = vmatprep.subr.mxu0 0.0
    %778 = vmatpush2.msra.mxu0 0.0
    %779 = vmatprep.subr.mxu0 0.0
    %780 = vmatpush2.msra.mxu0 0.0
    %781 = vmatprep.subr.mxu0 0.0
    %782 = vmatpush2.msra.mxu0 0.0
    %783 = vmatprep.subr.mxu0 0.0
    %784 = vmatpush2.msra.mxu0 0.0
    %785 = vmatprep.subr.mxu0 0.0
    %786 = vmatpush2.msra.mxu0 0.0
    %787 = vmatprep.subr.mxu0 0.0
    %788 = vmatpush2.msra.mxu0 0.0
    %789 = vmatprep.mubr.f32.mxu0 0.0
    %790 = vmatmul.mubr.f32.gmra.mxu0 %v723
    %v791 = vpop.f32.mrf.mxu0
    %v792 = vadd.f32 0.0, %v791
    %v793 = vpop.f32.mrf.mxu0
    %794 = vdwg.mxu0
    %v796 = vrot.slane %v792, 4
    %v798 = vadd.f32 %v277, %v796
    %v799 = vxor.u32 %v798, 2147483648
    %v800 = vmul.f32 %v799, 1.442695
    %v801 = vpow.pop %v800
    %v802 = vadd.f32 %v801, 1.0
    %v803 = vrcp.pop %v802
    %v804 = vmul.f32 1.0, %v803
    %v805 = vtanh.pop %v798
    %v807 = vrot.slane %v707, 7
    %v809 = vmul.f32 %v804, %v807
    %811 = vrot.lane.b32.xlu0 %v805, 64
    %v812 = vpop.permute.xlu0 %811
    %v814 = vmul.f32 %v804, %v812
    %816 = vrot.lane.b32.xlu0 %v814, 32
    %v817 = vpop.permute.xlu0 %816
    %v819 = vadd.f32 %v809, %v817
    %v820 = vtanh.pop %v819
    %822 = vrot.lane.b32.xlu0 %v820, 64
    %v823 = vpop.permute.xlu0 %822
    %v825 = vmul.f32 %v804, %v823
    %827 = vrot.lane.b32.xlu0 %v825, 32
    %v828 = vpop.permute.xlu0 %827
    %vm830 = vcmask 258052
    %831 = vst.msk [vmem:[#allocation2] sm:$0x10] %vm830, %v828
    %v832 = vrot.slane %v825, 4
    %833 = vrot.lane.b32.xlu0 %v832, 32
    %v834 = vpop.permute.xlu0 %833
    %v835 = vsel %vm282, %v834, 0
    %837 = vmatprep.subr.mxu0 0.0
    %838 = vmatpush1.msra.mxu0 0.0
    %839 = vmatprep.subr.mxu0 0.0
    %840 = vmatpush1.msra.mxu0 0.0
    %841 = vmatprep.subr.mxu0 0.0
    %842 = vmatpush1.msra.mxu0 0.0
    %843 = vmatprep.subr.mxu0 0.0
    %844 = vmatpush1.msra.mxu0 0.0
    %845 = vmatprep.subr.mxu0 0.0
    %846 = vmatpush1.msra.mxu0 0.0
    %847 = vmatprep.subr.mxu0 0.0
    %848 = vmatpush1.msra.mxu0 0.0
    %849 = vmatprep.subr.mxu0 0.0
    %850 = vmatpush1.msra.mxu0 0.0
    %851 = vmatprep.subr.mxu0 0.0
    %852 = vmatpush1.msra.mxu0 0.0
    %853 = vmatprep.subr.mxu0 0.0
    %854 = vmatpush1.msra.mxu0 0.0
    %855 = vmatprep.subr.mxu0 0.0
    %856 = vmatpush1.msra.mxu0 0.0
    %857 = vmatprep.subr.mxu0 0.0
    %858 = vmatpush1.msra.mxu0 0.0
    %859 = vmatprep.subr.mxu0 0.0
    %860 = vmatpush1.msra.mxu0 0.0
    %861 = vmatprep.subr.mxu0 0.0
    %862 = vmatpush1.msra.mxu0 %v281
    %863 = vmatprep.subr.mxu0 0.0
    %864 = vmatpush1.msra.mxu0 %v280
    %865 = vmatprep.subr.mxu0 0.0
    %866 = vmatpush1.msra.mxu0 %v279
    %867 = vmatprep.subr.mxu0 0.0
    %868 = vmatpush1.msra.mxu0 %v278
    %869 = vmatprep.subr.mxu0 0.0
    %870 = vmatpush2.msra.mxu0 0.0
    %871 = vmatprep.subr.mxu0 0.0
    %872 = vmatpush2.msra.mxu0 0.0
    %873 = vmatprep.subr.mxu0 0.0
    %874 = vmatpush2.msra.mxu0 0.0
    %875 = vmatprep.subr.mxu0 0.0
    %876 = vmatpush2.msra.mxu0 0.0
    %877 = vmatprep.subr.mxu0 0.0
    %878 = vmatpush2.msra.mxu0 0.0
    %879 = vmatprep.subr.mxu0 0.0
    %880 = vmatpush2.msra.mxu0 0.0
    %881 = vmatprep.subr.mxu0 0.0
    %882 = vmatpush2.msra.mxu0 0.0
    %883 = vmatprep.subr.mxu0 0.0
    %884 = vmatpush2.msra.mxu0 0.0
    %885 = vmatprep.subr.mxu0 0.0
    %886 = vmatpush2.msra.mxu0 0.0
    %887 = vmatprep.subr.mxu0 0.0
    %888 = vmatpush2.msra.mxu0 0.0
    %889 = vmatprep.subr.mxu0 0.0
    %890 = vmatpush2.msra.mxu0 0.0
    %891 = vmatprep.subr.mxu0 0.0
    %892 = vmatpush2.msra.mxu0 0.0
    %893 = vmatprep.subr.mxu0 0.0
    %894 = vmatpush2.msra.mxu0 0.0
    %895 = vmatprep.subr.mxu0 0.0
    %896 = vmatpush2.msra.mxu0 0.0
    %897 = vmatprep.subr.mxu0 0.0
    %898 = vmatpush2.msra.mxu0 0.0
    %899 = vmatprep.subr.mxu0 0.0
    %900 = vmatpush2.msra.mxu0 0.0
    %901 = vmatprep.mubr.f32.mxu0 0.0
    %902 = vmatmul.mubr.f32.gmra.mxu0 %v835
    %v903 = vpop.f32.mrf.mxu0
    %v904 = vadd.f32 0.0, %v903
    %v905 = vpop.f32.mrf.mxu0
    %906 = vdwg.mxu0
    %v908 = vrot.slane %v904, 3
    %v910 = vadd.f32 %v277, %v908
    %v911 = vxor.u32 %v910, 2147483648
    %v912 = vmul.f32 %v911, 1.442695
    %v913 = vpow.pop %v912
    %v914 = vadd.f32 %v913, 1.0
    %v915 = vrcp.pop %v914
    %v916 = vmul.f32 1.0, %v915
    %v917 = vtanh.pop %v910
    %v919 = vrot.slane %v819, 7
    %v921 = vmul.f32 %v916, %v919
    %923 = vrot.lane.b32.xlu0 %v917, 64
    %v924 = vpop.permute.xlu0 %923
    %v926 = vmul.f32 %v916, %v924
    %928 = vrot.lane.b32.xlu0 %v926, 32
    %v929 = vpop.permute.xlu0 %928
    %v931 = vadd.f32 %v921, %v929
    %v932 = vtanh.pop %v931
    %934 = vrot.lane.b32.xlu0 %v932, 64
    %v935 = vpop.permute.xlu0 %934
    %v937 = vmul.f32 %v916, %v935
    %939 = vrot.lane.b32.xlu0 %v937, 32
    %v940 = vpop.permute.xlu0 %939
    %vm942 = vcmask 259077
    %943 = vst.msk [vmem:[#allocation2] sm:$0x20] %vm942, %v940
    %v944 = vrot.slane %v937, 5
    %945 = vrot.lane.b32.xlu0 %v944, 32
    %v946 = vpop.permute.xlu0 %945
    %v947 = vsel %vm282, %v946, 0
    %949 = vmatprep.subr.mxu0 0.0
    %950 = vmatpush1.msra.mxu0 0.0
    %951 = vmatprep.subr.mxu0 0.0
    %952 = vmatpush1.msra.mxu0 0.0
    %953 = vmatprep.subr.mxu0 0.0
    %954 = vmatpush1.msra.mxu0 0.0
    %955 = vmatprep.subr.mxu0 0.0
    %956 = vmatpush1.msra.mxu0 0.0
    %957 = vmatprep.subr.mxu0 0.0
    %958 = vmatpush1.msra.mxu0 0.0
    %959 = vmatprep.subr.mxu0 0.0
    %960 = vmatpush1.msra.mxu0 0.0
    %961 = vmatprep.subr.mxu0 0.0
    %962 = vmatpush1.msra.mxu0 0.0
    %963 = vmatprep.subr.mxu0 0.0
    %964 = vmatpush1.msra.mxu0 0.0
    %965 = vmatprep.subr.mxu0 0.0
    %966 = vmatpush1.msra.mxu0 0.0
    %967 = vmatprep.subr.mxu0 0.0
    %968 = vmatpush1.msra.mxu0 0.0
    %969 = vmatprep.subr.mxu0 0.0
    %970 = vmatpush1.msra.mxu0 0.0
    %971 = vmatprep.subr.mxu0 0.0
    %972 = vmatpush1.msra.mxu0 0.0
    %973 = vmatprep.subr.mxu0 0.0
    %974 = vmatpush1.msra.mxu0 %v281
    %975 = vmatprep.subr.mxu0 0.0
    %976 = vmatpush1.msra.mxu0 %v280
    %977 = vmatprep.subr.mxu0 0.0
    %978 = vmatpush1.msra.mxu0 %v279
    %979 = vmatprep.subr.mxu0 0.0
    %980 = vmatpush1.msra.mxu0 %v278
    %981 = vmatprep.subr.mxu0 0.0
    %982 = vmatpush2.msra.mxu0 0.0
    %983 = vmatprep.subr.mxu0 0.0
    %984 = vmatpush2.msra.mxu0 0.0
    %985 = vmatprep.subr.mxu0 0.0
    %986 = vmatpush2.msra.mxu0 0.0
    %987 = vmatprep.subr.mxu0 0.0
    %988 = vmatpush2.msra.mxu0 0.0
    %989 = vmatprep.subr.mxu0 0.0
    %990 = vmatpush2.msra.mxu0 0.0
    %991 = vmatprep.subr.mxu0 0.0
    %992 = vmatpush2.msra.mxu0 0.0
    %993 = vmatprep.subr.mxu0 0.0
    %994 = vmatpush2.msra.mxu0 0.0
    %995 = vmatprep.subr.mxu0 0.0
    %996 = vmatpush2.msra.mxu0 0.0
    %997 = vmatprep.subr.mxu0 0.0
    %998 = vmatpush2.msra.mxu0 0.0
    %999 = vmatprep.subr.mxu0 0.0
    %1000 = vmatpush2.msra.mxu0 0.0
    %1001 = vmatprep.subr.mxu0 0.0
    %1002 = vmatpush2.msra.mxu0 0.0
    %1003 = vmatprep.subr.mxu0 0.0
    %1004 = vmatpush2.msra.mxu0 0.0
    %1005 = vmatprep.subr.mxu0 0.0
    %1006 = vmatpush2.msra.mxu0 0.0
    %1007 = vmatprep.subr.mxu0 0.0
    %1008 = vmatpush2.msra.mxu0 0.0
    %1009 = vmatprep.subr.mxu0 0.0
    %1010 = vmatpush2.msra.mxu0 0.0
    %1011 = vmatprep.subr.mxu0 0.0
    %1012 = vmatpush2.msra.mxu0 0.0
    %1013 = vmatprep.mubr.f32.mxu0 0.0
    %1014 = vmatmul.mubr.f32.gmra.mxu0 %v947
    %v1015 = vpop.f32.mrf.mxu0
    %v1016 = vadd.f32 0.0, %v1015
    %v1017 = vpop.f32.mrf.mxu0
    %1018 = vdwg.mxu0
    %v1020 = vrot.slane %v1016, 2
    %v1022 = vadd.f32 %v277, %v1020
    %v1023 = vxor.u32 %v1022, 2147483648
    %v1024 = vmul.f32 %v1023, 1.442695
    %v1025 = vpow.pop %v1024
    %v1026 = vadd.f32 %v1025, 1.0
    %v1027 = vrcp.pop %v1026
    %v1028 = vmul.f32 1.0, %v1027
    %v1029 = vtanh.pop %v1022
    %v1031 = vrot.slane %v931, 7
    %v1033 = vmul.f32 %v1028, %v1031
    %1035 = vrot.lane.b32.xlu0 %v1029, 64
    %v1036 = vpop.permute.xlu0 %1035
    %v1038 = vmul.f32 %v1028, %v1036
    %1040 = vrot.lane.b32.xlu0 %v1038, 32
    %v1041 = vpop.permute.xlu0 %1040
    %v1043 = vadd.f32 %v1033, %v1041
    %v1044 = vtanh.pop %v1043
    %1046 = vrot.lane.b32.xlu0 %v1044, 64
    %v1047 = vpop.permute.xlu0 %1046
    %v1049 = vmul.f32 %v1028, %v1047
    %1051 = vrot.lane.b32.xlu0 %v1049, 32
    %v1052 = vpop.permute.xlu0 %1051
    %vm1054 = vcmask 260102
    %1055 = vst.msk [vmem:[#allocation2] sm:$0x40] %vm1054, %v1052
    %v1056 = vrot.slane %v1049, 6
    %1057 = vrot.lane.b32.xlu0 %v1056, 32
    %v1058 = vpop.permute.xlu0 %1057
    %v1059 = vsel %vm282, %v1058, 0
    %1061 = vmatprep.subr.mxu0 0.0
    %1062 = vmatpush1.msra.mxu0 0.0
    %1063 = vmatprep.subr.mxu0 0.0
    %1064 = vmatpush1.msra.mxu0 0.0
    %1065 = vmatprep.subr.mxu0 0.0
    %1066 = vmatpush1.msra.mxu0 0.0
    %1067 = vmatprep.subr.mxu0 0.0
    %1068 = vmatpush1.msra.mxu0 0.0
    %1069 = vmatprep.subr.mxu0 0.0
    %1070 = vmatpush1.msra.mxu0 0.0
    %1071 = vmatprep.subr.mxu0 0.0
    %1072 = vmatpush1.msra.mxu0 0.0
    %1073 = vmatprep.subr.mxu0 0.0
    %1074 = vmatpush1.msra.mxu0 0.0
    %1075 = vmatprep.subr.mxu0 0.0
    %1076 = vmatpush1.msra.mxu0 0.0
    %1077 = vmatprep.subr.mxu0 0.0
    %1078 = vmatpush1.msra.mxu0 0.0
    %1079 = vmatprep.subr.mxu0 0.0
    %1080 = vmatpush1.msra.mxu0 0.0
    %1081 = vmatprep.subr.mxu0 0.0
    %1082 = vmatpush1.msra.mxu0 0.0
    %1083 = vmatprep.subr.mxu0 0.0
    %1084 = vmatpush1.msra.mxu0 0.0
    %1085 = vmatprep.subr.mxu0 0.0
    %1086 = vmatpush1.msra.mxu0 %v281
    %1087 = vmatprep.subr.mxu0 0.0
    %1088 = vmatpush1.msra.mxu0 %v280
    %1089 = vmatprep.subr.mxu0 0.0
    %1090 = vmatpush1.msra.mxu0 %v279
    %1091 = vmatprep.subr.mxu0 0.0
    %1092 = vmatpush1.msra.mxu0 %v278
    %1093 = vmatprep.subr.mxu0 0.0
    %1094 = vmatpush2.msra.mxu0 0.0
    %1095 = vmatprep.subr.mxu0 0.0
    %1096 = vmatpush2.msra.mxu0 0.0
    %1097 = vmatprep.subr.mxu0 0.0
    %1098 = vmatpush2.msra.mxu0 0.0
    %1099 = vmatprep.subr.mxu0 0.0
    %1100 = vmatpush2.msra.mxu0 0.0
    %1101 = vmatprep.subr.mxu0 0.0
    %1102 = vmatpush2.msra.mxu0 0.0
    %1103 = vmatprep.subr.mxu0 0.0
    %1104 = vmatpush2.msra.mxu0 0.0
    %1105 = vmatprep.subr.mxu0 0.0
    %1106 = vmatpush2.msra.mxu0 0.0
    %1107 = vmatprep.subr.mxu0 0.0
    %1108 = vmatpush2.msra.mxu0 0.0
    %1109 = vmatprep.subr.mxu0 0.0
    %1110 = vmatpush2.msra.mxu0 0.0
    %1111 = vmatprep.subr.mxu0 0.0
    %1112 = vmatpush2.msra.mxu0 0.0
    %1113 = vmatprep.subr.mxu0 0.0
    %1114 = vmatpush2.msra.mxu0 0.0
    %1115 = vmatprep.subr.mxu0 0.0
    %1116 = vmatpush2.msra.mxu0 0.0
    %1117 = vmatprep.subr.mxu0 0.0
    %1118 = vmatpush2.msra.mxu0 0.0
    %1119 = vmatprep.subr.mxu0 0.0
    %1120 = vmatpush2.msra.mxu0 0.0
    %1121 = vmatprep.subr.mxu0 0.0
    %1122 = vmatpush2.msra.mxu0 0.0
    %1123 = vmatprep.subr.mxu0 0.0
    %1124 = vmatpush2.msra.mxu0 0.0
    %1125 = vmatprep.mubr.f32.mxu0 0.0
    %1126 = vmatmul.mubr.f32.gmra.mxu0 %v1059
    %v1127 = vpop.f32.mrf.mxu0
    %v1128 = vadd.f32 0.0, %v1127
    %v1129 = vpop.f32.mrf.mxu0
    %1130 = vdwg.mxu0
    %v1132 = vrot.slane %v1128, 1
    %v1134 = vadd.f32 %v277, %v1132
    %v1135 = vxor.u32 %v1134, 2147483648
    %v1136 = vmul.f32 %v1135, 1.442695
    %v1137 = vpow.pop %v1136
    %v1138 = vadd.f32 %v1137, 1.0
    %v1139 = vrcp.pop %v1138
    %v1140 = vmul.f32 1.0, %v1139
    %v1141 = vtanh.pop %v1134
    %v1143 = vrot.slane %v1043, 7
    %v1145 = vmul.f32 %v1140, %v1143
    %1147 = vrot.lane.b32.xlu0 %v1141, 64
    %v1148 = vpop.permute.xlu0 %1147
    %v1150 = vmul.f32 %v1140, %v1148
    %1152 = vrot.lane.b32.xlu0 %v1150, 32
    %v1153 = vpop.permute.xlu0 %1152
    %v1155 = vadd.f32 %v1145, %v1153
    %v1156 = vtanh.pop %v1155
    %1158 = vrot.lane.b32.xlu0 %v1156, 64
    %v1159 = vpop.permute.xlu0 %1158
    %v1161 = vmul.f32 %v1140, %v1159
    %1163 = vrot.lane.b32.xlu0 %v1161, 32
    %v1164 = vpop.permute.xlu0 %1163
    %vm1166 = vcmask 261127
    %1167 = vst.msk [vmem:[#allocation2] sm:$0x80] %vm1166, %v1164
    %v1168 = vld [vmem:[#allocation2] sm:$0xff]
    %v1169 = vld [vmem:[%s6] sm:$0xff]
    %v1170 = vld [vmem:[%s6 + $0x8] sm:$0xff]
    %v1171 = vld [vmem:[%s6 + $0x10] sm:$0xff]
    %v1172 = vld [vmem:[%s6 + $0x18] sm:$0xff]
    %v1173 = vld [vmem:[%s8] sm:$0x1]
    %v1175 = vlaneseq
    %v1176 = vshrl.u32 %v1175, 7
    %v1177 = vsub.s32 0, %v1176
    %v1178 = vrot.slane %v1173, %v1177
    %v1181 = vsel %vm282, %v1168, 0
    %1183 = vmatprep.subr.mxu0 0.0
    %1184 = vmatpush1.msra.mxu0 0.0
    %1185 = vmatprep.subr.mxu0 0.0
    %1186 = vmatpush1.msra.mxu0 0.0
    %1187 = vmatprep.subr.mxu0 0.0
    %1188 = vmatpush1.msra.mxu0 0.0
    %1189 = vmatprep.subr.mxu0 0.0
    %1190 = vmatpush1.msra.mxu0 0.0
    %1191 = vmatprep.subr.mxu0 0.0
    %1192 = vmatpush1.msra.mxu0 0.0
    %1193 = vmatprep.subr.mxu0 0.0
    %1194 = vmatpush1.msra.mxu0 0.0
    %1195 = vmatprep.subr.mxu0 0.0
    %1196 = vmatpush1.msra.mxu0 0.0
    %1197 = vmatprep.subr.mxu0 0.0
    %1198 = vmatpush1.msra.mxu0 0.0
    %1199 = vmatprep.subr.mxu0 0.0
    %1200 = vmatpush1.msra.mxu0 0.0
    %1201 = vmatprep.subr.mxu0 0.0
    %1202 = vmatpush1.msra.mxu0 0.0
    %1203 = vmatprep.subr.mxu0 0.0
    %1204 = vmatpush1.msra.mxu0 0.0
    %1205 = vmatprep.subr.mxu0 0.0
    %1206 = vmatpush1.msra.mxu0 0.0
    %1207 = vmatprep.subr.mxu0 0.0
    %1208 = vmatpush1.msra.mxu0 %v1172
    %1209 = vmatprep.subr.mxu0 0.0
    %1210 = vmatpush1.msra.mxu0 %v1171
    %1211 = vmatprep.subr.mxu0 0.0
    %1212 = vmatpush1.msra.mxu0 %v1170
    %1213 = vmatprep.subr.mxu0 0.0
    %1214 = vmatpush1.msra.mxu0 %v1169
    %1215 = vmatprep.subr.mxu0 0.0
    %1216 = vmatpush2.msra.mxu0 0.0
    %1217 = vmatprep.subr.mxu0 0.0
    %1218 = vmatpush2.msra.mxu0 0.0
    %1219 = vmatprep.subr.mxu0 0.0
    %1220 = vmatpush2.msra.mxu0 0.0
    %1221 = vmatprep.subr.mxu0 0.0
    %1222 = vmatpush2.msra.mxu0 0.0
    %1223 = vmatprep.subr.mxu0 0.0
    %1224 = vmatpush2.msra.mxu0 0.0
    %1225 = vmatprep.subr.mxu0 0.0
    %1226 = vmatpush2.msra.mxu0 0.0
    %1227 = vmatprep.subr.mxu0 0.0
    %1228 = vmatpush2.msra.mxu0 0.0
    %1229 = vmatprep.subr.mxu0 0.0
    %1230 = vmatpush2.msra.mxu0 0.0
    %1231 = vmatprep.subr.mxu0 0.0
    %1232 = vmatpush2.msra.mxu0 0.0
    %1233 = vmatprep.subr.mxu0 0.0
    %1234 = vmatpush2.msra.mxu0 0.0
    %1235 = vmatprep.subr.mxu0 0.0
    %1236 = vmatpush2.msra.mxu0 0.0
    %1237 = vmatprep.subr.mxu0 0.0
    %1238 = vmatpush2.msra.mxu0 0.0
    %1239 = vmatprep.subr.mxu0 0.0
    %1240 = vmatpush2.msra.mxu0 0.0
    %1241 = vmatprep.subr.mxu0 0.0
    %1242 = vmatpush2.msra.mxu0 0.0
    %1243 = vmatprep.subr.mxu0 0.0
    %1244 = vmatpush2.msra.mxu0 0.0
    %1245 = vmatprep.subr.mxu0 0.0
    %1246 = vmatpush2.msra.mxu0 0.0
    %1247 = vmatprep.mubr.f32.mxu0 0.0
    %1248 = vmatmul.mubr.f32.gmra.mxu0 %v1181
    %v1249 = vpop.f32.mrf.mxu0
    %v1250 = vadd.f32 %v1178, %v1249
    %v1251 = vpop.f32.mrf.mxu0
    %1252 = vdwg.mxu0
    %v1253 = vld [vmem:[%s7] sm:$0xff]
    %v1254 = vld [vmem:[%s7 + $0x8] sm:$0xff]
    %v1255 = vld [vmem:[%s7 + $0x10] sm:$0xff]
    %v1256 = vld [vmem:[%s7 + $0x18] sm:$0xff]
    %1257 = vmatprep.subr.mxu0 0.0
    %1258 = vmatpush1.msra.mxu0 0.0
    %1259 = vmatprep.subr.mxu0 0.0
    %1260 = vmatpush1.msra.mxu0 0.0
    %1261 = vmatprep.subr.mxu0 0.0
    %1262 = vmatpush1.msra.mxu0 0.0
    %1263 = vmatprep.subr.mxu0 0.0
    %1264 = vmatpush1.msra.mxu0 0.0
    %1265 = vmatprep.subr.mxu0 0.0
    %1266 = vmatpush1.msra.mxu0 0.0
    %1267 = vmatprep.subr.mxu0 0.0
    %1268 = vmatpush1.msra.mxu0 0.0
    %1269 = vmatprep.subr.mxu0 0.0
    %1270 = vmatpush1.msra.mxu0 0.0
    %1271 = vmatprep.subr.mxu0 0.0
    %1272 = vmatpush1.msra.mxu0 0.0
    %1273 = vmatprep.subr.mxu0 0.0
    %1274 = vmatpush1.msra.mxu0 0.0
    %1275 = vmatprep.subr.mxu0 0.0
    %1276 = vmatpush1.msra.mxu0 0.0
    %1277 = vmatprep.subr.mxu0 0.0
    %1278 = vmatpush1.msra.mxu0 0.0
    %1279 = vmatprep.subr.mxu0 0.0
    %1280 = vmatpush1.msra.mxu0 0.0
    %1281 = vmatprep.subr.mxu0 0.0
    %1282 = vmatpush1.msra.mxu0 %v1256
    %1283 = vmatprep.subr.mxu0 0.0
    %1284 = vmatpush1.msra.mxu0 %v1255
    %1285 = vmatprep.subr.mxu0 0.0
    %1286 = vmatpush1.msra.mxu0 %v1254
    %1287 = vmatprep.subr.mxu0 0.0
    %1288 = vmatpush1.msra.mxu0 %v1253
    %1289 = vmatprep.subr.mxu0 0.0
    %1290 = vmatpush2.msra.mxu0 0.0
    %1291 = vmatprep.subr.mxu0 0.0
    %1292 = vmatpush2.msra.mxu0 0.0
    %1293 = vmatprep.subr.mxu0 0.0
    %1294 = vmatpush2.msra.mxu0 0.0
    %1295 = vmatprep.subr.mxu0 0.0
    %1296 = vmatpush2.msra.mxu0 0.0
    %1297 = vmatprep.subr.mxu0 0.0
    %1298 = vmatpush2.msra.mxu0 0.0
    %1299 = vmatprep.subr.mxu0 0.0
    %1300 = vmatpush2.msra.mxu0 0.0
    %1301 = vmatprep.subr.mxu0 0.0
    %1302 = vmatpush2.msra.mxu0 0.0
    %1303 = vmatprep.subr.mxu0 0.0
    %1304 = vmatpush2.msra.mxu0 0.0
    %1305 = vmatprep.subr.mxu0 0.0
    %1306 = vmatpush2.msra.mxu0 0.0
    %1307 = vmatprep.subr.mxu0 0.0
    %1308 = vmatpush2.msra.mxu0 0.0
    %1309 = vmatprep.subr.mxu0 0.0
    %1310 = vmatpush2.msra.mxu0 0.0
    %1311 = vmatprep.subr.mxu0 0.0
    %1312 = vmatpush2.msra.mxu0 0.0
    %1313 = vmatprep.subr.mxu0 0.0
    %1314 = vmatpush2.msra.mxu0 0.0
    %1315 = vmatprep.subr.mxu0 0.0
    %1316 = vmatpush2.msra.mxu0 0.0
    %1317 = vmatprep.subr.mxu0 0.0
    %1318 = vmatpush2.msra.mxu0 0.0
    %1319 = vmatprep.subr.mxu0 0.0
    %1320 = vmatpush2.msra.mxu0 0.0
    %1321 = vmatprep.mubr.f32.mxu0 0.0
    %1322 = vmatmul.mubr.f32.gmra.mxu0 %v284
    %v1323 = vpop.f32.mrf.mxu0
    %v1324 = vadd.f32 0.0, %v1323
    %v1325 = vpop.f32.mrf.mxu0
    %1326 = vdwg.mxu0
    %v1327 = vadd.f32 %v1250, %v1324
    %v1328 = vxor.u32 %v1327, 2147483648
    %v1329 = vmul.f32 %v1328, 1.442695
    %v1330 = vpow.pop %v1329
    %v1331 = vadd.f32 %v1330, 1.0
    %v1332 = vrcp.pop %v1331
    %v1333 = vmul.f32 1.0, %v1332
    %v1334 = vtanh.pop %v1327
    %v1335 = vmul.f32 %v1333, 0.0
    %1337 = vrot.lane.b32.xlu0 %v1334, 64
    %v1338 = vpop.permute.xlu0 %1337
    %v1340 = vmul.f32 %v1333, %v1338
    %1342 = vrot.lane.b32.xlu0 %v1340, 32
    %v1343 = vpop.permute.xlu0 %1342
    %v1345 = vadd.f32 %v1335, %v1343
    %v1346 = vtanh.pop %v1345
    %1348 = vrot.lane.b32.xlu0 %v1346, 64
    %v1349 = vpop.permute.xlu0 %1348
    %v1351 = vmul.f32 %v1333, %v1349
    %1353 = vrot.lane.b32.xlu0 %v1351, 32
    %v1354 = vpop.permute.xlu0 %1353
    %1356 = vst.msk [vmem:[#allocation2] sm:$0x1] %vm385, %v1354
    %v1357 = vsel %vm282, %v1354, 0
    %1359 = vmatprep.subr.mxu0 0.0
    %1360 = vmatpush1.msra.mxu0 0.0
    %1361 = vmatprep.subr.mxu0 0.0
    %1362 = vmatpush1.msra.mxu0 0.0
    %1363 = vmatprep.subr.mxu0 0.0
    %1364 = vmatpush1.msra.mxu0 0.0
    %1365 = vmatprep.subr.mxu0 0.0
    %1366 = vmatpush1.msra.mxu0 0.0
    %1367 = vmatprep.subr.mxu0 0.0
    %1368 = vmatpush1.msra.mxu0 0.0
    %1369 = vmatprep.subr.mxu0 0.0
    %1370 = vmatpush1.msra.mxu0 0.0
    %1371 = vmatprep.subr.mxu0 0.0
    %1372 = vmatpush1.msra.mxu0 0.0
    %1373 = vmatprep.subr.mxu0 0.0
    %1374 = vmatpush1.msra.mxu0 0.0
    %1375 = vmatprep.subr.mxu0 0.0
    %1376 = vmatpush1.msra.mxu0 0.0
    %1377 = vmatprep.subr.mxu0 0.0
    %1378 = vmatpush1.msra.mxu0 0.0
    %1379 = vmatprep.subr.mxu0 0.0
    %1380 = vmatpush1.msra.mxu0 0.0
    %1381 = vmatprep.subr.mxu0 0.0
    %1382 = vmatpush1.msra.mxu0 0.0
    %1383 = vmatprep.subr.mxu0 0.0
    %1384 = vmatpush1.msra.mxu0 %v1256
    %1385 = vmatprep.subr.mxu0 0.0
    %1386 = vmatpush1.msra.mxu0 %v1255
    %1387 = vmatprep.subr.mxu0 0.0
    %1388 = vmatpush1.msra.mxu0 %v1254
    %1389 = vmatprep.subr.mxu0 0.0
    %1390 = vmatpush1.msra.mxu0 %v1253
    %1391 = vmatprep.subr.mxu0 0.0
    %1392 = vmatpush2.msra.mxu0 0.0
    %1393 = vmatprep.subr.mxu0 0.0
    %1394 = vmatpush2.msra.mxu0 0.0
    %1395 = vmatprep.subr.mxu0 0.0
    %1396 = vmatpush2.msra.mxu0 0.0
    %1397 = vmatprep.subr.mxu0 0.0
    %1398 = vmatpush2.msra.mxu0 0.0
    %1399 = vmatprep.subr.mxu0 0.0
    %1400 = vmatpush2.msra.mxu0 0.0
    %1401 = vmatprep.subr.mxu0 0.0
    %1402 = vmatpush2.msra.mxu0 0.0
    %1403 = vmatprep.subr.mxu0 0.0
    %1404 = vmatpush2.msra.mxu0 0.0
    %1405 = vmatprep.subr.mxu0 0.0
    %1406 = vmatpush2.msra.mxu0 0.0
    %1407 = vmatprep.subr.mxu0 0.0
    %1408 = vmatpush2.msra.mxu0 0.0
    %1409 = vmatprep.subr.mxu0 0.0
    %1410 = vmatpush2.msra.mxu0 0.0
    %1411 = vmatprep.subr.mxu0 0.0
    %1412 = vmatpush2.msra.mxu0 0.0
    %1413 = vmatprep.subr.mxu0 0.0
    %1414 = vmatpush2.msra.mxu0 0.0
    %1415 = vmatprep.subr.mxu0 0.0
    %1416 = vmatpush2.msra.mxu0 0.0
    %1417 = vmatprep.subr.mxu0 0.0
    %1418 = vmatpush2.msra.mxu0 0.0
    %1419 = vmatprep.subr.mxu0 0.0
    %1420 = vmatpush2.msra.mxu0 0.0
    %1421 = vmatprep.subr.mxu0 0.0
    %1422 = vmatpush2.msra.mxu0 0.0
    %1423 = vmatprep.mubr.f32.mxu0 0.0
    %1424 = vmatmul.mubr.f32.gmra.mxu0 %v1357
    %v1425 = vpop.f32.mrf.mxu0
    %v1426 = vadd.f32 0.0, %v1425
    %v1427 = vpop.f32.mrf.mxu0
    %1428 = vdwg.mxu0
    %v1430 = vrot.slane %v1426, 7
    %v1432 = vadd.f32 %v1250, %v1430
    %v1433 = vxor.u32 %v1432, 2147483648
    %v1434 = vmul.f32 %v1433, 1.442695
    %v1435 = vpow.pop %v1434
    %v1436 = vadd.f32 %v1435, 1.0
    %v1437 = vrcp.pop %v1436
    %v1438 = vmul.f32 1.0, %v1437
    %v1439 = vtanh.pop %v1432
    %v1441 = vrot.slane %v1345, 7
    %v1443 = vmul.f32 %v1438, %v1441
    %1445 = vrot.lane.b32.xlu0 %v1439, 64
    %v1446 = vpop.permute.xlu0 %1445
    %v1448 = vmul.f32 %v1438, %v1446
    %1450 = vrot.lane.b32.xlu0 %v1448, 32
    %v1451 = vpop.permute.xlu0 %1450
    %v1453 = vadd.f32 %v1443, %v1451
    %v1454 = vtanh.pop %v1453
    %1456 = vrot.lane.b32.xlu0 %v1454, 64
    %v1457 = vpop.permute.xlu0 %1456
    %v1459 = vmul.f32 %v1438, %v1457
    %1461 = vrot.lane.b32.xlu0 %v1459, 32
    %v1462 = vpop.permute.xlu0 %1461
    %1464 = vst.msk [vmem:[#allocation2] sm:$0x2] %vm494, %v1462
    %v1465 = vrot.slane %v1459, 1
    %1466 = vrot.lane.b32.xlu0 %v1465, 32
    %v1467 = vpop.permute.xlu0 %1466
    %v1468 = vsel %vm282, %v1467, 0
    %1470 = vmatprep.subr.mxu0 0.0
    %1471 = vmatpush1.msra.mxu0 0.0
    %1472 = vmatprep.subr.mxu0 0.0
    %1473 = vmatpush1.msra.mxu0 0.0
    %1474 = vmatprep.subr.mxu0 0.0
    %1475 = vmatpush1.msra.mxu0 0.0
    %1476 = vmatprep.subr.mxu0 0.0
    %1477 = vmatpush1.msra.mxu0 0.0
    %1478 = vmatprep.subr.mxu0 0.0
    %1479 = vmatpush1.msra.mxu0 0.0
    %1480 = vmatprep.subr.mxu0 0.0
    %1481 = vmatpush1.msra.mxu0 0.0
    %1482 = vmatprep.subr.mxu0 0.0
    %1483 = vmatpush1.msra.mxu0 0.0
    %1484 = vmatprep.subr.mxu0 0.0
    %1485 = vmatpush1.msra.mxu0 0.0
    %1486 = vmatprep.subr.mxu0 0.0
    %1487 = vmatpush1.msra.mxu0 0.0
    %1488 = vmatprep.subr.mxu0 0.0
    %1489 = vmatpush1.msra.mxu0 0.0
    %1490 = vmatprep.subr.mxu0 0.0
    %1491 = vmatpush1.msra.mxu0 0.0
    %1492 = vmatprep.subr.mxu0 0.0
    %1493 = vmatpush1.msra.mxu0 0.0
    %1494 = vmatprep.subr.mxu0 0.0
    %1495 = vmatpush1.msra.mxu0 %v1256
    %1496 = vmatprep.subr.mxu0 0.0
    %1497 = vmatpush1.msra.mxu0 %v1255
    %1498 = vmatprep.subr.mxu0 0.0
    %1499 = vmatpush1.msra.mxu0 %v1254
    %1500 = vmatprep.subr.mxu0 0.0
    %1501 = vmatpush1.msra.mxu0 %v1253
    %1502 = vmatprep.subr.mxu0 0.0
    %1503 = vmatpush2.msra.mxu0 0.0
    %1504 = vmatprep.subr.mxu0 0.0
    %1505 = vmatpush2.msra.mxu0 0.0
    %1506 = vmatprep.subr.mxu0 0.0
    %1507 = vmatpush2.msra.mxu0 0.0
    %1508 = vmatprep.subr.mxu0 0.0
    %1509 = vmatpush2.msra.mxu0 0.0
    %1510 = vmatprep.subr.mxu0 0.0
    %1511 = vmatpush2.msra.mxu0 0.0
    %1512 = vmatprep.subr.mxu0 0.0
    %1513 = vmatpush2.msra.mxu0 0.0
    %1514 = vmatprep.subr.mxu0 0.0
    %1515 = vmatpush2.msra.mxu0 0.0
    %1516 = vmatprep.subr.mxu0 0.0
    %1517 = vmatpush2.msra.mxu0 0.0
    %1518 = vmatprep.subr.mxu0 0.0
    %1519 = vmatpush2.msra.mxu0 0.0
    %1520 = vmatprep.subr.mxu0 0.0
    %1521 = vmatpush2.msra.mxu0 0.0
    %1522 = vmatprep.subr.mxu0 0.0
    %1523 = vmatpush2.msra.mxu0 0.0
    %1524 = vmatprep.subr.mxu0 0.0
    %1525 = vmatpush2.msra.mxu0 0.0
    %1526 = vmatprep.subr.mxu0 0.0
    %1527 = vmatpush2.msra.mxu0 0.0
    %1528 = vmatprep.subr.mxu0 0.0
    %1529 = vmatpush2.msra.mxu0 0.0
    %1530 = vmatprep.subr.mxu0 0.0
    %1531 = vmatpush2.msra.mxu0 0.0
    %1532 = vmatprep.subr.mxu0 0.0
    %1533 = vmatpush2.msra.mxu0 0.0
    %1534 = vmatprep.mubr.f32.mxu0 0.0
    %1535 = vmatmul.mubr.f32.gmra.mxu0 %v1468
    %v1536 = vpop.f32.mrf.mxu0
    %v1537 = vadd.f32 0.0, %v1536
    %v1538 = vpop.f32.mrf.mxu0
    %1539 = vdwg.mxu0
    %v1541 = vrot.slane %v1537, 6
    %v1543 = vadd.f32 %v1250, %v1541
    %v1544 = vxor.u32 %v1543, 2147483648
    %v1545 = vmul.f32 %v1544, 1.442695
    %v1546 = vpow.pop %v1545
    %v1547 = vadd.f32 %v1546, 1.0
    %v1548 = vrcp.pop %v1547
    %v1549 = vmul.f32 1.0, %v1548
    %v1550 = vtanh.pop %v1543
    %v1552 = vrot.slane %v1453, 7
    %v1554 = vmul.f32 %v1549, %v1552
    %1556 = vrot.lane.b32.xlu0 %v1550, 64
    %v1557 = vpop.permute.xlu0 %1556
    %v1559 = vmul.f32 %v1549, %v1557
    %1561 = vrot.lane.b32.xlu0 %v1559, 32
    %v1562 = vpop.permute.xlu0 %1561
    %v1564 = vadd.f32 %v1554, %v1562
    %v1565 = vtanh.pop %v1564
    %1567 = vrot.lane.b32.xlu0 %v1565, 64
    %v1568 = vpop.permute.xlu0 %1567
    %v1570 = vmul.f32 %v1549, %v1568
    %1572 = vrot.lane.b32.xlu0 %v1570, 32
    %v1573 = vpop.permute.xlu0 %1572
    %1575 = vst.msk [vmem:[#allocation2] sm:$0x4] %vm606, %v1573
    %v1576 = vrot.slane %v1570, 2
    %1577 = vrot.lane.b32.xlu0 %v1576, 32
    %v1578 = vpop.permute.xlu0 %1577
    %v1579 = vsel %vm282, %v1578, 0
    %1581 = vmatprep.subr.mxu0 0.0
    %1582 = vmatpush1.msra.mxu0 0.0
    %1583 = vmatprep.subr.mxu0 0.0
    %1584 = vmatpush1.msra.mxu0 0.0
    %1585 = vmatprep.subr.mxu0 0.0
    %1586 = vmatpush1.msra.mxu0 0.0
    %1587 = vmatprep.subr.mxu0 0.0
    %1588 = vmatpush1.msra.mxu0 0.0
    %1589 = vmatprep.subr.mxu0 0.0
    %1590 = vmatpush1.msra.mxu0 0.0
    %1591 = vmatprep.subr.mxu0 0.0
    %1592 = vmatpush1.msra.mxu0 0.0
    %1593 = vmatprep.subr.mxu0 0.0
    %1594 = vmatpush1.msra.mxu0 0.0
    %1595 = vmatprep.subr.mxu0 0.0
    %1596 = vmatpush1.msra.mxu0 0.0
    %1597 = vmatprep.subr.mxu0 0.0
    %1598 = vmatpush1.msra.mxu0 0.0
    %1599 = vmatprep.subr.mxu0 0.0
    %1600 = vmatpush1.msra.mxu0 0.0
    %1601 = vmatprep.subr.mxu0 0.0
    %1602 = vmatpush1.msra.mxu0 0.0
    %1603 = vmatprep.subr.mxu0 0.0
    %1604 = vmatpush1.msra.mxu0 0.0
    %1605 = vmatprep.subr.mxu0 0.0
    %1606 = vmatpush1.msra.mxu0 %v1256
    %1607 = vmatprep.subr.mxu0 0.0
    %1608 = vmatpush1.msra.mxu0 %v1255
    %1609 = vmatprep.subr.mxu0 0.0
    %1610 = vmatpush1.msra.mxu0 %v1254
    %1611 = vmatprep.subr.mxu0 0.0
    %1612 = vmatpush1.msra.mxu0 %v1253
    %1613 = vmatprep.subr.mxu0 0.0
    %1614 = vmatpush2.msra.mxu0 0.0
    %1615 = vmatprep.subr.mxu0 0.0
    %1616 = vmatpush2.msra.mxu0 0.0
    %1617 = vmatprep.subr.mxu0 0.0
    %1618 = vmatpush2.msra.mxu0 0.0
    %1619 = vmatprep.subr.mxu0 0.0
    %1620 = vmatpush2.msra.mxu0 0.0
    %1621 = vmatprep.subr.mxu0 0.0
    %1622 = vmatpush2.msra.mxu0 0.0
    %1623 = vmatprep.subr.mxu0 0.0
    %1624 = vmatpush2.msra.mxu0 0.0
    %1625 = vmatprep.subr.mxu0 0.0
    %1626 = vmatpush2.msra.mxu0 0.0
    %1627 = vmatprep.subr.mxu0 0.0
    %1628 = vmatpush2.msra.mxu0 0.0
    %1629 = vmatprep.subr.mxu0 0.0
    %1630 = vmatpush2.msra.mxu0 0.0
    %1631 = vmatprep.subr.mxu0 0.0
    %1632 = vmatpush2.msra.mxu0 0.0
    %1633 = vmatprep.subr.mxu0 0.0
    %1634 = vmatpush2.msra.mxu0 0.0
    %1635 = vmatprep.subr.mxu0 0.0
    %1636 = vmatpush2.msra.mxu0 0.0
    %1637 = vmatprep.subr.mxu0 0.0
    %1638 = vmatpush2.msra.mxu0 0.0
    %1639 = vmatprep.subr.mxu0 0.0
    %1640 = vmatpush2.msra.mxu0 0.0
    %1641 = vmatprep.subr.mxu0 0.0
    %1642 = vmatpush2.msra.mxu0 0.0
    %1643 = vmatprep.subr.mxu0 0.0
    %1644 = vmatpush2.msra.mxu0 0.0
    %1645 = vmatprep.mubr.f32.mxu0 0.0
    %1646 = vmatmul.mubr.f32.gmra.mxu0 %v1579
    %v1647 = vpop.f32.mrf.mxu0
    %v1648 = vadd.f32 0.0, %v1647
    %v1649 = vpop.f32.mrf.mxu0
    %1650 = vdwg.mxu0
    %v1652 = vrot.slane %v1648, 5
    %v1654 = vadd.f32 %v1250, %v1652
    %v1655 = vxor.u32 %v1654, 2147483648
    %v1656 = vmul.f32 %v1655, 1.442695
    %v1657 = vpow.pop %v1656
    %v1658 = vadd.f32 %v1657, 1.0
    %v1659 = vrcp.pop %v1658
    %v1660 = vmul.f32 1.0, %v1659
    %v1661 = vtanh.pop %v1654
    %v1663 = vrot.slane %v1564, 7
    %v1665 = vmul.f32 %v1660, %v1663
    %1667 = vrot.lane.b32.xlu0 %v1661, 64
    %v1668 = vpop.permute.xlu0 %1667
    %v1670 = vmul.f32 %v1660, %v1668
    %1672 = vrot.lane.b32.xlu0 %v1670, 32
    %v1673 = vpop.permute.xlu0 %1672
    %v1675 = vadd.f32 %v1665, %v1673
    %v1676 = vtanh.pop %v1675
    %1678 = vrot.lane.b32.xlu0 %v1676, 64
    %v1679 = vpop.permute.xlu0 %1678
    %v1681 = vmul.f32 %v1660, %v1679
    %1683 = vrot.lane.b32.xlu0 %v1681, 32
    %v1684 = vpop.permute.xlu0 %1683
    %1686 = vst.msk [vmem:[#allocation2] sm:$0x8] %vm718, %v1684
    %v1687 = vrot.slane %v1681, 3
    %1688 = vrot.lane.b32.xlu0 %v1687, 32
    %v1689 = vpop.permute.xlu0 %1688
    %v1690 = vsel %vm282, %v1689, 0
    %1692 = vmatprep.subr.mxu0 0.0
    %1693 = vmatpush1.msra.mxu0 0.0
    %1694 = vmatprep.subr.mxu0 0.0
    %1695 = vmatpush1.msra.mxu0 0.0
    %1696 = vmatprep.subr.mxu0 0.0
    %1697 = vmatpush1.msra.mxu0 0.0
    %1698 = vmatprep.subr.mxu0 0.0
    %1699 = vmatpush1.msra.mxu0 0.0
    %1700 = vmatprep.subr.mxu0 0.0
    %1701 = vmatpush1.msra.mxu0 0.0
    %1702 = vmatprep.subr.mxu0 0.0
    %1703 = vmatpush1.msra.mxu0 0.0
    %1704 = vmatprep.subr.mxu0 0.0
    %1705 = vmatpush1.msra.mxu0 0.0
    %1706 = vmatprep.subr.mxu0 0.0
    %1707 = vmatpush1.msra.mxu0 0.0
    %1708 = vmatprep.subr.mxu0 0.0
    %1709 = vmatpush1.msra.mxu0 0.0
    %1710 = vmatprep.subr.mxu0 0.0
    %1711 = vmatpush1.msra.mxu0 0.0
    %1712 = vmatprep.subr.mxu0 0.0
    %1713 = vmatpush1.msra.mxu0 0.0
    %1714 = vmatprep.subr.mxu0 0.0
    %1715 = vmatpush1.msra.mxu0 0.0
    %1716 = vmatprep.subr.mxu0 0.0
    %1717 = vmatpush1.msra.mxu0 %v1256
    %1718 = vmatprep.subr.mxu0 0.0
    %1719 = vmatpush1.msra.mxu0 %v1255
    %1720 = vmatprep.subr.mxu0 0.0
    %1721 = vmatpush1.msra.mxu0 %v1254
    %1722 = vmatprep.subr.mxu0 0.0
    %1723 = vmatpush1.msra.mxu0 %v1253
    %1724 = vmatprep.subr.mxu0 0.0
    %1725 = vmatpush2.msra.mxu0 0.0
    %1726 = vmatprep.subr.mxu0 0.0
    %1727 = vmatpush2.msra.mxu0 0.0
    %1728 = vmatprep.subr.mxu0 0.0
    %1729 = vmatpush2.msra.mxu0 0.0
    %1730 = vmatprep.subr.mxu0 0.0
    %1731 = vmatpush2.msra.mxu0 0.0
    %1732 = vmatprep.subr.mxu0 0.0
    %1733 = vmatpush2.msra.mxu0 0.0
    %1734 = vmatprep.subr.mxu0 0.0
    %1735 = vmatpush2.msra.mxu0 0.0
    %1736 = vmatprep.subr.mxu0 0.0
    %1737 = vmatpush2.msra.mxu0 0.0
    %1738 = vmatprep.subr.mxu0 0.0
    %1739 = vmatpush2.msra.mxu0 0.0
    %1740 = vmatprep.subr.mxu0 0.0
    %1741 = vmatpush2.msra.mxu0 0.0
    %1742 = vmatprep.subr.mxu0 0.0
    %1743 = vmatpush2.msra.mxu0 0.0
    %1744 = vmatprep.subr.mxu0 0.0
    %1745 = vmatpush2.msra.mxu0 0.0
    %1746 = vmatprep.subr.mxu0 0.0
    %1747 = vmatpush2.msra.mxu0 0.0
    %1748 = vmatprep.subr.mxu0 0.0
    %1749 = vmatpush2.msra.mxu0 0.0
    %1750 = vmatprep.subr.mxu0 0.0
    %1751 = vmatpush2.msra.mxu0 0.0
    %1752 = vmatprep.subr.mxu0 0.0
    %1753 = vmatpush2.msra.mxu0 0.0
    %1754 = vmatprep.subr.mxu0 0.0
    %1755 = vmatpush2.msra.mxu0 0.0
    %1756 = vmatprep.mubr.f32.mxu0 0.0
    %1757 = vmatmul.mubr.f32.gmra.mxu0 %v1690
    %v1758 = vpop.f32.mrf.mxu0
    %v1759 = vadd.f32 0.0, %v1758
    %v1760 = vpop.f32.mrf.mxu0
    %1761 = vdwg.mxu0
    %v1763 = vrot.slane %v1759, 4
    %v1765 = vadd.f32 %v1250, %v1763
    %v1766 = vxor.u32 %v1765, 2147483648
    %v1767 = vmul.f32 %v1766, 1.442695
    %v1768 = vpow.pop %v1767
    %v1769 = vadd.f32 %v1768, 1.0
    %v1770 = vrcp.pop %v1769
    %v1771 = vmul.f32 1.0, %v1770
    %v1772 = vtanh.pop %v1765
    %v1774 = vrot.slane %v1675, 7
    %v1776 = vmul.f32 %v1771, %v1774
    %1778 = vrot.lane.b32.xlu0 %v1772, 64
    %v1779 = vpop.permute.xlu0 %1778
    %v1781 = vmul.f32 %v1771, %v1779
    %1783 = vrot.lane.b32.xlu0 %v1781, 32
    %v1784 = vpop.permute.xlu0 %1783
    %v1786 = vadd.f32 %v1776, %v1784
    %v1787 = vtanh.pop %v1786
    %1789 = vrot.lane.b32.xlu0 %v1787, 64
    %v1790 = vpop.permute.xlu0 %1789
    %v1792 = vmul.f32 %v1771, %v1790
    %1794 = vrot.lane.b32.xlu0 %v1792, 32
    %v1795 = vpop.permute.xlu0 %1794
    %1797 = vst.msk [vmem:[#allocation2] sm:$0x10] %vm830, %v1795
    %v1798 = vrot.slane %v1792, 4
    %1799 = vrot.lane.b32.xlu0 %v1798, 32
    %v1800 = vpop.permute.xlu0 %1799
    %v1801 = vsel %vm282, %v1800, 0
    %1803 = vmatprep.subr.mxu0 0.0
    %1804 = vmatpush1.msra.mxu0 0.0
    %1805 = vmatprep.subr.mxu0 0.0
    %1806 = vmatpush1.msra.mxu0 0.0
    %1807 = vmatprep.subr.mxu0 0.0
    %1808 = vmatpush1.msra.mxu0 0.0
    %1809 = vmatprep.subr.mxu0 0.0
    %1810 = vmatpush1.msra.mxu0 0.0
    %1811 = vmatprep.subr.mxu0 0.0
    %1812 = vmatpush1.msra.mxu0 0.0
    %1813 = vmatprep.subr.mxu0 0.0
    %1814 = vmatpush1.msra.mxu0 0.0
    %1815 = vmatprep.subr.mxu0 0.0
    %1816 = vmatpush1.msra.mxu0 0.0
    %1817 = vmatprep.subr.mxu0 0.0
    %1818 = vmatpush1.msra.mxu0 0.0
    %1819 = vmatprep.subr.mxu0 0.0
    %1820 = vmatpush1.msra.mxu0 0.0
    %1821 = vmatprep.subr.mxu0 0.0
    %1822 = vmatpush1.msra.mxu0 0.0
    %1823 = vmatprep.subr.mxu0 0.0
    %1824 = vmatpush1.msra.mxu0 0.0
    %1825 = vmatprep.subr.mxu0 0.0
    %1826 = vmatpush1.msra.mxu0 0.0
    %1827 = vmatprep.subr.mxu0 0.0
    %1828 = vmatpush1.msra.mxu0 %v1256
    %1829 = vmatprep.subr.mxu0 0.0
    %1830 = vmatpush1.msra.mxu0 %v1255
    %1831 = vmatprep.subr.mxu0 0.0
    %1832 = vmatpush1.msra.mxu0 %v1254
    %1833 = vmatprep.subr.mxu0 0.0
    %1834 = vmatpush1.msra.mxu0 %v1253
    %1835 = vmatprep.subr.mxu0 0.0
    %1836 = vmatpush2.msra.mxu0 0.0
    %1837 = vmatprep.subr.mxu0 0.0
    %1838 = vmatpush2.msra.mxu0 0.0
    %1839 = vmatprep.subr.mxu0 0.0
    %1840 = vmatpush2.msra.mxu0 0.0
    %1841 = vmatprep.subr.mxu0 0.0
    %1842 = vmatpush2.msra.mxu0 0.0
    %1843 = vmatprep.subr.mxu0 0.0
    %1844 = vmatpush2.msra.mxu0 0.0
    %1845 = vmatprep.subr.mxu0 0.0
    %1846 = vmatpush2.msra.mxu0 0.0
    %1847 = vmatprep.subr.mxu0 0.0
    %1848 = vmatpush2.msra.mxu0 0.0
    %1849 = vmatprep.subr.mxu0 0.0
    %1850 = vmatpush2.msra.mxu0 0.0
    %1851 = vmatprep.subr.mxu0 0.0
    %1852 = vmatpush2.msra.mxu0 0.0
    %1853 = vmatprep.subr.mxu0 0.0
    %1854 = vmatpush2.msra.mxu0 0.0
    %1855 = vmatprep.subr.mxu0 0.0
    %1856 = vmatpush2.msra.mxu0 0.0
    %1857 = vmatprep.subr.mxu0 0.0
    %1858 = vmatpush2.msra.mxu0 0.0
    %1859 = vmatprep.subr.mxu0 0.0
    %1860 = vmatpush2.msra.mxu0 0.0
    %1861 = vmatprep.subr.mxu0 0.0
    %1862 = vmatpush2.msra.mxu0 0.0
    %1863 = vmatprep.subr.mxu0 0.0
    %1864 = vmatpush2.msra.mxu0 0.0
    %1865 = vmatprep.subr.mxu0 0.0
    %1866 = vmatpush2.msra.mxu0 0.0
    %1867 = vmatprep.mubr.f32.mxu0 0.0
    %1868 = vmatmul.mubr.f32.gmra.mxu0 %v1801
    %v1869 = vpop.f32.mrf.mxu0
    %v1870 = vadd.f32 0.0, %v1869
    %v1871 = vpop.f32.mrf.mxu0
    %1872 = vdwg.mxu0
    %v1874 = vrot.slane %v1870, 3
    %v1876 = vadd.f32 %v1250, %v1874
    %v1877 = vxor.u32 %v1876, 2147483648
    %v1878 = vmul.f32 %v1877, 1.442695
    %v1879 = vpow.pop %v1878
    %v1880 = vadd.f32 %v1879, 1.0
    %v1881 = vrcp.pop %v1880
    %v1882 = vmul.f32 1.0, %v1881
    %v1883 = vtanh.pop %v1876
    %v1885 = vrot.slane %v1786, 7
    %v1887 = vmul.f32 %v1882, %v1885
    %1889 = vrot.lane.b32.xlu0 %v1883, 64
    %v1890 = vpop.permute.xlu0 %1889
    %v1892 = vmul.f32 %v1882, %v1890
    %1894 = vrot.lane.b32.xlu0 %v1892, 32
    %v1895 = vpop.permute.xlu0 %1894
    %v1897 = vadd.f32 %v1887, %v1895
    %v1898 = vtanh.pop %v1897
    %1900 = vrot.lane.b32.xlu0 %v1898, 64
    %v1901 = vpop.permute.xlu0 %1900
    %v1903 = vmul.f32 %v1882, %v1901
    %1905 = vrot.lane.b32.xlu0 %v1903, 32
    %v1906 = vpop.permute.xlu0 %1905
    %1908 = vst.msk [vmem:[#allocation2] sm:$0x20] %vm942, %v1906
    %v1909 = vrot.slane %v1903, 5
    %1910 = vrot.lane.b32.xlu0 %v1909, 32
    %v1911 = vpop.permute.xlu0 %1910
    %v1912 = vsel %vm282, %v1911, 0
    %1914 = vmatprep.subr.mxu0 0.0
    %1915 = vmatpush1.msra.mxu0 0.0
    %1916 = vmatprep.subr.mxu0 0.0
    %1917 = vmatpush1.msra.mxu0 0.0
    %1918 = vmatprep.subr.mxu0 0.0
    %1919 = vmatpush1.msra.mxu0 0.0
    %1920 = vmatprep.subr.mxu0 0.0
    %1921 = vmatpush1.msra.mxu0 0.0
    %1922 = vmatprep.subr.mxu0 0.0
    %1923 = vmatpush1.msra.mxu0 0.0
    %1924 = vmatprep.subr.mxu0 0.0
    %1925 = vmatpush1.msra.mxu0 0.0
    %1926 = vmatprep.subr.mxu0 0.0
    %1927 = vmatpush1.msra.mxu0 0.0
    %1928 = vmatprep.subr.mxu0 0.0
    %1929 = vmatpush1.msra.mxu0 0.0
    %1930 = vmatprep.subr.mxu0 0.0
    %1931 = vmatpush1.msra.mxu0 0.0
    %1932 = vmatprep.subr.mxu0 0.0
    %1933 = vmatpush1.msra.mxu0 0.0
    %1934 = vmatprep.subr.mxu0 0.0
    %1935 = vmatpush1.msra.mxu0 0.0
    %1936 = vmatprep.subr.mxu0 0.0
    %1937 = vmatpush1.msra.mxu0 0.0
    %1938 = vmatprep.subr.mxu0 0.0
    %1939 = vmatpush1.msra.mxu0 %v1256
    %1940 = vmatprep.subr.mxu0 0.0
    %1941 = vmatpush1.msra.mxu0 %v1255
    %1942 = vmatprep.subr.mxu0 0.0
    %1943 = vmatpush1.msra.mxu0 %v1254
    %1944 = vmatprep.subr.mxu0 0.0
    %1945 = vmatpush1.msra.mxu0 %v1253
    %1946 = vmatprep.subr.mxu0 0.0
    %1947 = vmatpush2.msra.mxu0 0.0
    %1948 = vmatprep.subr.mxu0 0.0
    %1949 = vmatpush2.msra.mxu0 0.0
    %1950 = vmatprep.subr.mxu0 0.0
    %1951 = vmatpush2.msra.mxu0 0.0
    %1952 = vmatprep.subr.mxu0 0.0
    %1953 = vmatpush2.msra.mxu0 0.0
    %1954 = vmatprep.subr.mxu0 0.0
    %1955 = vmatpush2.msra.mxu0 0.0
    %1956 = vmatprep.subr.mxu0 0.0
    %1957 = vmatpush2.msra.mxu0 0.0
    %1958 = vmatprep.subr.mxu0 0.0
    %1959 = vmatpush2.msra.mxu0 0.0
    %1960 = vmatprep.subr.mxu0 0.0
    %1961 = vmatpush2.msra.mxu0 0.0
    %1962 = vmatprep.subr.mxu0 0.0
    %1963 = vmatpush2.msra.mxu0 0.0
    %1964 = vmatprep.subr.mxu0 0.0
    %1965 = vmatpush2.msra.mxu0 0.0
    %1966 = vmatprep.subr.mxu0 0.0
    %1967 = vmatpush2.msra.mxu0 0.0
    %1968 = vmatprep.subr.mxu0 0.0
    %1969 = vmatpush2.msra.mxu0 0.0
    %1970 = vmatprep.subr.mxu0 0.0
    %1971 = vmatpush2.msra.mxu0 0.0
    %1972 = vmatprep.subr.mxu0 0.0
    %1973 = vmatpush2.msra.mxu0 0.0
    %1974 = vmatprep.subr.mxu0 0.0
    %1975 = vmatpush2.msra.mxu0 0.0
    %1976 = vmatprep.subr.mxu0 0.0
    %1977 = vmatpush2.msra.mxu0 0.0
    %1978 = vmatprep.mubr.f32.mxu0 0.0
    %1979 = vmatmul.mubr.f32.gmra.mxu0 %v1912
    %v1980 = vpop.f32.mrf.mxu0
    %v1981 = vadd.f32 0.0, %v1980
    %v1982 = vpop.f32.mrf.mxu0
    %1983 = vdwg.mxu0
    %v1985 = vrot.slane %v1981, 2
    %v1987 = vadd.f32 %v1250, %v1985
    %v1988 = vxor.u32 %v1987, 2147483648
    %v1989 = vmul.f32 %v1988, 1.442695
    %v1990 = vpow.pop %v1989
    %v1991 = vadd.f32 %v1990, 1.0
    %v1992 = vrcp.pop %v1991
    %v1993 = vmul.f32 1.0, %v1992
    %v1994 = vtanh.pop %v1987
    %v1996 = vrot.slane %v1897, 7
    %v1998 = vmul.f32 %v1993, %v1996
    %2000 = vrot.lane.b32.xlu0 %v1994, 64
    %v2001 = vpop.permute.xlu0 %2000
    %v2003 = vmul.f32 %v1993, %v2001
    %2005 = vrot.lane.b32.xlu0 %v2003, 32
    %v2006 = vpop.permute.xlu0 %2005
    %v2008 = vadd.f32 %v1998, %v2006
    %v2009 = vtanh.pop %v2008
    %2011 = vrot.lane.b32.xlu0 %v2009, 64
    %v2012 = vpop.permute.xlu0 %2011
    %v2014 = vmul.f32 %v1993, %v2012
    %2016 = vrot.lane.b32.xlu0 %v2014, 32
    %v2017 = vpop.permute.xlu0 %2016
    %2019 = vst.msk [vmem:[#allocation2] sm:$0x40] %vm1054, %v2017
    %v2020 = vrot.slane %v2014, 6
    %2021 = vrot.lane.b32.xlu0 %v2020, 32
    %v2022 = vpop.permute.xlu0 %2021
    %v2023 = vsel %vm282, %v2022, 0
    %2025 = vmatprep.subr.mxu0 0.0
    %2026 = vmatpush1.msra.mxu0 0.0
    %2027 = vmatprep.subr.mxu0 0.0
    %2028 = vmatpush1.msra.mxu0 0.0
    %2029 = vmatprep.subr.mxu0 0.0
    %2030 = vmatpush1.msra.mxu0 0.0
    %2031 = vmatprep.subr.mxu0 0.0
    %2032 = vmatpush1.msra.mxu0 0.0
    %2033 = vmatprep.subr.mxu0 0.0
    %2034 = vmatpush1.msra.mxu0 0.0
    %2035 = vmatprep.subr.mxu0 0.0
    %2036 = vmatpush1.msra.mxu0 0.0
    %2037 = vmatprep.subr.mxu0 0.0
    %2038 = vmatpush1.msra.mxu0 0.0
    %2039 = vmatprep.subr.mxu0 0.0
    %2040 = vmatpush1.msra.mxu0 0.0
    %2041 = vmatprep.subr.mxu0 0.0
    %2042 = vmatpush1.msra.mxu0 0.0
    %2043 = vmatprep.subr.mxu0 0.0
    %2044 = vmatpush1.msra.mxu0 0.0
    %2045 = vmatprep.subr.mxu0 0.0
    %2046 = vmatpush1.msra.mxu0 0.0
    %2047 = vmatprep.subr.mxu0 0.0
    %2048 = vmatpush1.msra.mxu0 0.0
    %2049 = vmatprep.subr.mxu0 0.0
    %2050 = vmatpush1.msra.mxu0 %v1256
    %2051 = vmatprep.subr.mxu0 0.0
    %2052 = vmatpush1.msra.mxu0 %v1255
    %2053 = vmatprep.subr.mxu0 0.0
    %2054 = vmatpush1.msra.mxu0 %v1254
    %2055 = vmatprep.subr.mxu0 0.0
    %2056 = vmatpush1.msra.mxu0 %v1253
    %2057 = vmatprep.subr.mxu0 0.0
    %2058 = vmatpush2.msra.mxu0 0.0
    %2059 = vmatprep.subr.mxu0 0.0
    %2060 = vmatpush2.msra.mxu0 0.0
    %2061 = vmatprep.subr.mxu0 0.0
    %2062 = vmatpush2.msra.mxu0 0.0
    %2063 = vmatprep.subr.mxu0 0.0
    %2064 = vmatpush2.msra.mxu0 0.0
    %2065 = vmatprep.subr.mxu0 0.0
    %2066 = vmatpush2.msra.mxu0 0.0
    %2067 = vmatprep.subr.mxu0 0.0
    %2068 = vmatpush2.msra.mxu0 0.0
    %2069 = vmatprep.subr.mxu0 0.0
    %2070 = vmatpush2.msra.mxu0 0.0
    %2071 = vmatprep.subr.mxu0 0.0
    %2072 = vmatpush2.msra.mxu0 0.0
    %2073 = vmatprep.subr.mxu0 0.0
    %2074 = vmatpush2.msra.mxu0 0.0
    %2075 = vmatprep.subr.mxu0 0.0
    %2076 = vmatpush2.msra.mxu0 0.0
    %2077 = vmatprep.subr.mxu0 0.0
    %2078 = vmatpush2.msra.mxu0 0.0
    %2079 = vmatprep.subr.mxu0 0.0
    %2080 = vmatpush2.msra.mxu0 0.0
    %2081 = vmatprep.subr.mxu0 0.0
    %2082 = vmatpush2.msra.mxu0 0.0
    %2083 = vmatprep.subr.mxu0 0.0
    %2084 = vmatpush2.msra.mxu0 0.0
    %2085 = vmatprep.subr.mxu0 0.0
    %2086 = vmatpush2.msra.mxu0 0.0
    %2087 = vmatprep.subr.mxu0 0.0
    %2088 = vmatpush2.msra.mxu0 0.0
    %2089 = vmatprep.mubr.f32.mxu0 0.0
    %2090 = vmatmul.mubr.f32.gmra.mxu0 %v2023
    %v2091 = vpop.f32.mrf.mxu0
    %v2092 = vadd.f32 0.0, %v2091
    %v2093 = vpop.f32.mrf.mxu0
    %2094 = vdwg.mxu0
    %v2096 = vrot.slane %v2092, 1
    %v2098 = vadd.f32 %v1250, %v2096
    %v2099 = vxor.u32 %v2098, 2147483648
    %v2100 = vmul.f32 %v2099, 1.442695
    %v2101 = vpow.pop %v2100
    %v2102 = vadd.f32 %v2101, 1.0
    %v2103 = vrcp.pop %v2102
    %v2104 = vmul.f32 1.0, %v2103
    %v2105 = vtanh.pop %v2098
    %v2107 = vrot.slane %v2008, 7
    %v2109 = vmul.f32 %v2104, %v2107
    %2111 = vrot.lane.b32.xlu0 %v2105, 64
    %v2112 = vpop.permute.xlu0 %2111
    %v2114 = vmul.f32 %v2104, %v2112
    %2116 = vrot.lane.b32.xlu0 %v2114, 32
    %v2117 = vpop.permute.xlu0 %2116
    %v2119 = vadd.f32 %v2109, %v2117
    %v2120 = vtanh.pop %v2119
    %2122 = vrot.lane.b32.xlu0 %v2120, 64
    %v2123 = vpop.permute.xlu0 %2122
    %v2125 = vmul.f32 %v2104, %v2123
    %2127 = vrot.lane.b32.xlu0 %v2125, 32
    %v2128 = vpop.permute.xlu0 %2127
    %2130 = vst.msk [vmem:[#allocation2] sm:$0x80] %vm1166, %v2128
    %v2131 = vld [vmem:[#allocation2] sm:$0xff]
    %v2132 = vld [vmem:[%s9] sm:$0xff]
    %v2133 = vld [vmem:[%s9 + $0x8] sm:$0xff]
    %v2134 = vld [vmem:[%s9 + $0x10] sm:$0xff]
    %v2135 = vld [vmem:[%s9 + $0x18] sm:$0xff]
    %v2136 = vld [vmem:[%s10] sm:$0x1]
    %v2138 = vlaneseq
    %v2139 = vshrl.u32 %v2138, 7
    %v2140 = vsub.s32 0, %v2139
    %v2141 = vrot.slane %v2136, %v2140
    %v2144 = vsel %vm282, %v2131, 0
    %2146 = vmatprep.subr.mxu0 0.0
    %2147 = vmatpush1.msra.mxu0 0.0
    %2148 = vmatprep.subr.mxu0 0.0
    %2149 = vmatpush1.msra.mxu0 0.0
    %2150 = vmatprep.subr.mxu0 0.0
    %2151 = vmatpush1.msra.mxu0 0.0
    %2152 = vmatprep.subr.mxu0 0.0
    %2153 = vmatpush1.msra.mxu0 0.0
    %2154 = vmatprep.subr.mxu0 0.0
    %2155 = vmatpush1.msra.mxu0 0.0
    %2156 = vmatprep.subr.mxu0 0.0
    %2157 = vmatpush1.msra.mxu0 0.0
    %2158 = vmatprep.subr.mxu0 0.0
    %2159 = vmatpush1.msra.mxu0 0.0
    %2160 = vmatprep.subr.mxu0 0.0
    %2161 = vmatpush1.msra.mxu0 0.0
    %2162 = vmatprep.subr.mxu0 0.0
    %2163 = vmatpush1.msra.mxu0 0.0
    %2164 = vmatprep.subr.mxu0 0.0
    %2165 = vmatpush1.msra.mxu0 0.0
    %2166 = vmatprep.subr.mxu0 0.0
    %2167 = vmatpush1.msra.mxu0 0.0
    %2168 = vmatprep.subr.mxu0 0.0
    %2169 = vmatpush1.msra.mxu0 0.0
    %2170 = vmatprep.subr.mxu0 0.0
    %2171 = vmatpush1.msra.mxu0 %v2135
    %2172 = vmatprep.subr.mxu0 0.0
    %2173 = vmatpush1.msra.mxu0 %v2134
    %2174 = vmatprep.subr.mxu0 0.0
    %2175 = vmatpush1.msra.mxu0 %v2133
    %2176 = vmatprep.subr.mxu0 0.0
    %2177 = vmatpush1.msra.mxu0 %v2132
    %2178 = vmatprep.subr.mxu0 0.0
    %2179 = vmatpush2.msra.mxu0 0.0
    %2180 = vmatprep.subr.mxu0 0.0
    %2181 = vmatpush2.msra.mxu0 0.0
    %2182 = vmatprep.subr.mxu0 0.0
    %2183 = vmatpush2.msra.mxu0 0.0
    %2184 = vmatprep.subr.mxu0 0.0
    %2185 = vmatpush2.msra.mxu0 0.0
    %2186 = vmatprep.subr.mxu0 0.0
    %2187 = vmatpush2.msra.mxu0 0.0
    %2188 = vmatprep.subr.mxu0 0.0
    %2189 = vmatpush2.msra.mxu0 0.0
    %2190 = vmatprep.subr.mxu0 0.0
    %2191 = vmatpush2.msra.mxu0 0.0
    %2192 = vmatprep.subr.mxu0 0.0
    %2193 = vmatpush2.msra.mxu0 0.0
    %2194 = vmatprep.subr.mxu0 0.0
    %2195 = vmatpush2.msra.mxu0 0.0
    %2196 = vmatprep.subr.mxu0 0.0
    %2197 = vmatpush2.msra.mxu0 0.0
    %2198 = vmatprep.subr.mxu0 0.0
    %2199 = vmatpush2.msra.mxu0 0.0
    %2200 = vmatprep.subr.mxu0 0.0
    %2201 = vmatpush2.msra.mxu0 0.0
    %2202 = vmatprep.subr.mxu0 0.0
    %2203 = vmatpush2.msra.mxu0 0.0
    %2204 = vmatprep.subr.mxu0 0.0
    %2205 = vmatpush2.msra.mxu0 0.0
    %2206 = vmatprep.subr.mxu0 0.0
    %2207 = vmatpush2.msra.mxu0 0.0
    %2208 = vmatprep.subr.mxu0 0.0
    %2209 = vmatpush2.msra.mxu0 0.0
    %2210 = vmatprep.mubr.f32.mxu0 0.0
    %2211 = vmatmul.mubr.f32.gmra.mxu0 %v2144
    %v2212 = vpop.f32.mrf.mxu0
    %v2213 = vadd.f32 %v2141, %v2212
    %v2214 = vpop.f32.mrf.mxu0
    %2215 = vdwg.mxu0
    %v2216 = vtanh.pop %v2213
    %vm2217 = vcmask 48128
    %2218 = vst.msk [vmem:[#allocation3] sm:$0xff] %vm2217, %v2216
    %v2219 = vxor.u32 %v2213, 2147483648
    %v2220 = vmul.f32 %v2219, 1.442695
    %v2221 = vpow.pop %v2220
    %v2222 = vadd.f32 %v2221, 1.0
    %v2223 = vrcp.pop %v2222
    %v2224 = vmul.f32 1.0, %v2223
    %2226 = vrot.lane.b32.xlu0 %v2224, 122
    %v2227 = vpop.permute.xlu0 %2226
    %vm2229 = vcmask 7168
    %2230 = vst.msk [vmem:[%s12] sm:$0xff] %vm2229, %v2227
    // Predicated region
    $region46: #{lstm_controller_forward.3} parent=1 // pred_check
      _
    $region47: #{lstm_controller_forward.3} parent=1 // pred_check_branch
      %2232 = sbr.rel (0) target = $region49
    $region48: #{lstm_controller_forward.3} parent=1 // pred_region
      %s2234 = ssub.s32 128, 128
      %2235 = vsyncadd [#allocation4], %s2234
      %s2237 = sshll.u32 [#allocation3], 4
      %s2238 = int_to_ptr.vmem [resolvable:$true] %s2237
      %2240 = dma.vmem_to_hbm [thread:$0]  %s2238, 128, %s11, [#allocation4]
    $region49: #{lstm_controller_forward.3} parent=1 // pred_fallthru
      _
    // Predicated region
    $region50: #{lstm_controller_forward.3} parent=1 // pred_check
      _
    $region51: #{lstm_controller_forward.3} parent=1 // pred_check_branch
      %2242 = sbr.rel (0) target = $region53
    $region52: #{lstm_controller_forward.3} parent=1 // pred_region
      _
    $region53: #{lstm_controller_forward.3} parent=1 // pred_fallthru
      _
    // Predicated region
    $region54: #{lstm_controller_forward.3} parent=1 // pred_check
      _
    $region55: #{lstm_controller_forward.3} parent=1 // pred_check_branch
      %2244 = sbr.rel (0) target = $region57
    $region56: #{lstm_controller_forward.3} parent=1 // pred_region
      %2245 = dma.done [#allocation4], 128
    $region57: #{lstm_controller_forward.3} parent=1 // pred_fallthru
      _
    // Predicated region
    $region58: #{lstm_controller_forward.3} parent=1 // pred_check
      _
    $region59: #{lstm_controller_forward.3} parent=1 // pred_check_branch
      %2247 = sbr.rel (0) target = $region61
    $region60: #{lstm_controller_forward.3} parent=1 // pred_region
      _
    $region61: #{lstm_controller_forward.3} parent=1 // pred_fallthru
      _
    %2248 = vsyncpa [#allocation4], 1

</llo_original>
